<compile_context>
chip_gen: v7x
topology: tpu7x:2x2x1
jax: 0.10.0
libtpu: 0.0.40
codegen_flags: <defaults>
</compile_context>

<pallas_src>
import functools

import jax
import jax.numpy as jnp
from jax.experimental import pallas as pl
from jax.experimental.pallas import tpu as pltpu

C_IN = 176
C_OUT = 1056
BN_EPS = 1e-5


def _fused_kernel(x1_ref, x2_ref, w_ref, gb_ref, o_ref):
    # x1_ref, x2_ref : (C_in, M)  f32   flattened NCHW inputs (N=1)
    # w_ref          : (TN, C_in) bf16  conv weight tile
    # gb_ref         : (TN, 2)    f32   packed BN affine params [gamma | beta]
    # o_ref          : (TN, M)    f32
    x = (x1_ref[...] + x2_ref[...]).astype(jnp.bfloat16)            # elementwise add
    # 1x1 conv == matmul on the MXU, f32 accumulation.
    y = jnp.dot(w_ref[...], x, preferred_element_type=jnp.float32)  # (TN, M)

    # Single-pass batch statistics per output channel (row).
    # NOTE: assumes each block covers the FULL spatial extent M (it does:
    # the grid only splits C_out), otherwise stats would be per-tile and wrong.
    inv_m = jnp.float32(1.0 / y.shape[1])
    sum_y = jnp.sum(y, axis=1, keepdims=True)                       # (TN, 1)
    sum_y2 = jnp.sum(y * y, axis=1, keepdims=True)                  # (TN, 1)
    mean = sum_y * inv_m
    var = sum_y2 * inv_m - mean * mean                              # biased variance
    var = jnp.maximum(var, jnp.float32(0.0))                        # guard cancellation
    inv_std = jax.lax.rsqrt(var + jnp.float32(BN_EPS))

    # Fold BN into per-channel scale/shift (tiny (TN,1) vectors).
    gamma = gb_ref[:, 0:1]
    beta = gb_ref[:, 1:2]
    scale = gamma * inv_std
    shift = beta - mean * scale
    o_ref[...] = (y * scale + shift).astype(o_ref.dtype)


def _num_cout_blocks():
    """2 C_out blocks on v7x (2 TensorCores/chip), 1 block elsewhere."""
    try:
        kind = jax.devices()[0].device_kind.lower()
    except Exception:
        return 1
    return 2 if "v7" in kind else 1


def prepare_params(conv_w, bn_gamma, bn_beta):
    """One-time parameter packing, done OUTSIDE the jitted hot path:
    weight -> (C_OUT, C_IN) bf16 (halves the largest HBM transfer),
    gamma/beta -> single packed (C_OUT, 2) f32 array."""
    wmat = jnp.asarray(conv_w).reshape(C_OUT, C_IN).astype(jnp.bfloat16)
    gb = jnp.stack(
        [jnp.asarray(bn_gamma).reshape(C_OUT).astype(jnp.float32),
         jnp.asarray(bn_beta).reshape(C_OUT).astype(jnp.float32)],
        axis=1,
    )  # (C_OUT, 2)
    return jax.device_put(wmat), jax.device_put(gb)


@functools.partial(jax.jit, static_argnames=("num_blocks",))
def fused_add_conv_bn(x321, x307, wmat_bf16, gb, *, num_blocks=1):
    """x321, x307: (1, C_in, H, W) f32 (NCHW).
    wmat_bf16: (C_out, C_in) bf16. gb: (C_out, 2) f32 [gamma | beta].
    Returns (1, C_out, H, W) f32."""
    n, c_in, h, w = x321.shape
    assert n == 1 and c_in == C_IN, "kernel is specialized to N=1, C_in=176"
    assert C_OUT % num_blocks == 0
    m = n * h * w
    tn = C_OUT // num_blocks

    # NCHW with N=1: pure reshapes, no transposes.
    a = x321.reshape(C_IN, m)
    b = x307.reshape(C_IN, m)

    flops = 2 * m * C_IN * C_OUT
    bytes_accessed = (
        2 * C_IN * m * 4          # two f32 inputs
        + C_OUT * C_IN * 2        # bf16 weight
        + C_OUT * 2 * 4           # packed gamma/beta
        + C_OUT * m * 4           # f32 output
    )

    out = pl.pallas_call(
        _fused_kernel,
        out_shape=jax.ShapeDtypeStruct((C_OUT, m), jnp.float32),
        grid=(num_blocks,),
        in_specs=[
            pl.BlockSpec((C_IN, m), lambda j: (0, 0)),
            pl.BlockSpec((C_IN, m), lambda j: (0, 0)),
            pl.BlockSpec((tn, C_IN), lambda j: (j, 0)),
            pl.BlockSpec((tn, 2), lambda j: (j, 0)),
        ],
        out_specs=pl.BlockSpec((tn, m), lambda j: (j, 0)),
        compiler_params=pltpu.CompilerParams(
            dimension_semantics=("parallel",),
        ),
        cost_estimate=pl.CostEstimate(
            flops=flops, transcendentals=C_OUT, bytes_accessed=bytes_accessed
        ),
    )(a, b, wmat_bf16, gb)

    # (C_out, M) -> (1, C_out, H, W): pure reshape.
    return out.reshape(n, C_OUT, h, w)


def _reference(x321, x307, conv_w, bn_gamma, bn_beta):
    """Pure-JAX f32 reference (module semantics)."""
    x = x321 + x307
    n, c, h, w = x.shape
    xf = x.reshape(c, n * h * w)                        # N=1
    y = conv_w.reshape(C_OUT, C_IN) @ xf                # (C_out, M)
    mean = jnp.mean(y, axis=1, keepdims=True)
    var = jnp.mean((y - mean) ** 2, axis=1, keepdims=True)
    y = (y - mean) / jnp.sqrt(var + BN_EPS)
    y = y * bn_gamma.reshape(-1, 1) + bn_beta.reshape(-1, 1)
    return y.reshape(n, C_OUT, h, w)


if __name__ == "__main__":
    key = jax.random.PRNGKey(0)
    k1, k2, k3, k4, k5 = jax.random.split(key, 5)

    # Same shapes as the PyTorch module's example inputs.
    x321 = jax.random.normal(k1, (1, C_IN, 14, 14), dtype=jnp.float32)
    x307 = jax.random.normal(k2, (1, C_IN, 14, 14), dtype=jnp.float32)

    # Deterministic synthetic parameters (shapes from the module's __init__).
    conv_w = jax.random.normal(k3, (C_OUT, C_IN, 1, 1), dtype=jnp.float32) * (1.0 / (C_IN ** 0.5))
    bn_gamma = 1.0 + 0.1 * jax.random.normal(k4, (C_OUT,), dtype=jnp.float32)
    bn_beta = 0.1 * jax.random.normal(k5, (C_OUT,), dtype=jnp.float32)

    # One-time prep (outside the per-call hot path): bf16 weight + packed BN params.
    wmat_bf16, gb = prepare_params(conv_w, bn_gamma, bn_beta)

    num_blocks = _num_cout_blocks()   # 2 on v7x (2 TCs), 1 on v5e/v6e
    out = fused_add_conv_bn(x321, x307, wmat_bf16, gb, num_blocks=num_blocks)
    out = jax.block_until_ready(out)

    ref = _reference(x321, x307, conv_w, bn_gamma, bn_beta)
    assert out.shape == (1, C_OUT, 14, 14)
    # bf16 matmul inputs (f32 accumulation) vs f32 reference -> loose-ish tolerance.
    assert jnp.allclose(out, ref, rtol=2e-2, atol=2e-2), "mismatch vs reference"

    print("KERNEL_OK")
</pallas_src>

<mosaic_0001>
module attributes {stable_mosaic.version = 11 : i64} {
  func.func @_fused_kernel(%arg0: i32, %arg1: memref<176x196xf32, #tpu.memory_space<vmem>>, %arg2: memref<176x196xf32, #tpu.memory_space<vmem>>, %arg3: memref<1056x176xbf16, #tpu.memory_space<vmem>>, %arg4: memref<1056x2xf32, #tpu.memory_space<vmem>>, %arg5: memref<1056x196xf32, #tpu.memory_space<vmem>>) attributes {dimension_semantics = [#tpu.dimension_semantics<parallel>], iteration_bounds = array<i64: 1>, scalar_prefetch = 0 : i64, scratch_operands = 0 : i64, tpu.core_type = #tpu.core_type<tc>, window_params = [{pipeline_mode = #tpu.pipeline_mode<synchronous>, transform_indices = @transform_0, window_bounds = array<i64: 176, 196>}, {pipeline_mode = #tpu.pipeline_mode<synchronous>, transform_indices = @transform_1, window_bounds = array<i64: 176, 196>}, {transform_indices = @transform_2, window_bounds = array<i64: 1056, 176>}, {transform_indices = @transform_3, window_bounds = array<i64: 1056, 2>}, {transform_indices = @transform_4, window_bounds = array<i64: 1056, 196>}]} {
    %c0 = arith.constant 0 : index
    %c0_0 = arith.constant 0 : index
    %0 = vector.load %arg1[%c0, %c0_0] : memref<176x196xf32, #tpu.memory_space<vmem>>, vector<176x196xf32>
    %c0_1 = arith.constant 0 : index
    %c0_2 = arith.constant 0 : index
    %1 = vector.load %arg2[%c0_1, %c0_2] : memref<176x196xf32, #tpu.memory_space<vmem>>, vector<176x196xf32>
    %2 = arith.addf %0, %1 : vector<176x196xf32>
    %3 = arith.truncf %2 : vector<176x196xf32> to vector<176x196xbf16>
    %c0_3 = arith.constant 0 : index
    %c0_4 = arith.constant 0 : index
    %4 = vector.load %arg3[%c0_3, %c0_4] : memref<1056x176xbf16, #tpu.memory_space<vmem>>, vector<1056x176xbf16>
    %cst = arith.constant dense<0.000000e+00> : vector<1056x196xf32>
    %5 = tpu.matmul %4, %3, %cst {dimension_numbers = #tpu.dot_dimension_numbers<[1], [0], [0], [1], [0, 0, 1, 1], [], []>} : vector<1056x176xbf16>, vector<176x196xbf16>, vector<1056x196xf32> -> vector<1056x196xf32>
    %cst_5 = arith.constant dense<0.000000e+00> : vector<1056xf32>
    %6 = vector.multi_reduction <add>, %5, %cst_5 [1] : vector<1056x196xf32> to vector<1056xf32>
    %7 = vector.shape_cast %6 : vector<1056xf32> to vector<1056x1xf32>
    %8 = arith.mulf %5, %5 : vector<1056x196xf32>
    %cst_6 = arith.constant dense<0.000000e+00> : vector<1056xf32>
    %9 = vector.multi_reduction <add>, %8, %cst_6 [1] : vector<1056x196xf32> to vector<1056xf32>
    %10 = vector.shape_cast %9 : vector<1056xf32> to vector<1056x1xf32>
    %cst_7 = arith.constant 0.00510204071 : f32
    %11 = vector.broadcast %cst_7 : f32 to vector<1056x1xf32>
    %12 = arith.mulf %7, %11 : vector<1056x1xf32>
    %cst_8 = arith.constant 0.00510204071 : f32
    %13 = vector.broadcast %cst_8 : f32 to vector<1056x1xf32>
    %14 = arith.mulf %10, %13 : vector<1056x1xf32>
    %15 = arith.mulf %12, %12 : vector<1056x1xf32>
    %16 = arith.subf %14, %15 : vector<1056x1xf32>
    %cst_9 = arith.constant 0.000000e+00 : f32
    %17 = vector.broadcast %cst_9 : f32 to vector<1056x1xf32>
    %18 = arith.maximumf %16, %17 : vector<1056x1xf32>
    %cst_10 = arith.constant 9.99999974E-6 : f32
    %19 = vector.broadcast %cst_10 : f32 to vector<1056x1xf32>
    %20 = arith.addf %18, %19 : vector<1056x1xf32>
    %21 = math.rsqrt %20 : vector<1056x1xf32>
    %c0_11 = arith.constant 0 : index
    %c0_12 = arith.constant 0 : index
    %22 = vector.load %arg4[%c0_11, %c0_12] : memref<1056x2xf32, #tpu.memory_space<vmem>>, vector<1056x1xf32>
    %c0_13 = arith.constant 0 : index
    %c1 = arith.constant 1 : index
    %23 = vector.load %arg4[%c0_13, %c1] : memref<1056x2xf32, #tpu.memory_space<vmem>>, vector<1056x1xf32>
    %24 = arith.mulf %22, %21 : vector<1056x1xf32>
    %25 = arith.mulf %12, %24 : vector<1056x1xf32>
    %26 = arith.subf %23, %25 : vector<1056x1xf32>
    %27 = vector.broadcast %24 : vector<1056x1xf32> to vector<1056x196xf32>
    %28 = arith.mulf %5, %27 : vector<1056x196xf32>
    %29 = vector.broadcast %26 : vector<1056x1xf32> to vector<1056x196xf32>
    %30 = arith.addf %28, %29 : vector<1056x196xf32>
    %c0_14 = arith.constant 0 : index
    %c0_15 = arith.constant 0 : index
    %31 = vector.load %arg5[%c0_14, %c0_15] : memref<1056x196xf32, #tpu.memory_space<vmem>>, vector<1056x196xf32>
    tpu.vector_store %arg5[%c0_14, %c0_15], %30 {strides = array<i32>} : memref<1056x196xf32, #tpu.memory_space<vmem>>, vector<1056x196xf32>,
    return
  }
  func.func @transform_0(%arg0: i32) -> (i32, i32) {
    %c0_i32 = arith.constant 0 : i32
    %c0_i32_0 = arith.constant 0 : i32
    %c0_i32_1 = arith.constant 0 : i32
    return %c0_i32, %c0_i32_0 : i32, i32
  }
  func.func @transform_1(%arg0: i32) -> (i32, i32) {
    %c0_i32 = arith.constant 0 : i32
    %c0_i32_0 = arith.constant 0 : i32
    %c0_i32_1 = arith.constant 0 : i32
    return %c0_i32, %c0_i32_0 : i32, i32
  }
  func.func @transform_2(%arg0: i32) -> (i32, i32) {
    %c0_i32 = arith.constant 0 : i32
    %c0_i32_0 = arith.constant 0 : i32
    return %arg0, %c0_i32 : i32, i32
  }
  func.func @transform_3(%arg0: i32) -> (i32, i32) {
    %c0_i32 = arith.constant 0 : i32
    %c0_i32_0 = arith.constant 0 : i32
    return %arg0, %c0_i32 : i32, i32
  }
  func.func @transform_4(%arg0: i32) -> (i32, i32) {
    %c0_i32 = arith.constant 0 : i32
    %c0_i32_0 = arith.constant 0 : i32
    return %arg0, %c0_i32 : i32, i32
  }
}

</mosaic_0001>

<llo_original>
// kernel: fused_add_conv_bn.1
$region0: #{fused_add_conv_bn.1}
  #allocation0 [shape = 'u32[]', space=smem, size = 0x4, offset = 0x4, fixed_abs, tag = 'smem constant byte address 0x4 - core index']
  #allocation1 [shape = 'u32[144,128]{1,0:T(1,128)}', space=vmem, size = 0x12000, scoped, tag = 'internal scratch']
  %s0 = inlined_call_operand.vmem [shape: f32[176,196], index: 0, kind: input, shape index: {}]
  %s1 = inlined_call_operand.vmem [shape: f32[176,196], index: 1, kind: input, shape index: {}]
  %s2 = inlined_call_operand.vmem [shape: bf16[1056,176], index: 2, kind: input, shape index: {}]
  %s3 = inlined_call_operand.vmem [shape: f32[1056,2], index: 3, kind: input, shape index: {}]
  %s4 = inlined_call_operand.vmem [shape: f32[1056,196], index: 4, kind: output, shape index: {}]
  %s5 = sld [smem:[#allocation0]]
  $region26: #{fused_add_conv_bn.1} parent=0
    _
  %s7 = ssub.s32 1, %s5
  %s8 = scalar_select 0, %s7, %s5
  // Predicated region
  $region2: #{fused_add_conv_bn.1} parent=0 // pred_check
    _
  $region3: #{fused_add_conv_bn.1} parent=0 // pred_check_branch
    %10 = sbr.rel (0) target = $region5
  $region4: #{fused_add_conv_bn.1} parent=0 // pred_region
    _
  $region5: #{fused_add_conv_bn.1} parent=0 // pred_fallthru
    _
  // Predicated region
  $region6: #{fused_add_conv_bn.1} parent=0 // pred_check
    _
  $region7: #{fused_add_conv_bn.1} parent=0 // pred_check_branch
    %12 = sbr.rel (0) target = $region9
  $region8: #{fused_add_conv_bn.1} parent=0 // pred_region
    _
  $region9: #{fused_add_conv_bn.1} parent=0 // pred_fallthru
    _
  // Predicated region
  $region10: #{fused_add_conv_bn.1} parent=0 // pred_check
    _
  $region11: #{fused_add_conv_bn.1} parent=0 // pred_check_branch
    %14 = sbr.rel (0) target = $region13
  $region12: #{fused_add_conv_bn.1} parent=0 // pred_region
    _
  $region13: #{fused_add_conv_bn.1} parent=0 // pred_fallthru
    _
  // Predicated region
  $region14: #{fused_add_conv_bn.1} parent=0 // pred_check
    _
  $region15: #{fused_add_conv_bn.1} parent=0 // pred_check_branch
    %16 = sbr.rel (0) target = $region17
  $region16: #{fused_add_conv_bn.1} parent=0 // pred_region
    _
  $region17: #{fused_add_conv_bn.1} parent=0 // pred_fallthru
    _
  %v18 = vld [vmem:[%s0] sm:$0xff]
  %v19 = vld [vmem:[%s0 + $0x8] sm:$0xff]
  %v20 = vld [vmem:[%s0 + $0x10] sm:$0xff]
  %v21 = vld [vmem:[%s0 + $0x18] sm:$0xff]
  %v22 = vld [vmem:[%s0 + $0x20] sm:$0xff]
  %v23 = vld [vmem:[%s0 + $0x28] sm:$0xff]
  %v24 = vld [vmem:[%s0 + $0x30] sm:$0xff]
  %v25 = vld [vmem:[%s0 + $0x38] sm:$0xff]
  %v26 = vld [vmem:[%s0 + $0x40] sm:$0xff]
  %v27 = vld [vmem:[%s0 + $0x48] sm:$0xff]
  %v28 = vld [vmem:[%s0 + $0x50] sm:$0xff]
  %v29 = vld [vmem:[%s0 + $0x58] sm:$0xff]
  %v30 = vld [vmem:[%s0 + $0x60] sm:$0xff]
  %v31 = vld [vmem:[%s0 + $0x68] sm:$0xff]
  %v32 = vld [vmem:[%s0 + $0x70] sm:$0xff]
  %v33 = vld [vmem:[%s0 + $0x78] sm:$0xff]
  %v34 = vld [vmem:[%s0 + $0x80] sm:$0xff]
  %v35 = vld [vmem:[%s0 + $0x88] sm:$0xff]
  %v36 = vld [vmem:[%s0 + $0x90] sm:$0xff]
  %v37 = vld [vmem:[%s0 + $0x98] sm:$0xff]
  %v38 = vld [vmem:[%s0 + $0xa0] sm:$0xff]
  %v39 = vld [vmem:[%s0 + $0xa8] sm:$0xff]
  %v40 = vld [vmem:[%s0 + $0xb0] sm:$0xff]
  %v41 = vld [vmem:[%s0 + $0xb8] sm:$0xff]
  %v42 = vld [vmem:[%s0 + $0xc0] sm:$0xff]
  %v43 = vld [vmem:[%s0 + $0xc8] sm:$0xff]
  %v44 = vld [vmem:[%s0 + $0xd0] sm:$0xff]
  %v45 = vld [vmem:[%s0 + $0xd8] sm:$0xff]
  %v46 = vld [vmem:[%s0 + $0xe0] sm:$0xff]
  %v47 = vld [vmem:[%s0 + $0xe8] sm:$0xff]
  %v48 = vld [vmem:[%s0 + $0xf0] sm:$0xff]
  %v49 = vld [vmem:[%s0 + $0xf8] sm:$0xff]
  %v50 = vld [vmem:[%s0 + $0x100] sm:$0xff]
  %v51 = vld [vmem:[%s0 + $0x108] sm:$0xff]
  %v52 = vld [vmem:[%s0 + $0x110] sm:$0xff]
  %v53 = vld [vmem:[%s0 + $0x118] sm:$0xff]
  %v54 = vld [vmem:[%s0 + $0x120] sm:$0xff]
  %v55 = vld [vmem:[%s0 + $0x128] sm:$0xff]
  %v56 = vld [vmem:[%s0 + $0x130] sm:$0xff]
  %v57 = vld [vmem:[%s0 + $0x138] sm:$0xff]
  %v58 = vld [vmem:[%s0 + $0x140] sm:$0xff]
  %v59 = vld [vmem:[%s0 + $0x148] sm:$0xff]
  %v60 = vld [vmem:[%s0 + $0x150] sm:$0xff]
  %v61 = vld [vmem:[%s0 + $0x158] sm:$0xff]
  %v62 = vld [vmem:[%s1] sm:$0xff]
  %v63 = vld [vmem:[%s1 + $0x8] sm:$0xff]
  %v64 = vld [vmem:[%s1 + $0x10] sm:$0xff]
  %v65 = vld [vmem:[%s1 + $0x18] sm:$0xff]
  %v66 = vld [vmem:[%s1 + $0x20] sm:$0xff]
  %v67 = vld [vmem:[%s1 + $0x28] sm:$0xff]
  %v68 = vld [vmem:[%s1 + $0x30] sm:$0xff]
  %v69 = vld [vmem:[%s1 + $0x38] sm:$0xff]
  %v70 = vld [vmem:[%s1 + $0x40] sm:$0xff]
  %v71 = vld [vmem:[%s1 + $0x48] sm:$0xff]
  %v72 = vld [vmem:[%s1 + $0x50] sm:$0xff]
  %v73 = vld [vmem:[%s1 + $0x58] sm:$0xff]
  %v74 = vld [vmem:[%s1 + $0x60] sm:$0xff]
  %v75 = vld [vmem:[%s1 + $0x68] sm:$0xff]
  %v76 = vld [vmem:[%s1 + $0x70] sm:$0xff]
  %v77 = vld [vmem:[%s1 + $0x78] sm:$0xff]
  %v78 = vld [vmem:[%s1 + $0x80] sm:$0xff]
  %v79 = vld [vmem:[%s1 + $0x88] sm:$0xff]
  %v80 = vld [vmem:[%s1 + $0x90] sm:$0xff]
  %v81 = vld [vmem:[%s1 + $0x98] sm:$0xff]
  %v82 = vld [vmem:[%s1 + $0xa0] sm:$0xff]
  %v83 = vld [vmem:[%s1 + $0xa8] sm:$0xff]
  %v84 = vld [vmem:[%s1 + $0xb0] sm:$0xff]
  %v85 = vld [vmem:[%s1 + $0xb8] sm:$0xff]
  %v86 = vld [vmem:[%s1 + $0xc0] sm:$0xff]
  %v87 = vld [vmem:[%s1 + $0xc8] sm:$0xff]
  %v88 = vld [vmem:[%s1 + $0xd0] sm:$0xff]
  %v89 = vld [vmem:[%s1 + $0xd8] sm:$0xff]
  %v90 = vld [vmem:[%s1 + $0xe0] sm:$0xff]
  %v91 = vld [vmem:[%s1 + $0xe8] sm:$0xff]
  %v92 = vld [vmem:[%s1 + $0xf0] sm:$0xff]
  %v93 = vld [vmem:[%s1 + $0xf8] sm:$0xff]
  %v94 = vld [vmem:[%s1 + $0x100] sm:$0xff]
  %v95 = vld [vmem:[%s1 + $0x108] sm:$0xff]
  %v96 = vld [vmem:[%s1 + $0x110] sm:$0xff]
  %v97 = vld [vmem:[%s1 + $0x118] sm:$0xff]
  %v98 = vld [vmem:[%s1 + $0x120] sm:$0xff]
  %v99 = vld [vmem:[%s1 + $0x128] sm:$0xff]
  %v100 = vld [vmem:[%s1 + $0x130] sm:$0xff]
  %v101 = vld [vmem:[%s1 + $0x138] sm:$0xff]
  %v102 = vld [vmem:[%s1 + $0x140] sm:$0xff]
  %v103 = vld [vmem:[%s1 + $0x148] sm:$0xff]
  %v104 = vld [vmem:[%s1 + $0x150] sm:$0xff]
  %v105 = vld [vmem:[%s1 + $0x158] sm:$0xff]
  %v106 = vadd.f32 %v18, %v62
  %v107 = vadd.f32 %v19, %v63
  %v108 = vadd.f32 %v20, %v64
  %v109 = vadd.f32 %v21, %v65
  %v110 = vadd.f32 %v22, %v66
  %v111 = vadd.f32 %v23, %v67
  %v112 = vadd.f32 %v24, %v68
  %v113 = vadd.f32 %v25, %v69
  %v114 = vadd.f32 %v26, %v70
  %v115 = vadd.f32 %v27, %v71
  %v116 = vadd.f32 %v28, %v72
  %v117 = vadd.f32 %v29, %v73
  %v118 = vadd.f32 %v30, %v74
  %v119 = vadd.f32 %v31, %v75
  %v120 = vadd.f32 %v32, %v76
  %v121 = vadd.f32 %v33, %v77
  %v122 = vadd.f32 %v34, %v78
  %v123 = vadd.f32 %v35, %v79
  %v124 = vadd.f32 %v36, %v80
  %v125 = vadd.f32 %v37, %v81
  %v126 = vadd.f32 %v38, %v82
  %v127 = vadd.f32 %v39, %v83
  %v128 = vadd.f32 %v40, %v84
  %v129 = vadd.f32 %v41, %v85
  %v130 = vadd.f32 %v42, %v86
  %v131 = vadd.f32 %v43, %v87
  %v132 = vadd.f32 %v44, %v88
  %v133 = vadd.f32 %v45, %v89
  %v134 = vadd.f32 %v46, %v90
  %v135 = vadd.f32 %v47, %v91
  %v136 = vadd.f32 %v48, %v92
  %v137 = vadd.f32 %v49, %v93
  %v138 = vadd.f32 %v50, %v94
  %v139 = vadd.f32 %v51, %v95
  %v140 = vadd.f32 %v52, %v96
  %v141 = vadd.f32 %v53, %v97
  %v142 = vadd.f32 %v54, %v98
  %v143 = vadd.f32 %v55, %v99
  %v144 = vadd.f32 %v56, %v100
  %v145 = vadd.f32 %v57, %v101
  %v146 = vadd.f32 %v58, %v102
  %v147 = vadd.f32 %v59, %v103
  %v148 = vadd.f32 %v60, %v104
  %v149 = vadd.f32 %v61, %v105
  %v150 = vpack.c.bf16 %v108, %v106
  %v151 = vpack.c.bf16 %v109, %v107
  %v152 = vpack.c.bf16 %v112, %v110
  %v153 = vpack.c.bf16 %v113, %v111
  %v154 = vpack.c.bf16 %v116, %v114
  %v155 = vpack.c.bf16 %v117, %v115
  %v156 = vpack.c.bf16 %v120, %v118
  %v157 = vpack.c.bf16 %v121, %v119
  %v158 = vpack.c.bf16 %v124, %v122
  %v159 = vpack.c.bf16 %v125, %v123
  %v160 = vpack.c.bf16 %v128, %v126
  %v161 = vpack.c.bf16 %v129, %v127
  %v162 = vpack.c.bf16 %v132, %v130
  %v163 = vpack.c.bf16 %v133, %v131
  %v164 = vpack.c.bf16 %v136, %v134
  %v165 = vpack.c.bf16 %v137, %v135
  %v166 = vpack.c.bf16 %v140, %v138
  %v167 = vpack.c.bf16 %v141, %v139
  %v168 = vpack.c.bf16 %v144, %v142
  %v169 = vpack.c.bf16 %v145, %v143
  %v170 = vpack.c.bf16 %v148, %v146
  %v171 = vpack.c.bf16 %v149, %v147
  %v172 = vld [vmem:[%s2] sm:$0xff]
  %v173 = vld [vmem:[%s2 + $0x8] sm:$0xff]
  %v174 = vld [vmem:[%s2 + $0x10] sm:$0xff]
  %v175 = vld [vmem:[%s2 + $0x18] sm:$0xff]
  %v176 = vld [vmem:[%s2 + $0x20] sm:$0xff]
  %v177 = vld [vmem:[%s2 + $0x28] sm:$0xff]
  %v178 = vld [vmem:[%s2 + $0x30] sm:$0xff]
  %v179 = vld [vmem:[%s2 + $0x38] sm:$0xff]
  %v180 = vld [vmem:[%s2 + $0x40] sm:$0xff]
  %v181 = vld [vmem:[%s2 + $0x48] sm:$0xff]
  %v182 = vld [vmem:[%s2 + $0x50] sm:$0xff]
  %v183 = vld [vmem:[%s2 + $0x58] sm:$0xff]
  %v184 = vld [vmem:[%s2 + $0x60] sm:$0xff]
  %v185 = vld [vmem:[%s2 + $0x68] sm:$0xff]
  %v186 = vld [vmem:[%s2 + $0x70] sm:$0xff]
  %v187 = vld [vmem:[%s2 + $0x78] sm:$0xff]
  %v188 = vld [vmem:[%s2 + $0x80] sm:$0xff]
  %v189 = vld [vmem:[%s2 + $0x88] sm:$0xff]
  %v190 = vld [vmem:[%s2 + $0x90] sm:$0xff]
  %v191 = vld [vmem:[%s2 + $0x98] sm:$0xff]
  %v192 = vld [vmem:[%s2 + $0xa0] sm:$0xff]
  %v193 = vld [vmem:[%s2 + $0xa8] sm:$0xff]
  %v194 = vld [vmem:[%s2 + $0xb0] sm:$0xff]
  %v195 = vld [vmem:[%s2 + $0xb8] sm:$0xff]
  %v196 = vld [vmem:[%s2 + $0xc0] sm:$0xff]
  %v197 = vld [vmem:[%s2 + $0xc8] sm:$0xff]
  %v198 = vld [vmem:[%s2 + $0xd0] sm:$0xff]
  %v199 = vld [vmem:[%s2 + $0xd8] sm:$0xff]
  %v200 = vld [vmem:[%s2 + $0xe0] sm:$0xff]
  %v201 = vld [vmem:[%s2 + $0xe8] sm:$0xff]
  %v202 = vld [vmem:[%s2 + $0xf0] sm:$0xff]
  %v203 = vld [vmem:[%s2 + $0xf8] sm:$0xff]
  %v204 = vld [vmem:[%s2 + $0x100] sm:$0xff]
  %v205 = vld [vmem:[%s2 + $0x108] sm:$0xff]
  %v206 = vld [vmem:[%s2 + $0x110] sm:$0xff]
  %v207 = vld [vmem:[%s2 + $0x118] sm:$0xff]
  %v208 = vld [vmem:[%s2 + $0x120] sm:$0xff]
  %v209 = vld [vmem:[%s2 + $0x128] sm:$0xff]
  %v210 = vld [vmem:[%s2 + $0x130] sm:$0xff]
  %v211 = vld [vmem:[%s2 + $0x138] sm:$0xff]
  %v212 = vld [vmem:[%s2 + $0x140] sm:$0xff]
  %v213 = vld [vmem:[%s2 + $0x148] sm:$0xff]
  %v214 = vld [vmem:[%s2 + $0x150] sm:$0xff]
  %v215 = vld [vmem:[%s2 + $0x158] sm:$0xff]
  %v216 = vld [vmem:[%s2 + $0x160] sm:$0xff]
  %v217 = vld [vmem:[%s2 + $0x168] sm:$0xff]
  %v218 = vld [vmem:[%s2 + $0x170] sm:$0xff]
  %v219 = vld [vmem:[%s2 + $0x178] sm:$0xff]
  %v220 = vld [vmem:[%s2 + $0x180] sm:$0xff]
  %v221 = vld [vmem:[%s2 + $0x188] sm:$0xff]
  %v222 = vld [vmem:[%s2 + $0x190] sm:$0xff]
  %v223 = vld [vmem:[%s2 + $0x198] sm:$0xff]
  %v224 = vld [vmem:[%s2 + $0x1a0] sm:$0xff]
  %v225 = vld [vmem:[%s2 + $0x1a8] sm:$0xff]
  %v226 = vld [vmem:[%s2 + $0x1b0] sm:$0xff]
  %v227 = vld [vmem:[%s2 + $0x1b8] sm:$0xff]
  %v228 = vld [vmem:[%s2 + $0x1c0] sm:$0xff]
  %v229 = vld [vmem:[%s2 + $0x1c8] sm:$0xff]
  %v230 = vld [vmem:[%s2 + $0x1d0] sm:$0xff]
  %v231 = vld [vmem:[%s2 + $0x1d8] sm:$0xff]
  %v232 = vld [vmem:[%s2 + $0x1e0] sm:$0xff]
  %v233 = vld [vmem:[%s2 + $0x1e8] sm:$0xff]
  %v234 = vld [vmem:[%s2 + $0x1f0] sm:$0xff]
  %v235 = vld [vmem:[%s2 + $0x1f8] sm:$0xff]
  %v236 = vld [vmem:[%s2 + $0x200] sm:$0xff]
  %v237 = vld [vmem:[%s2 + $0x208] sm:$0xff]
  %v238 = vld [vmem:[%s2 + $0x210] sm:$0xff]
  %v239 = vld [vmem:[%s2 + $0x218] sm:$0xff]
  %v240 = vld [vmem:[%s2 + $0x220] sm:$0xff]
  %v241 = vld [vmem:[%s2 + $0x228] sm:$0xff]
  %v242 = vld [vmem:[%s2 + $0x230] sm:$0xff]
  %v243 = vld [vmem:[%s2 + $0x238] sm:$0xff]
  %v244 = vld [vmem:[%s2 + $0x240] sm:$0xff]
  %v245 = vld [vmem:[%s2 + $0x248] sm:$0xff]
  %v246 = vld [vmem:[%s2 + $0x250] sm:$0xff]
  %v247 = vld [vmem:[%s2 + $0x258] sm:$0xff]
  %v248 = vld [vmem:[%s2 + $0x260] sm:$0xff]
  %v249 = vld [vmem:[%s2 + $0x268] sm:$0xff]
  %v250 = vld [vmem:[%s2 + $0x270] sm:$0xff]
  %v251 = vld [vmem:[%s2 + $0x278] sm:$0xff]
  %v252 = vld [vmem:[%s2 + $0x280] sm:$0xff]
  %v253 = vld [vmem:[%s2 + $0x288] sm:$0xff]
  %v254 = vld [vmem:[%s2 + $0x290] sm:$0xff]
  %v255 = vld [vmem:[%s2 + $0x298] sm:$0xff]
  %v256 = vld [vmem:[%s2 + $0x2a0] sm:$0xff]
  %v257 = vld [vmem:[%s2 + $0x2a8] sm:$0xff]
  %v258 = vld [vmem:[%s2 + $0x2b0] sm:$0xff]
  %v259 = vld [vmem:[%s2 + $0x2b8] sm:$0xff]
  %v260 = vld [vmem:[%s2 + $0x2c0] sm:$0xff]
  %v261 = vld [vmem:[%s2 + $0x2c8] sm:$0xff]
  %v262 = vld [vmem:[%s2 + $0x2d0] sm:$0xff]
  %v263 = vld [vmem:[%s2 + $0x2d8] sm:$0xff]
  %v264 = vld [vmem:[%s2 + $0x2e0] sm:$0xff]
  %v265 = vld [vmem:[%s2 + $0x2e8] sm:$0xff]
  %v266 = vld [vmem:[%s2 + $0x2f0] sm:$0xff]
  %v267 = vld [vmem:[%s2 + $0x2f8] sm:$0xff]
  %v268 = vld [vmem:[%s2 + $0x300] sm:$0xff]
  %v269 = vld [vmem:[%s2 + $0x308] sm:$0xff]
  %v270 = vld [vmem:[%s2 + $0x310] sm:$0xff]
  %v271 = vld [vmem:[%s2 + $0x318] sm:$0xff]
  %v272 = vld [vmem:[%s2 + $0x320] sm:$0xff]
  %v273 = vld [vmem:[%s2 + $0x328] sm:$0xff]
  %v274 = vld [vmem:[%s2 + $0x330] sm:$0xff]
  %v275 = vld [vmem:[%s2 + $0x338] sm:$0xff]
  %v276 = vld [vmem:[%s2 + $0x340] sm:$0xff]
  %v277 = vld [vmem:[%s2 + $0x348] sm:$0xff]
  %v278 = vld [vmem:[%s2 + $0x350] sm:$0xff]
  %v279 = vld [vmem:[%s2 + $0x358] sm:$0xff]
  %v280 = vld [vmem:[%s2 + $0x360] sm:$0xff]
  %v281 = vld [vmem:[%s2 + $0x368] sm:$0xff]
  %v282 = vld [vmem:[%s2 + $0x370] sm:$0xff]
  %v283 = vld [vmem:[%s2 + $0x378] sm:$0xff]
  %v284 = vld [vmem:[%s2 + $0x380] sm:$0xff]
  %v285 = vld [vmem:[%s2 + $0x388] sm:$0xff]
  %v286 = vld [vmem:[%s2 + $0x390] sm:$0xff]
  %v287 = vld [vmem:[%s2 + $0x398] sm:$0xff]
  %v288 = vld [vmem:[%s2 + $0x3a0] sm:$0xff]
  %v289 = vld [vmem:[%s2 + $0x3a8] sm:$0xff]
  %v290 = vld [vmem:[%s2 + $0x3b0] sm:$0xff]
  %v291 = vld [vmem:[%s2 + $0x3b8] sm:$0xff]
  %v292 = vld [vmem:[%s2 + $0x3c0] sm:$0xff]
  %v293 = vld [vmem:[%s2 + $0x3c8] sm:$0xff]
  %v294 = vld [vmem:[%s2 + $0x3d0] sm:$0xff]
  %v295 = vld [vmem:[%s2 + $0x3d8] sm:$0xff]
  %v296 = vld [vmem:[%s2 + $0x3e0] sm:$0xff]
  %v297 = vld [vmem:[%s2 + $0x3e8] sm:$0xff]
  %v298 = vld [vmem:[%s2 + $0x3f0] sm:$0xff]
  %v299 = vld [vmem:[%s2 + $0x3f8] sm:$0xff]
  %v300 = vld [vmem:[%s2 + $0x400] sm:$0xff]
  %v301 = vld [vmem:[%s2 + $0x408] sm:$0xff]
  %v302 = vld [vmem:[%s2 + $0x410] sm:$0xff]
  %v303 = vld [vmem:[%s2 + $0x418] sm:$0xff]
  %v436 = vunpack.c.l.b16 %v172
  %v437 = vunpack.c.h.b16 %v172
  %v438 = vunpack.c.l.b16 %v173
  %v439 = vunpack.c.h.b16 %v173
  %v440 = vunpack.c.l.b16 %v174
  %v441 = vunpack.c.h.b16 %v174
  %v442 = vunpack.c.l.b16 %v175
  %v443 = vunpack.c.h.b16 %v175
  %v444 = vunpack.c.l.b16 %v176
  %v445 = vunpack.c.h.b16 %v176
  %v446 = vunpack.c.l.b16 %v177
  %v447 = vunpack.c.h.b16 %v177
  %v448 = vunpack.c.l.b16 %v178
  %v449 = vunpack.c.h.b16 %v178
  %v450 = vunpack.c.l.b16 %v179
  %v451 = vunpack.c.h.b16 %v179
  %v452 = vunpack.c.l.b16 %v180
  %v453 = vunpack.c.h.b16 %v180
  %v454 = vunpack.c.l.b16 %v181
  %v455 = vunpack.c.h.b16 %v181
  %v456 = vunpack.c.l.b16 %v182
  %v457 = vunpack.c.h.b16 %v182
  %v458 = vunpack.c.l.b16 %v183
  %v459 = vunpack.c.h.b16 %v183
  %v460 = vunpack.c.l.b16 %v184
  %v461 = vunpack.c.h.b16 %v184
  %v462 = vunpack.c.l.b16 %v185
  %v463 = vunpack.c.h.b16 %v185
  %v464 = vunpack.c.l.b16 %v186
  %v465 = vunpack.c.h.b16 %v186
  %v466 = vunpack.c.l.b16 %v187
  %v467 = vunpack.c.h.b16 %v187
  %v468 = vunpack.c.l.b16 %v188
  %v469 = vunpack.c.h.b16 %v188
  %v470 = vunpack.c.l.b16 %v189
  %v471 = vunpack.c.h.b16 %v189
  %v472 = vunpack.c.l.b16 %v190
  %v473 = vunpack.c.h.b16 %v190
  %v474 = vunpack.c.l.b16 %v191
  %v475 = vunpack.c.h.b16 %v191
  %v476 = vunpack.c.l.b16 %v192
  %v477 = vunpack.c.h.b16 %v192
  %v478 = vunpack.c.l.b16 %v193
  %v479 = vunpack.c.h.b16 %v193
  %v480 = vunpack.c.l.b16 %v194
  %v481 = vunpack.c.h.b16 %v194
  %v482 = vunpack.c.l.b16 %v195
  %v483 = vunpack.c.h.b16 %v195
  %v484 = vunpack.c.l.b16 %v196
  %v485 = vunpack.c.h.b16 %v196
  %v486 = vunpack.c.l.b16 %v197
  %v487 = vunpack.c.h.b16 %v197
  %v488 = vunpack.c.l.b16 %v198
  %v489 = vunpack.c.h.b16 %v198
  %v490 = vunpack.c.l.b16 %v199
  %v491 = vunpack.c.h.b16 %v199
  %v492 = vunpack.c.l.b16 %v200
  %v493 = vunpack.c.h.b16 %v200
  %v494 = vunpack.c.l.b16 %v201
  %v495 = vunpack.c.h.b16 %v201
  %v496 = vunpack.c.l.b16 %v202
  %v497 = vunpack.c.h.b16 %v202
  %v498 = vunpack.c.l.b16 %v203
  %v499 = vunpack.c.h.b16 %v203
  %v500 = vunpack.c.l.b16 %v204
  %v501 = vunpack.c.h.b16 %v204
  %v502 = vunpack.c.l.b16 %v205
  %v503 = vunpack.c.h.b16 %v205
  %v504 = vunpack.c.l.b16 %v206
  %v505 = vunpack.c.h.b16 %v206
  %v506 = vunpack.c.l.b16 %v207
  %v507 = vunpack.c.h.b16 %v207
  %v508 = vunpack.c.l.b16 %v208
  %v509 = vunpack.c.h.b16 %v208
  %v510 = vunpack.c.l.b16 %v209
  %v511 = vunpack.c.h.b16 %v209
  %v512 = vunpack.c.l.b16 %v210
  %v513 = vunpack.c.h.b16 %v210
  %v514 = vunpack.c.l.b16 %v211
  %v515 = vunpack.c.h.b16 %v211
  %v516 = vunpack.c.l.b16 %v212
  %v517 = vunpack.c.h.b16 %v212
  %v518 = vunpack.c.l.b16 %v213
  %v519 = vunpack.c.h.b16 %v213
  %v520 = vunpack.c.l.b16 %v214
  %v521 = vunpack.c.h.b16 %v214
  %v522 = vunpack.c.l.b16 %v215
  %v523 = vunpack.c.h.b16 %v215
  %v524 = vunpack.c.l.b16 %v216
  %v525 = vunpack.c.h.b16 %v216
  %v526 = vunpack.c.l.b16 %v217
  %v527 = vunpack.c.h.b16 %v217
  %v528 = vunpack.c.l.b16 %v218
  %v529 = vunpack.c.h.b16 %v218
  %v530 = vunpack.c.l.b16 %v219
  %v531 = vunpack.c.h.b16 %v219
  %v532 = vunpack.c.l.b16 %v220
  %v533 = vunpack.c.h.b16 %v220
  %v534 = vunpack.c.l.b16 %v221
  %v535 = vunpack.c.h.b16 %v221
  %v536 = vunpack.c.l.b16 %v222
  %v537 = vunpack.c.h.b16 %v222
  %v538 = vunpack.c.l.b16 %v223
  %v539 = vunpack.c.h.b16 %v223
  %v540 = vunpack.c.l.b16 %v224
  %v541 = vunpack.c.h.b16 %v224
  %v542 = vunpack.c.l.b16 %v225
  %v543 = vunpack.c.h.b16 %v225
  %v544 = vunpack.c.l.b16 %v226
  %v545 = vunpack.c.h.b16 %v226
  %v546 = vunpack.c.l.b16 %v227
  %v547 = vunpack.c.h.b16 %v227
  %v548 = vunpack.c.l.b16 %v228
  %v549 = vunpack.c.h.b16 %v228
  %v550 = vunpack.c.l.b16 %v229
  %v551 = vunpack.c.h.b16 %v229
  %v552 = vunpack.c.l.b16 %v230
  %v553 = vunpack.c.h.b16 %v230
  %v554 = vunpack.c.l.b16 %v231
  %v555 = vunpack.c.h.b16 %v231
  %v556 = vunpack.c.l.b16 %v232
  %v557 = vunpack.c.h.b16 %v232
  %v558 = vunpack.c.l.b16 %v233
  %v559 = vunpack.c.h.b16 %v233
  %v560 = vunpack.c.l.b16 %v234
  %v561 = vunpack.c.h.b16 %v234
  %v562 = vunpack.c.l.b16 %v235
  %v563 = vunpack.c.h.b16 %v235
  %v564 = vunpack.c.l.b16 %v236
  %v565 = vunpack.c.h.b16 %v236
  %v566 = vunpack.c.l.b16 %v237
  %v567 = vunpack.c.h.b16 %v237
  %v568 = vunpack.c.l.b16 %v238
  %v569 = vunpack.c.h.b16 %v238
  %v570 = vunpack.c.l.b16 %v239
  %v571 = vunpack.c.h.b16 %v239
  %v572 = vunpack.c.l.b16 %v240
  %v573 = vunpack.c.h.b16 %v240
  %v574 = vunpack.c.l.b16 %v241
  %v575 = vunpack.c.h.b16 %v241
  %v576 = vunpack.c.l.b16 %v242
  %v577 = vunpack.c.h.b16 %v242
  %v578 = vunpack.c.l.b16 %v243
  %v579 = vunpack.c.h.b16 %v243
  %v580 = vunpack.c.l.b16 %v244
  %v581 = vunpack.c.h.b16 %v244
  %v582 = vunpack.c.l.b16 %v245
  %v583 = vunpack.c.h.b16 %v245
  %v584 = vunpack.c.l.b16 %v246
  %v585 = vunpack.c.h.b16 %v246
  %v586 = vunpack.c.l.b16 %v247
  %v587 = vunpack.c.h.b16 %v247
  %v588 = vunpack.c.l.b16 %v248
  %v589 = vunpack.c.h.b16 %v248
  %v590 = vunpack.c.l.b16 %v249
  %v591 = vunpack.c.h.b16 %v249
  %v592 = vunpack.c.l.b16 %v250
  %v593 = vunpack.c.h.b16 %v250
  %v594 = vunpack.c.l.b16 %v251
  %v595 = vunpack.c.h.b16 %v251
  %v596 = vunpack.c.l.b16 %v252
  %v597 = vunpack.c.h.b16 %v252
  %v598 = vunpack.c.l.b16 %v253
  %v599 = vunpack.c.h.b16 %v253
  %v600 = vunpack.c.l.b16 %v254
  %v601 = vunpack.c.h.b16 %v254
  %v602 = vunpack.c.l.b16 %v255
  %v603 = vunpack.c.h.b16 %v255
  %v604 = vunpack.c.l.b16 %v256
  %v605 = vunpack.c.h.b16 %v256
  %v606 = vunpack.c.l.b16 %v257
  %v607 = vunpack.c.h.b16 %v257
  %v608 = vunpack.c.l.b16 %v258
  %v609 = vunpack.c.h.b16 %v258
  %v610 = vunpack.c.l.b16 %v259
  %v611 = vunpack.c.h.b16 %v259
  %v612 = vunpack.c.l.b16 %v260
  %v613 = vunpack.c.h.b16 %v260
  %v614 = vunpack.c.l.b16 %v261
  %v615 = vunpack.c.h.b16 %v261
  %v616 = vunpack.c.l.b16 %v262
  %v617 = vunpack.c.h.b16 %v262
  %v618 = vunpack.c.l.b16 %v263
  %v619 = vunpack.c.h.b16 %v263
  %v620 = vunpack.c.l.b16 %v264
  %v621 = vunpack.c.h.b16 %v264
  %v622 = vunpack.c.l.b16 %v265
  %v623 = vunpack.c.h.b16 %v265
  %v624 = vunpack.c.l.b16 %v266
  %v625 = vunpack.c.h.b16 %v266
  %v626 = vunpack.c.l.b16 %v267
  %v627 = vunpack.c.h.b16 %v267
  %v628 = vunpack.c.l.b16 %v268
  %v629 = vunpack.c.h.b16 %v268
  %v630 = vunpack.c.l.b16 %v269
  %v631 = vunpack.c.h.b16 %v269
  %v632 = vunpack.c.l.b16 %v270
  %v633 = vunpack.c.h.b16 %v270
  %v634 = vunpack.c.l.b16 %v271
  %v635 = vunpack.c.h.b16 %v271
  %v636 = vunpack.c.l.b16 %v272
  %v637 = vunpack.c.h.b16 %v272
  %v638 = vunpack.c.l.b16 %v273
  %v639 = vunpack.c.h.b16 %v273
  %v640 = vunpack.c.l.b16 %v274
  %v641 = vunpack.c.h.b16 %v274
  %v642 = vunpack.c.l.b16 %v275
  %v643 = vunpack.c.h.b16 %v275
  %v644 = vunpack.c.l.b16 %v276
  %v645 = vunpack.c.h.b16 %v276
  %v646 = vunpack.c.l.b16 %v277
  %v647 = vunpack.c.h.b16 %v277
  %v648 = vunpack.c.l.b16 %v278
  %v649 = vunpack.c.h.b16 %v278
  %v650 = vunpack.c.l.b16 %v279
  %v651 = vunpack.c.h.b16 %v279
  %v652 = vunpack.c.l.b16 %v280
  %v653 = vunpack.c.h.b16 %v280
  %v654 = vunpack.c.l.b16 %v281
  %v655 = vunpack.c.h.b16 %v281
  %v656 = vunpack.c.l.b16 %v282
  %v657 = vunpack.c.h.b16 %v282
  %v658 = vunpack.c.l.b16 %v283
  %v659 = vunpack.c.h.b16 %v283
  %v660 = vunpack.c.l.b16 %v284
  %v661 = vunpack.c.h.b16 %v284
  %v662 = vunpack.c.l.b16 %v285
  %v663 = vunpack.c.h.b16 %v285
  %v664 = vunpack.c.l.b16 %v286
  %v665 = vunpack.c.h.b16 %v286
  %v666 = vunpack.c.l.b16 %v287
  %v667 = vunpack.c.h.b16 %v287
  %v668 = vunpack.c.l.b16 %v288
  %v669 = vunpack.c.h.b16 %v288
  %v670 = vunpack.c.l.b16 %v289
  %v671 = vunpack.c.h.b16 %v289
  %v672 = vunpack.c.l.b16 %v290
  %v673 = vunpack.c.h.b16 %v290
  %v674 = vunpack.c.l.b16 %v291
  %v675 = vunpack.c.h.b16 %v291
  %v676 = vunpack.c.l.b16 %v292
  %v677 = vunpack.c.h.b16 %v292
  %v678 = vunpack.c.l.b16 %v293
  %v679 = vunpack.c.h.b16 %v293
  %v680 = vunpack.c.l.b16 %v294
  %v681 = vunpack.c.h.b16 %v294
  %v682 = vunpack.c.l.b16 %v295
  %v683 = vunpack.c.h.b16 %v295
  %v684 = vunpack.c.l.b16 %v296
  %v685 = vunpack.c.h.b16 %v296
  %v686 = vunpack.c.l.b16 %v297
  %v687 = vunpack.c.h.b16 %v297
  %v688 = vunpack.c.l.b16 %v298
  %v689 = vunpack.c.h.b16 %v298
  %v690 = vunpack.c.l.b16 %v299
  %v691 = vunpack.c.h.b16 %v299
  %v692 = vunpack.c.l.b16 %v300
  %v693 = vunpack.c.h.b16 %v300
  %v694 = vunpack.c.l.b16 %v301
  %v695 = vunpack.c.h.b16 %v301
  %v696 = vunpack.c.l.b16 %v302
  %v697 = vunpack.c.h.b16 %v302
  %v698 = vunpack.c.l.b16 %v303
  %v699 = vunpack.c.h.b16 %v303
  %v700 = vpack.c.b16 %v438, %v436
  %v701 = vpack.c.b16 %v439, %v437
  %v702 = vpack.c.b16 %v442, %v440
  %v703 = vpack.c.b16 %v443, %v441
  %v704 = vpack.c.b16 %v446, %v444
  %v705 = vpack.c.b16 %v447, %v445
  %v706 = vpack.c.b16 %v450, %v448
  %v707 = vpack.c.b16 %v451, %v449
  %v708 = vpack.c.b16 %v454, %v452
  %v709 = vpack.c.b16 %v455, %v453
  %v710 = vpack.c.b16 %v458, %v456
  %v711 = vpack.c.b16 %v459, %v457
  %v712 = vpack.c.b16 %v462, %v460
  %v713 = vpack.c.b16 %v463, %v461
  %v714 = vpack.c.b16 %v466, %v464
  %v715 = vpack.c.b16 %v467, %v465
  %v716 = vpack.c.b16 %v470, %v468
  %v717 = vpack.c.b16 %v471, %v469
  %v718 = vpack.c.b16 %v474, %v472
  %v719 = vpack.c.b16 %v475, %v473
  %v720 = vpack.c.b16 %v478, %v476
  %v721 = vpack.c.b16 %v479, %v477
  %v722 = vpack.c.b16 %v482, %v480
  %v723 = vpack.c.b16 %v483, %v481
  %v724 = vpack.c.b16 %v486, %v484
  %v725 = vpack.c.b16 %v487, %v485
  %v726 = vpack.c.b16 %v490, %v488
  %v727 = vpack.c.b16 %v491, %v489
  %v728 = vpack.c.b16 %v494, %v492
  %v729 = vpack.c.b16 %v495, %v493
  %v730 = vpack.c.b16 %v498, %v496
  %v731 = vpack.c.b16 %v499, %v497
  %v732 = vpack.c.b16 %v502, %v500
  %v733 = vpack.c.b16 %v503, %v501
  %v734 = vpack.c.b16 %v506, %v504
  %v735 = vpack.c.b16 %v507, %v505
  %v736 = vpack.c.b16 %v510, %v508
  %v737 = vpack.c.b16 %v511, %v509
  %v738 = vpack.c.b16 %v514, %v512
  %v739 = vpack.c.b16 %v515, %v513
  %v740 = vpack.c.b16 %v518, %v516
  %v741 = vpack.c.b16 %v519, %v517
  %v742 = vpack.c.b16 %v522, %v520
  %v743 = vpack.c.b16 %v523, %v521
  %v744 = vpack.c.b16 %v526, %v524
  %v745 = vpack.c.b16 %v527, %v525
  %v746 = vpack.c.b16 %v530, %v528
  %v747 = vpack.c.b16 %v531, %v529
  %v748 = vpack.c.b16 %v534, %v532
  %v749 = vpack.c.b16 %v535, %v533
  %v750 = vpack.c.b16 %v538, %v536
  %v751 = vpack.c.b16 %v539, %v537
  %v752 = vpack.c.b16 %v542, %v540
  %v753 = vpack.c.b16 %v543, %v541
  %v754 = vpack.c.b16 %v546, %v544
  %v755 = vpack.c.b16 %v547, %v545
  %v756 = vpack.c.b16 %v550, %v548
  %v757 = vpack.c.b16 %v551, %v549
  %v758 = vpack.c.b16 %v554, %v552
  %v759 = vpack.c.b16 %v555, %v553
  %v760 = vpack.c.b16 %v558, %v556
  %v761 = vpack.c.b16 %v559, %v557
  %v762 = vpack.c.b16 %v562, %v560
  %v763 = vpack.c.b16 %v563, %v561
  %v764 = vpack.c.b16 %v566, %v564
  %v765 = vpack.c.b16 %v567, %v565
  %v766 = vpack.c.b16 %v570, %v568
  %v767 = vpack.c.b16 %v571, %v569
  %v768 = vpack.c.b16 %v574, %v572
  %v769 = vpack.c.b16 %v575, %v573
  %v770 = vpack.c.b16 %v578, %v576
  %v771 = vpack.c.b16 %v579, %v577
  %v772 = vpack.c.b16 %v582, %v580
  %v773 = vpack.c.b16 %v583, %v581
  %v774 = vpack.c.b16 %v586, %v584
  %v775 = vpack.c.b16 %v587, %v585
  %v776 = vpack.c.b16 %v590, %v588
  %v777 = vpack.c.b16 %v591, %v589
  %v778 = vpack.c.b16 %v594, %v592
  %v779 = vpack.c.b16 %v595, %v593
  %v780 = vpack.c.b16 %v598, %v596
  %v781 = vpack.c.b16 %v599, %v597
  %v782 = vpack.c.b16 %v602, %v600
  %v783 = vpack.c.b16 %v603, %v601
  %v784 = vpack.c.b16 %v606, %v604
  %v785 = vpack.c.b16 %v607, %v605
  %v786 = vpack.c.b16 %v610, %v608
  %v787 = vpack.c.b16 %v611, %v609
  %v788 = vpack.c.b16 %v614, %v612
  %v789 = vpack.c.b16 %v615, %v613
  %v790 = vpack.c.b16 %v618, %v616
  %v791 = vpack.c.b16 %v619, %v617
  %v792 = vpack.c.b16 %v622, %v620
  %v793 = vpack.c.b16 %v623, %v621
  %v794 = vpack.c.b16 %v626, %v624
  %v795 = vpack.c.b16 %v627, %v625
  %v796 = vpack.c.b16 %v630, %v628
  %v797 = vpack.c.b16 %v631, %v629
  %v798 = vpack.c.b16 %v634, %v632
  %v799 = vpack.c.b16 %v635, %v633
  %v800 = vpack.c.b16 %v638, %v636
  %v801 = vpack.c.b16 %v639, %v637
  %v802 = vpack.c.b16 %v642, %v640
  %v803 = vpack.c.b16 %v643, %v641
  %v804 = vpack.c.b16 %v646, %v644
  %v805 = vpack.c.b16 %v647, %v645
  %v806 = vpack.c.b16 %v650, %v648
  %v807 = vpack.c.b16 %v651, %v649
  %v808 = vpack.c.b16 %v654, %v652
  %v809 = vpack.c.b16 %v655, %v653
  %v810 = vpack.c.b16 %v658, %v656
  %v811 = vpack.c.b16 %v659, %v657
  %v812 = vpack.c.b16 %v662, %v660
  %v813 = vpack.c.b16 %v663, %v661
  %v814 = vpack.c.b16 %v666, %v664
  %v815 = vpack.c.b16 %v667, %v665
  %v816 = vpack.c.b16 %v670, %v668
  %v817 = vpack.c.b16 %v671, %v669
  %v818 = vpack.c.b16 %v674, %v672
  %v819 = vpack.c.b16 %v675, %v673
  %v820 = vpack.c.b16 %v678, %v676
  %v821 = vpack.c.b16 %v679, %v677
  %v822 = vpack.c.b16 %v682, %v680
  %v823 = vpack.c.b16 %v683, %v681
  %v824 = vpack.c.b16 %v686, %v684
  %v825 = vpack.c.b16 %v687, %v685
  %v826 = vpack.c.b16 %v690, %v688
  %v827 = vpack.c.b16 %v691, %v689
  %v828 = vpack.c.b16 %v694, %v692
  %v829 = vpack.c.b16 %v695, %v693
  %v830 = vpack.c.b16 %v698, %v696
  %v831 = vpack.c.b16 %v699, %v697
  %vm898 = vcmask 392192
  %v900 = vsel %vm898, %v701, 0
  %v903 = vsel %vm898, %v703, 0
  %v906 = vsel %vm898, %v705, 0
  %v909 = vsel %vm898, %v707, 0
  %v912 = vsel %vm898, %v709, 0
  %v915 = vsel %vm898, %v711, 0
  %v918 = vsel %vm898, %v713, 0
  %v921 = vsel %vm898, %v715, 0
  %v924 = vsel %vm898, %v717, 0
  %v927 = vsel %vm898, %v719, 0
  %v930 = vsel %vm898, %v721, 0
  %v933 = vsel %vm898, %v723, 0
  %v936 = vsel %vm898, %v725, 0
  %v939 = vsel %vm898, %v727, 0
  %v942 = vsel %vm898, %v729, 0
  %v945 = vsel %vm898, %v731, 0
  %v948 = vsel %vm898, %v733, 0
  %v951 = vsel %vm898, %v735, 0
  %v954 = vsel %vm898, %v737, 0
  %v957 = vsel %vm898, %v739, 0
  %v960 = vsel %vm898, %v741, 0
  %v963 = vsel %vm898, %v743, 0
  %v966 = vsel %vm898, %v745, 0
  %v969 = vsel %vm898, %v747, 0
  %v972 = vsel %vm898, %v749, 0
  %v975 = vsel %vm898, %v751, 0
  %v978 = vsel %vm898, %v753, 0
  %v981 = vsel %vm898, %v755, 0
  %v984 = vsel %vm898, %v757, 0
  %v987 = vsel %vm898, %v759, 0
  %v990 = vsel %vm898, %v761, 0
  %v993 = vsel %vm898, %v763, 0
  %v996 = vsel %vm898, %v765, 0
  %v999 = vsel %vm898, %v767, 0
  %v1002 = vsel %vm898, %v769, 0
  %v1005 = vsel %vm898, %v771, 0
  %v1008 = vsel %vm898, %v773, 0
  %v1011 = vsel %vm898, %v775, 0
  %v1014 = vsel %vm898, %v777, 0
  %v1017 = vsel %vm898, %v779, 0
  %v1020 = vsel %vm898, %v781, 0
  %v1023 = vsel %vm898, %v783, 0
  %v1026 = vsel %vm898, %v785, 0
  %v1029 = vsel %vm898, %v787, 0
  %v1032 = vsel %vm898, %v789, 0
  %v1035 = vsel %vm898, %v791, 0
  %v1038 = vsel %vm898, %v793, 0
  %v1041 = vsel %vm898, %v795, 0
  %v1044 = vsel %vm898, %v797, 0
  %v1047 = vsel %vm898, %v799, 0
  %v1050 = vsel %vm898, %v801, 0
  %v1053 = vsel %vm898, %v803, 0
  %v1056 = vsel %vm898, %v805, 0
  %v1059 = vsel %vm898, %v807, 0
  %v1062 = vsel %vm898, %v809, 0
  %v1065 = vsel %vm898, %v811, 0
  %v1068 = vsel %vm898, %v813, 0
  %v1071 = vsel %vm898, %v815, 0
  %v1074 = vsel %vm898, %v817, 0
  %v1077 = vsel %vm898, %v819, 0
  %v1080 = vsel %vm898, %v821, 0
  %v1083 = vsel %vm898, %v823, 0
  %v1086 = vsel %vm898, %v825, 0
  %v1089 = vsel %vm898, %v827, 0
  %v1092 = vsel %vm898, %v829, 0
  %v1095 = vsel %vm898, %v831, 0
  %1097 = vmatprep.subr.bf16.mxu0 %v151
  %1098 = vmatpush1.bf16.msra.mxu0 %v150
  %1099 = vmatprep.subr.bf16.mxu0 %v153
  %1100 = vmatpush1.bf16.msra.mxu0 %v152
  %1101 = vmatprep.subr.bf16.mxu0 %v155
  %1102 = vmatpush1.bf16.msra.mxu0 %v154
  %1103 = vmatprep.subr.bf16.mxu0 %v157
  %1104 = vmatpush1.bf16.msra.mxu0 %v156
  %1105 = vmatprep.subr.bf16.mxu0 %v159
  %1106 = vmatpush1.bf16.msra.mxu0 %v158
  %1107 = vmatprep.subr.bf16.mxu0 %v161
  %1108 = vmatpush1.bf16.msra.mxu0 %v160
  %1109 = vmatprep.subr.bf16.mxu0 %v163
  %1110 = vmatpush1.bf16.msra.mxu0 %v162
  %1111 = vmatprep.subr.bf16.mxu0 %v165
  %1112 = vmatpush1.bf16.msra.mxu0 %v164
  %1113 = vmatprep.subr.bf16.mxu0 %v167
  %1114 = vmatpush1.bf16.msra.mxu0 %v166
  %1115 = vmatprep.subr.bf16.mxu0 %v169
  %1116 = vmatpush1.bf16.msra.mxu0 %v168
  %1117 = vmatprep.subr.bf16.mxu0 %v171
  %1118 = vmatpush1.bf16.msra.mxu0 %v170
  %1119 = vmatprep.subr.bf16.mxu0 0
  %1120 = vmatpush1.bf16.msra.mxu0 0
  %1121 = vmatprep.subr.bf16.mxu0 0
  %1122 = vmatpush1.bf16.msra.mxu0 0
  %1123 = vmatprep.subr.bf16.mxu0 0
  %1124 = vmatpush1.bf16.msra.mxu0 0
  %1125 = vmatprep.subr.bf16.mxu0 0
  %1126 = vmatpush1.bf16.msra.mxu0 0
  %1127 = vmatprep.subr.bf16.mxu0 0
  %1128 = vmatpush1.bf16.msra.mxu0 0
  %1129 = vmatprep.mubr.bf16.mxu0 %v900
  %1130 = vmatmul.mubr.bf16.gmra.mrb[0].mxu0 %v700
  %v1131 = vpop.f32.mrb[0].mxu0
  %v1132 = vadd.f32 0.0, %v1131
  %v1133 = vpop.f32.mrb[0].mxu0
  %v1134 = vadd.f32 0.0, %v1133
  %v1135 = vpop.f32.mrb[0].mxu0
  %v1136 = vadd.f32 0.0, %v1135
  %v1137 = vpop.f32.mrb[0].mxu0
  %v1138 = vadd.f32 0.0, %v1137
  %1139 = vmatprep.mubr.bf16.mxu0 %v903
  %1140 = vmatmul.mubr.bf16.gmra.mrb[0].mxu0 %v702
  %v1141 = vpop.f32.mrb[0].mxu0
  %v1142 = vadd.f32 0.0, %v1141
  %v1143 = vpop.f32.mrb[0].mxu0
  %v1144 = vadd.f32 0.0, %v1143
  %v1145 = vpop.f32.mrb[0].mxu0
  %v1146 = vadd.f32 0.0, %v1145
  %v1147 = vpop.f32.mrb[0].mxu0
  %v1148 = vadd.f32 0.0, %v1147
  %1149 = vmatprep.mubr.bf16.mxu0 %v906
  %1150 = vmatmul.mubr.bf16.gmra.mrb[0].mxu0 %v704
  %v1151 = vpop.f32.mrb[0].mxu0
  %v1152 = vadd.f32 0.0, %v1151
  %v1153 = vpop.f32.mrb[0].mxu0
  %v1154 = vadd.f32 0.0, %v1153
  %v1155 = vpop.f32.mrb[0].mxu0
  %v1156 = vadd.f32 0.0, %v1155
  %v1157 = vpop.f32.mrb[0].mxu0
  %v1158 = vadd.f32 0.0, %v1157
  %1159 = vmatprep.mubr.bf16.mxu0 %v909
  %1160 = vmatmul.mubr.bf16.gmra.mrb[0].mxu0 %v706
  %v1161 = vpop.f32.mrb[0].mxu0
  %v1162 = vadd.f32 0.0, %v1161
  %v1163 = vpop.f32.mrb[0].mxu0
  %v1164 = vadd.f32 0.0, %v1163
  %v1165 = vpop.f32.mrb[0].mxu0
  %v1166 = vadd.f32 0.0, %v1165
  %v1167 = vpop.f32.mrb[0].mxu0
  %v1168 = vadd.f32 0.0, %v1167
  %1169 = vmatprep.mubr.bf16.mxu0 %v912
  %1170 = vmatmul.mubr.bf16.gmra.mrb[0].mxu0 %v708
  %v1171 = vpop.f32.mrb[0].mxu0
  %v1172 = vadd.f32 0.0, %v1171
  %v1173 = vpop.f32.mrb[0].mxu0
  %v1174 = vadd.f32 0.0, %v1173
  %v1175 = vpop.f32.mrb[0].mxu0
  %v1176 = vadd.f32 0.0, %v1175
  %v1177 = vpop.f32.mrb[0].mxu0
  %v1178 = vadd.f32 0.0, %v1177
  %1179 = vmatprep.mubr.bf16.mxu0 %v915
  %1180 = vmatmul.mubr.bf16.gmra.mrb[0].mxu0 %v710
  %v1181 = vpop.f32.mrb[0].mxu0
  %v1182 = vadd.f32 0.0, %v1181
  %v1183 = vpop.f32.mrb[0].mxu0
  %v1184 = vadd.f32 0.0, %v1183
  %v1185 = vpop.f32.mrb[0].mxu0
  %v1186 = vadd.f32 0.0, %v1185
  %v1187 = vpop.f32.mrb[0].mxu0
  %v1188 = vadd.f32 0.0, %v1187
  %1189 = vmatprep.mubr.bf16.mxu0 %v918
  %1190 = vmatmul.mubr.bf16.gmra.mrb[0].mxu0 %v712
  %v1191 = vpop.f32.mrb[0].mxu0
  %v1192 = vadd.f32 0.0, %v1191
  %v1193 = vpop.f32.mrb[0].mxu0
  %v1194 = vadd.f32 0.0, %v1193
  %v1195 = vpop.f32.mrb[0].mxu0
  %v1196 = vadd.f32 0.0, %v1195
  %v1197 = vpop.f32.mrb[0].mxu0
  %v1198 = vadd.f32 0.0, %v1197
  %1199 = vmatprep.mubr.bf16.mxu0 %v921
  %1200 = vmatmul.mubr.bf16.gmra.mrb[0].mxu0 %v714
  %v1201 = vpop.f32.mrb[0].mxu0
  %v1202 = vadd.f32 0.0, %v1201
  %v1203 = vpop.f32.mrb[0].mxu0
  %v1204 = vadd.f32 0.0, %v1203
  %v1205 = vpop.f32.mrb[0].mxu0
  %v1206 = vadd.f32 0.0, %v1205
  %v1207 = vpop.f32.mrb[0].mxu0
  %v1208 = vadd.f32 0.0, %v1207
  %1209 = vmatprep.mubr.bf16.mxu0 %v924
  %1210 = vmatmul.mubr.bf16.gmra.mrb[0].mxu0 %v716
  %v1211 = vpop.f32.mrb[0].mxu0
  %v1212 = vadd.f32 0.0, %v1211
  %v1213 = vpop.f32.mrb[0].mxu0
  %v1214 = vadd.f32 0.0, %v1213
  %v1215 = vpop.f32.mrb[0].mxu0
  %v1216 = vadd.f32 0.0, %v1215
  %v1217 = vpop.f32.mrb[0].mxu0
  %v1218 = vadd.f32 0.0, %v1217
  %1219 = vmatprep.mubr.bf16.mxu0 %v927
  %1220 = vmatmul.mubr.bf16.gmra.mrb[0].mxu0 %v718
  %v1221 = vpop.f32.mrb[0].mxu0
  %v1222 = vadd.f32 0.0, %v1221
  %v1223 = vpop.f32.mrb[0].mxu0
  %v1224 = vadd.f32 0.0, %v1223
  %v1225 = vpop.f32.mrb[0].mxu0
  %v1226 = vadd.f32 0.0, %v1225
  %v1227 = vpop.f32.mrb[0].mxu0
  %v1228 = vadd.f32 0.0, %v1227
  %1229 = vmatprep.mubr.bf16.mxu0 %v930
  %1230 = vmatmul.mubr.bf16.gmra.mrb[0].mxu0 %v720
  %v1231 = vpop.f32.mrb[0].mxu0
  %v1232 = vadd.f32 0.0, %v1231
  %v1233 = vpop.f32.mrb[0].mxu0
  %v1234 = vadd.f32 0.0, %v1233
  %v1235 = vpop.f32.mrb[0].mxu0
  %v1236 = vadd.f32 0.0, %v1235
  %v1237 = vpop.f32.mrb[0].mxu0
  %v1238 = vadd.f32 0.0, %v1237
  %1239 = vmatprep.mubr.bf16.mxu0 %v933
  %1240 = vmatmul.mubr.bf16.gmra.mrb[0].mxu0 %v722
  %v1241 = vpop.f32.mrb[0].mxu0
  %v1242 = vadd.f32 0.0, %v1241
  %v1243 = vpop.f32.mrb[0].mxu0
  %v1244 = vadd.f32 0.0, %v1243
  %v1245 = vpop.f32.mrb[0].mxu0
  %v1246 = vadd.f32 0.0, %v1245
  %v1247 = vpop.f32.mrb[0].mxu0
  %v1248 = vadd.f32 0.0, %v1247
  %1249 = vmatprep.mubr.bf16.mxu0 %v936
  %1250 = vmatmul.mubr.bf16.gmra.mrb[0].mxu0 %v724
  %v1251 = vpop.f32.mrb[0].mxu0
  %v1252 = vadd.f32 0.0, %v1251
  %v1253 = vpop.f32.mrb[0].mxu0
  %v1254 = vadd.f32 0.0, %v1253
  %v1255 = vpop.f32.mrb[0].mxu0
  %v1256 = vadd.f32 0.0, %v1255
  %v1257 = vpop.f32.mrb[0].mxu0
  %v1258 = vadd.f32 0.0, %v1257
  %1259 = vmatprep.mubr.bf16.mxu0 %v939
  %1260 = vmatmul.mubr.bf16.gmra.mrb[0].mxu0 %v726
  %v1261 = vpop.f32.mrb[0].mxu0
  %v1262 = vadd.f32 0.0, %v1261
  %v1263 = vpop.f32.mrb[0].mxu0
  %v1264 = vadd.f32 0.0, %v1263
  %v1265 = vpop.f32.mrb[0].mxu0
  %v1266 = vadd.f32 0.0, %v1265
  %v1267 = vpop.f32.mrb[0].mxu0
  %v1268 = vadd.f32 0.0, %v1267
  %1269 = vmatprep.mubr.bf16.mxu0 %v942
  %1270 = vmatmul.mubr.bf16.gmra.mrb[0].mxu0 %v728
  %v1271 = vpop.f32.mrb[0].mxu0
  %v1272 = vadd.f32 0.0, %v1271
  %v1273 = vpop.f32.mrb[0].mxu0
  %v1274 = vadd.f32 0.0, %v1273
  %v1275 = vpop.f32.mrb[0].mxu0
  %v1276 = vadd.f32 0.0, %v1275
  %v1277 = vpop.f32.mrb[0].mxu0
  %v1278 = vadd.f32 0.0, %v1277
  %1279 = vmatprep.mubr.bf16.mxu0 %v945
  %1280 = vmatmul.mubr.bf16.gmra.mrb[0].mxu0 %v730
  %v1281 = vpop.f32.mrb[0].mxu0
  %v1282 = vadd.f32 0.0, %v1281
  %v1283 = vpop.f32.mrb[0].mxu0
  %v1284 = vadd.f32 0.0, %v1283
  %v1285 = vpop.f32.mrb[0].mxu0
  %v1286 = vadd.f32 0.0, %v1285
  %v1287 = vpop.f32.mrb[0].mxu0
  %v1288 = vadd.f32 0.0, %v1287
  %1289 = vmatprep.mubr.bf16.mxu0 %v948
  %1290 = vmatmul.mubr.bf16.gmra.mrb[0].mxu0 %v732
  %v1291 = vpop.f32.mrb[0].mxu0
  %v1292 = vadd.f32 0.0, %v1291
  %v1293 = vpop.f32.mrb[0].mxu0
  %v1294 = vadd.f32 0.0, %v1293
  %v1295 = vpop.f32.mrb[0].mxu0
  %v1296 = vadd.f32 0.0, %v1295
  %v1297 = vpop.f32.mrb[0].mxu0
  %v1298 = vadd.f32 0.0, %v1297
  %1299 = vmatprep.mubr.bf16.mxu0 %v951
  %1300 = vmatmul.mubr.bf16.gmra.mrb[0].mxu0 %v734
  %v1301 = vpop.f32.mrb[0].mxu0
  %v1302 = vadd.f32 0.0, %v1301
  %v1303 = vpop.f32.mrb[0].mxu0
  %v1304 = vadd.f32 0.0, %v1303
  %v1305 = vpop.f32.mrb[0].mxu0
  %v1306 = vadd.f32 0.0, %v1305
  %v1307 = vpop.f32.mrb[0].mxu0
  %v1308 = vadd.f32 0.0, %v1307
  %1309 = vmatprep.mubr.bf16.mxu0 %v954
  %1310 = vmatmul.mubr.bf16.gmra.mrb[0].mxu0 %v736
  %v1311 = vpop.f32.mrb[0].mxu0
  %v1312 = vadd.f32 0.0, %v1311
  %v1313 = vpop.f32.mrb[0].mxu0
  %v1314 = vadd.f32 0.0, %v1313
  %v1315 = vpop.f32.mrb[0].mxu0
  %v1316 = vadd.f32 0.0, %v1315
  %v1317 = vpop.f32.mrb[0].mxu0
  %v1318 = vadd.f32 0.0, %v1317
  %1319 = vmatprep.mubr.bf16.mxu0 %v957
  %1320 = vmatmul.mubr.bf16.gmra.mrb[0].mxu0 %v738
  %v1321 = vpop.f32.mrb[0].mxu0
  %v1322 = vadd.f32 0.0, %v1321
  %v1323 = vpop.f32.mrb[0].mxu0
  %v1324 = vadd.f32 0.0, %v1323
  %v1325 = vpop.f32.mrb[0].mxu0
  %v1326 = vadd.f32 0.0, %v1325
  %v1327 = vpop.f32.mrb[0].mxu0
  %v1328 = vadd.f32 0.0, %v1327
  %1329 = vmatprep.mubr.bf16.mxu0 %v960
  %1330 = vmatmul.mubr.bf16.gmra.mrb[0].mxu0 %v740
  %v1331 = vpop.f32.mrb[0].mxu0
  %v1332 = vadd.f32 0.0, %v1331
  %v1333 = vpop.f32.mrb[0].mxu0
  %v1334 = vadd.f32 0.0, %v1333
  %v1335 = vpop.f32.mrb[0].mxu0
  %v1336 = vadd.f32 0.0, %v1335
  %v1337 = vpop.f32.mrb[0].mxu0
  %v1338 = vadd.f32 0.0, %v1337
  %1339 = vmatprep.mubr.bf16.mxu0 %v963
  %1340 = vmatmul.mubr.bf16.gmra.mrb[0].mxu0 %v742
  %v1341 = vpop.f32.mrb[0].mxu0
  %v1342 = vadd.f32 0.0, %v1341
  %v1343 = vpop.f32.mrb[0].mxu0
  %v1344 = vadd.f32 0.0, %v1343
  %v1345 = vpop.f32.mrb[0].mxu0
  %v1346 = vadd.f32 0.0, %v1345
  %v1347 = vpop.f32.mrb[0].mxu0
  %v1348 = vadd.f32 0.0, %v1347
  %1349 = vmatprep.mubr.bf16.mxu0 %v966
  %1350 = vmatmul.mubr.bf16.gmra.mrb[0].mxu0 %v744
  %v1351 = vpop.f32.mrb[0].mxu0
  %v1352 = vadd.f32 0.0, %v1351
  %v1353 = vpop.f32.mrb[0].mxu0
  %v1354 = vadd.f32 0.0, %v1353
  %v1355 = vpop.f32.mrb[0].mxu0
  %v1356 = vadd.f32 0.0, %v1355
  %v1357 = vpop.f32.mrb[0].mxu0
  %v1358 = vadd.f32 0.0, %v1357
  %1359 = vmatprep.mubr.bf16.mxu0 %v969
  %1360 = vmatmul.mubr.bf16.gmra.mrb[0].mxu0 %v746
  %v1361 = vpop.f32.mrb[0].mxu0
  %v1362 = vadd.f32 0.0, %v1361
  %v1363 = vpop.f32.mrb[0].mxu0
  %v1364 = vadd.f32 0.0, %v1363
  %v1365 = vpop.f32.mrb[0].mxu0
  %v1366 = vadd.f32 0.0, %v1365
  %v1367 = vpop.f32.mrb[0].mxu0
  %v1368 = vadd.f32 0.0, %v1367
  %1369 = vmatprep.mubr.bf16.mxu0 %v972
  %1370 = vmatmul.mubr.bf16.gmra.mrb[0].mxu0 %v748
  %v1371 = vpop.f32.mrb[0].mxu0
  %v1372 = vadd.f32 0.0, %v1371
  %v1373 = vpop.f32.mrb[0].mxu0
  %v1374 = vadd.f32 0.0, %v1373
  %v1375 = vpop.f32.mrb[0].mxu0
  %v1376 = vadd.f32 0.0, %v1375
  %v1377 = vpop.f32.mrb[0].mxu0
  %v1378 = vadd.f32 0.0, %v1377
  %1379 = vmatprep.mubr.bf16.mxu0 %v975
  %1380 = vmatmul.mubr.bf16.gmra.mrb[0].mxu0 %v750
  %v1381 = vpop.f32.mrb[0].mxu0
  %v1382 = vadd.f32 0.0, %v1381
  %v1383 = vpop.f32.mrb[0].mxu0
  %v1384 = vadd.f32 0.0, %v1383
  %v1385 = vpop.f32.mrb[0].mxu0
  %v1386 = vadd.f32 0.0, %v1385
  %v1387 = vpop.f32.mrb[0].mxu0
  %v1388 = vadd.f32 0.0, %v1387
  %1389 = vmatprep.mubr.bf16.mxu0 %v978
  %1390 = vmatmul.mubr.bf16.gmra.mrb[0].mxu0 %v752
  %v1391 = vpop.f32.mrb[0].mxu0
  %v1392 = vadd.f32 0.0, %v1391
  %v1393 = vpop.f32.mrb[0].mxu0
  %v1394 = vadd.f32 0.0, %v1393
  %v1395 = vpop.f32.mrb[0].mxu0
  %v1396 = vadd.f32 0.0, %v1395
  %v1397 = vpop.f32.mrb[0].mxu0
  %v1398 = vadd.f32 0.0, %v1397
  %1399 = vmatprep.mubr.bf16.mxu0 %v981
  %1400 = vmatmul.mubr.bf16.gmra.mrb[0].mxu0 %v754
  %v1401 = vpop.f32.mrb[0].mxu0
  %v1402 = vadd.f32 0.0, %v1401
  %v1403 = vpop.f32.mrb[0].mxu0
  %v1404 = vadd.f32 0.0, %v1403
  %v1405 = vpop.f32.mrb[0].mxu0
  %v1406 = vadd.f32 0.0, %v1405
  %v1407 = vpop.f32.mrb[0].mxu0
  %v1408 = vadd.f32 0.0, %v1407
  %1409 = vmatprep.mubr.bf16.mxu0 %v984
  %1410 = vmatmul.mubr.bf16.gmra.mrb[0].mxu0 %v756
  %v1411 = vpop.f32.mrb[0].mxu0
  %v1412 = vadd.f32 0.0, %v1411
  %v1413 = vpop.f32.mrb[0].mxu0
  %v1414 = vadd.f32 0.0, %v1413
  %v1415 = vpop.f32.mrb[0].mxu0
  %v1416 = vadd.f32 0.0, %v1415
  %v1417 = vpop.f32.mrb[0].mxu0
  %v1418 = vadd.f32 0.0, %v1417
  %1419 = vmatprep.mubr.bf16.mxu0 %v987
  %1420 = vmatmul.mubr.bf16.gmra.mrb[0].mxu0 %v758
  %v1421 = vpop.f32.mrb[0].mxu0
  %v1422 = vadd.f32 0.0, %v1421
  %v1423 = vpop.f32.mrb[0].mxu0
  %v1424 = vadd.f32 0.0, %v1423
  %v1425 = vpop.f32.mrb[0].mxu0
  %v1426 = vadd.f32 0.0, %v1425
  %v1427 = vpop.f32.mrb[0].mxu0
  %v1428 = vadd.f32 0.0, %v1427
  %1429 = vmatprep.mubr.bf16.mxu0 %v990
  %1430 = vmatmul.mubr.bf16.gmra.mrb[0].mxu0 %v760
  %v1431 = vpop.f32.mrb[0].mxu0
  %v1432 = vadd.f32 0.0, %v1431
  %v1433 = vpop.f32.mrb[0].mxu0
  %v1434 = vadd.f32 0.0, %v1433
  %v1435 = vpop.f32.mrb[0].mxu0
  %v1436 = vadd.f32 0.0, %v1435
  %v1437 = vpop.f32.mrb[0].mxu0
  %v1438 = vadd.f32 0.0, %v1437
  %1439 = vmatprep.mubr.bf16.mxu0 %v993
  %1440 = vmatmul.mubr.bf16.gmra.mrb[0].mxu0 %v762
  %v1441 = vpop.f32.mrb[0].mxu0
  %v1442 = vadd.f32 0.0, %v1441
  %v1443 = vpop.f32.mrb[0].mxu0
  %v1444 = vadd.f32 0.0, %v1443
  %v1445 = vpop.f32.mrb[0].mxu0
  %v1446 = vadd.f32 0.0, %v1445
  %v1447 = vpop.f32.mrb[0].mxu0
  %v1448 = vadd.f32 0.0, %v1447
  %1449 = vmatprep.mubr.bf16.mxu0 %v996
  %1450 = vmatmul.mubr.bf16.gmra.mrb[0].mxu0 %v764
  %v1451 = vpop.f32.mrb[0].mxu0
  %v1452 = vadd.f32 0.0, %v1451
  %v1453 = vpop.f32.mrb[0].mxu0
  %v1454 = vadd.f32 0.0, %v1453
  %v1455 = vpop.f32.mrb[0].mxu0
  %v1456 = vadd.f32 0.0, %v1455
  %v1457 = vpop.f32.mrb[0].mxu0
  %v1458 = vadd.f32 0.0, %v1457
  %1459 = vmatprep.mubr.bf16.mxu0 %v999
  %1460 = vmatmul.mubr.bf16.gmra.mrb[0].mxu0 %v766
  %v1461 = vpop.f32.mrb[0].mxu0
  %v1462 = vadd.f32 0.0, %v1461
  %v1463 = vpop.f32.mrb[0].mxu0
  %v1464 = vadd.f32 0.0, %v1463
  %v1465 = vpop.f32.mrb[0].mxu0
  %v1466 = vadd.f32 0.0, %v1465
  %v1467 = vpop.f32.mrb[0].mxu0
  %v1468 = vadd.f32 0.0, %v1467
  %1469 = vmatprep.mubr.bf16.mxu0 %v1002
  %1470 = vmatmul.mubr.bf16.gmra.mrb[0].mxu0 %v768
  %v1471 = vpop.f32.mrb[0].mxu0
  %v1472 = vadd.f32 0.0, %v1471
  %v1473 = vpop.f32.mrb[0].mxu0
  %v1474 = vadd.f32 0.0, %v1473
  %v1475 = vpop.f32.mrb[0].mxu0
  %v1476 = vadd.f32 0.0, %v1475
  %v1477 = vpop.f32.mrb[0].mxu0
  %v1478 = vadd.f32 0.0, %v1477
  %1479 = vmatprep.mubr.bf16.mxu0 %v1005
  %1480 = vmatmul.mubr.bf16.gmra.mrb[0].mxu0 %v770
  %v1481 = vpop.f32.mrb[0].mxu0
  %v1482 = vadd.f32 0.0, %v1481
  %v1483 = vpop.f32.mrb[0].mxu0
  %v1484 = vadd.f32 0.0, %v1483
  %v1485 = vpop.f32.mrb[0].mxu0
  %v1486 = vadd.f32 0.0, %v1485
  %v1487 = vpop.f32.mrb[0].mxu0
  %v1488 = vadd.f32 0.0, %v1487
  %1489 = vmatprep.mubr.bf16.mxu0 %v1008
  %1490 = vmatmul.mubr.bf16.gmra.mrb[0].mxu0 %v772
  %v1491 = vpop.f32.mrb[0].mxu0
  %v1492 = vadd.f32 0.0, %v1491
  %v1493 = vpop.f32.mrb[0].mxu0
  %v1494 = vadd.f32 0.0, %v1493
  %v1495 = vpop.f32.mrb[0].mxu0
  %v1496 = vadd.f32 0.0, %v1495
  %v1497 = vpop.f32.mrb[0].mxu0
  %v1498 = vadd.f32 0.0, %v1497
  %1499 = vmatprep.mubr.bf16.mxu0 %v1011
  %1500 = vmatmul.mubr.bf16.gmra.mrb[0].mxu0 %v774
  %v1501 = vpop.f32.mrb[0].mxu0
  %v1502 = vadd.f32 0.0, %v1501
  %v1503 = vpop.f32.mrb[0].mxu0
  %v1504 = vadd.f32 0.0, %v1503
  %v1505 = vpop.f32.mrb[0].mxu0
  %v1506 = vadd.f32 0.0, %v1505
  %v1507 = vpop.f32.mrb[0].mxu0
  %v1508 = vadd.f32 0.0, %v1507
  %1509 = vmatprep.mubr.bf16.mxu0 %v1014
  %1510 = vmatmul.mubr.bf16.gmra.mrb[0].mxu0 %v776
  %v1511 = vpop.f32.mrb[0].mxu0
  %v1512 = vadd.f32 0.0, %v1511
  %v1513 = vpop.f32.mrb[0].mxu0
  %v1514 = vadd.f32 0.0, %v1513
  %v1515 = vpop.f32.mrb[0].mxu0
  %v1516 = vadd.f32 0.0, %v1515
  %v1517 = vpop.f32.mrb[0].mxu0
  %v1518 = vadd.f32 0.0, %v1517
  %1519 = vmatprep.mubr.bf16.mxu0 %v1017
  %1520 = vmatmul.mubr.bf16.gmra.mrb[0].mxu0 %v778
  %v1521 = vpop.f32.mrb[0].mxu0
  %v1522 = vadd.f32 0.0, %v1521
  %v1523 = vpop.f32.mrb[0].mxu0
  %v1524 = vadd.f32 0.0, %v1523
  %v1525 = vpop.f32.mrb[0].mxu0
  %v1526 = vadd.f32 0.0, %v1525
  %v1527 = vpop.f32.mrb[0].mxu0
  %v1528 = vadd.f32 0.0, %v1527
  %1529 = vmatprep.mubr.bf16.mxu0 %v1020
  %1530 = vmatmul.mubr.bf16.gmra.mrb[0].mxu0 %v780
  %v1531 = vpop.f32.mrb[0].mxu0
  %v1532 = vadd.f32 0.0, %v1531
  %v1533 = vpop.f32.mrb[0].mxu0
  %v1534 = vadd.f32 0.0, %v1533
  %v1535 = vpop.f32.mrb[0].mxu0
  %v1536 = vadd.f32 0.0, %v1535
  %v1537 = vpop.f32.mrb[0].mxu0
  %v1538 = vadd.f32 0.0, %v1537
  %1539 = vmatprep.mubr.bf16.mxu0 %v1023
  %1540 = vmatmul.mubr.bf16.gmra.mrb[0].mxu0 %v782
  %v1541 = vpop.f32.mrb[0].mxu0
  %v1542 = vadd.f32 0.0, %v1541
  %v1543 = vpop.f32.mrb[0].mxu0
  %v1544 = vadd.f32 0.0, %v1543
  %v1545 = vpop.f32.mrb[0].mxu0
  %v1546 = vadd.f32 0.0, %v1545
  %v1547 = vpop.f32.mrb[0].mxu0
  %v1548 = vadd.f32 0.0, %v1547
  %1549 = vmatprep.mubr.bf16.mxu0 %v1026
  %1550 = vmatmul.mubr.bf16.gmra.mrb[0].mxu0 %v784
  %v1551 = vpop.f32.mrb[0].mxu0
  %v1552 = vadd.f32 0.0, %v1551
  %v1553 = vpop.f32.mrb[0].mxu0
  %v1554 = vadd.f32 0.0, %v1553
  %v1555 = vpop.f32.mrb[0].mxu0
  %v1556 = vadd.f32 0.0, %v1555
  %v1557 = vpop.f32.mrb[0].mxu0
  %v1558 = vadd.f32 0.0, %v1557
  %1559 = vmatprep.mubr.bf16.mxu0 %v1029
  %1560 = vmatmul.mubr.bf16.gmra.mrb[0].mxu0 %v786
  %v1561 = vpop.f32.mrb[0].mxu0
  %v1562 = vadd.f32 0.0, %v1561
  %v1563 = vpop.f32.mrb[0].mxu0
  %v1564 = vadd.f32 0.0, %v1563
  %v1565 = vpop.f32.mrb[0].mxu0
  %v1566 = vadd.f32 0.0, %v1565
  %v1567 = vpop.f32.mrb[0].mxu0
  %v1568 = vadd.f32 0.0, %v1567
  %1569 = vmatprep.mubr.bf16.mxu0 %v1032
  %1570 = vmatmul.mubr.bf16.gmra.mrb[0].mxu0 %v788
  %v1571 = vpop.f32.mrb[0].mxu0
  %v1572 = vadd.f32 0.0, %v1571
  %v1573 = vpop.f32.mrb[0].mxu0
  %v1574 = vadd.f32 0.0, %v1573
  %v1575 = vpop.f32.mrb[0].mxu0
  %v1576 = vadd.f32 0.0, %v1575
  %v1577 = vpop.f32.mrb[0].mxu0
  %v1578 = vadd.f32 0.0, %v1577
  %1579 = vmatprep.mubr.bf16.mxu0 %v1035
  %1580 = vmatmul.mubr.bf16.gmra.mrb[0].mxu0 %v790
  %v1581 = vpop.f32.mrb[0].mxu0
  %v1582 = vadd.f32 0.0, %v1581
  %v1583 = vpop.f32.mrb[0].mxu0
  %v1584 = vadd.f32 0.0, %v1583
  %v1585 = vpop.f32.mrb[0].mxu0
  %v1586 = vadd.f32 0.0, %v1585
  %v1587 = vpop.f32.mrb[0].mxu0
  %v1588 = vadd.f32 0.0, %v1587
  %1589 = vmatprep.mubr.bf16.mxu0 %v1038
  %1590 = vmatmul.mubr.bf16.gmra.mrb[0].mxu0 %v792
  %v1591 = vpop.f32.mrb[0].mxu0
  %v1592 = vadd.f32 0.0, %v1591
  %v1593 = vpop.f32.mrb[0].mxu0
  %v1594 = vadd.f32 0.0, %v1593
  %v1595 = vpop.f32.mrb[0].mxu0
  %v1596 = vadd.f32 0.0, %v1595
  %v1597 = vpop.f32.mrb[0].mxu0
  %v1598 = vadd.f32 0.0, %v1597
  %1599 = vmatprep.mubr.bf16.mxu0 %v1041
  %1600 = vmatmul.mubr.bf16.gmra.mrb[0].mxu0 %v794
  %v1601 = vpop.f32.mrb[0].mxu0
  %v1602 = vadd.f32 0.0, %v1601
  %v1603 = vpop.f32.mrb[0].mxu0
  %v1604 = vadd.f32 0.0, %v1603
  %v1605 = vpop.f32.mrb[0].mxu0
  %v1606 = vadd.f32 0.0, %v1605
  %v1607 = vpop.f32.mrb[0].mxu0
  %v1608 = vadd.f32 0.0, %v1607
  %1609 = vmatprep.mubr.bf16.mxu0 %v1044
  %1610 = vmatmul.mubr.bf16.gmra.mrb[0].mxu0 %v796
  %v1611 = vpop.f32.mrb[0].mxu0
  %v1612 = vadd.f32 0.0, %v1611
  %v1613 = vpop.f32.mrb[0].mxu0
  %v1614 = vadd.f32 0.0, %v1613
  %v1615 = vpop.f32.mrb[0].mxu0
  %v1616 = vadd.f32 0.0, %v1615
  %v1617 = vpop.f32.mrb[0].mxu0
  %v1618 = vadd.f32 0.0, %v1617
  %1619 = vmatprep.mubr.bf16.mxu0 %v1047
  %1620 = vmatmul.mubr.bf16.gmra.mrb[0].mxu0 %v798
  %v1621 = vpop.f32.mrb[0].mxu0
  %v1622 = vadd.f32 0.0, %v1621
  %v1623 = vpop.f32.mrb[0].mxu0
  %v1624 = vadd.f32 0.0, %v1623
  %v1625 = vpop.f32.mrb[0].mxu0
  %v1626 = vadd.f32 0.0, %v1625
  %v1627 = vpop.f32.mrb[0].mxu0
  %v1628 = vadd.f32 0.0, %v1627
  %1629 = vmatprep.mubr.bf16.mxu0 %v1050
  %1630 = vmatmul.mubr.bf16.gmra.mrb[0].mxu0 %v800
  %v1631 = vpop.f32.mrb[0].mxu0
  %v1632 = vadd.f32 0.0, %v1631
  %v1633 = vpop.f32.mrb[0].mxu0
  %v1634 = vadd.f32 0.0, %v1633
  %v1635 = vpop.f32.mrb[0].mxu0
  %v1636 = vadd.f32 0.0, %v1635
  %v1637 = vpop.f32.mrb[0].mxu0
  %v1638 = vadd.f32 0.0, %v1637
  %1639 = vmatprep.mubr.bf16.mxu0 %v1053
  %1640 = vmatmul.mubr.bf16.gmra.mrb[0].mxu0 %v802
  %v1641 = vpop.f32.mrb[0].mxu0
  %v1642 = vadd.f32 0.0, %v1641
  %v1643 = vpop.f32.mrb[0].mxu0
  %v1644 = vadd.f32 0.0, %v1643
  %v1645 = vpop.f32.mrb[0].mxu0
  %v1646 = vadd.f32 0.0, %v1645
  %v1647 = vpop.f32.mrb[0].mxu0
  %v1648 = vadd.f32 0.0, %v1647
  %1649 = vmatprep.mubr.bf16.mxu0 %v1056
  %1650 = vmatmul.mubr.bf16.gmra.mrb[0].mxu0 %v804
  %v1651 = vpop.f32.mrb[0].mxu0
  %v1652 = vadd.f32 0.0, %v1651
  %v1653 = vpop.f32.mrb[0].mxu0
  %v1654 = vadd.f32 0.0, %v1653
  %v1655 = vpop.f32.mrb[0].mxu0
  %v1656 = vadd.f32 0.0, %v1655
  %v1657 = vpop.f32.mrb[0].mxu0
  %v1658 = vadd.f32 0.0, %v1657
  %1659 = vmatprep.mubr.bf16.mxu0 %v1059
  %1660 = vmatmul.mubr.bf16.gmra.mrb[0].mxu0 %v806
  %v1661 = vpop.f32.mrb[0].mxu0
  %v1662 = vadd.f32 0.0, %v1661
  %v1663 = vpop.f32.mrb[0].mxu0
  %v1664 = vadd.f32 0.0, %v1663
  %v1665 = vpop.f32.mrb[0].mxu0
  %v1666 = vadd.f32 0.0, %v1665
  %v1667 = vpop.f32.mrb[0].mxu0
  %v1668 = vadd.f32 0.0, %v1667
  %1669 = vmatprep.mubr.bf16.mxu0 %v1062
  %1670 = vmatmul.mubr.bf16.gmra.mrb[0].mxu0 %v808
  %v1671 = vpop.f32.mrb[0].mxu0
  %v1672 = vadd.f32 0.0, %v1671
  %v1673 = vpop.f32.mrb[0].mxu0
  %v1674 = vadd.f32 0.0, %v1673
  %v1675 = vpop.f32.mrb[0].mxu0
  %v1676 = vadd.f32 0.0, %v1675
  %v1677 = vpop.f32.mrb[0].mxu0
  %v1678 = vadd.f32 0.0, %v1677
  %1679 = vmatprep.mubr.bf16.mxu0 %v1065
  %1680 = vmatmul.mubr.bf16.gmra.mrb[0].mxu0 %v810
  %v1681 = vpop.f32.mrb[0].mxu0
  %v1682 = vadd.f32 0.0, %v1681
  %v1683 = vpop.f32.mrb[0].mxu0
  %v1684 = vadd.f32 0.0, %v1683
  %v1685 = vpop.f32.mrb[0].mxu0
  %v1686 = vadd.f32 0.0, %v1685
  %v1687 = vpop.f32.mrb[0].mxu0
  %v1688 = vadd.f32 0.0, %v1687
  %1689 = vmatprep.mubr.bf16.mxu0 %v1068
  %1690 = vmatmul.mubr.bf16.gmra.mrb[0].mxu0 %v812
  %v1691 = vpop.f32.mrb[0].mxu0
  %v1692 = vadd.f32 0.0, %v1691
  %v1693 = vpop.f32.mrb[0].mxu0
  %v1694 = vadd.f32 0.0, %v1693
  %v1695 = vpop.f32.mrb[0].mxu0
  %v1696 = vadd.f32 0.0, %v1695
  %v1697 = vpop.f32.mrb[0].mxu0
  %v1698 = vadd.f32 0.0, %v1697
  %1699 = vmatprep.mubr.bf16.mxu0 %v1071
  %1700 = vmatmul.mubr.bf16.gmra.mrb[0].mxu0 %v814
  %v1701 = vpop.f32.mrb[0].mxu0
  %v1702 = vadd.f32 0.0, %v1701
  %v1703 = vpop.f32.mrb[0].mxu0
  %v1704 = vadd.f32 0.0, %v1703
  %v1705 = vpop.f32.mrb[0].mxu0
  %v1706 = vadd.f32 0.0, %v1705
  %v1707 = vpop.f32.mrb[0].mxu0
  %v1708 = vadd.f32 0.0, %v1707
  %1709 = vmatprep.mubr.bf16.mxu0 %v1074
  %1710 = vmatmul.mubr.bf16.gmra.mrb[0].mxu0 %v816
  %v1711 = vpop.f32.mrb[0].mxu0
  %v1712 = vadd.f32 0.0, %v1711
  %v1713 = vpop.f32.mrb[0].mxu0
  %v1714 = vadd.f32 0.0, %v1713
  %v1715 = vpop.f32.mrb[0].mxu0
  %v1716 = vadd.f32 0.0, %v1715
  %v1717 = vpop.f32.mrb[0].mxu0
  %v1718 = vadd.f32 0.0, %v1717
  %1719 = vmatprep.mubr.bf16.mxu0 %v1077
  %1720 = vmatmul.mubr.bf16.gmra.mrb[0].mxu0 %v818
  %v1721 = vpop.f32.mrb[0].mxu0
  %v1722 = vadd.f32 0.0, %v1721
  %v1723 = vpop.f32.mrb[0].mxu0
  %v1724 = vadd.f32 0.0, %v1723
  %v1725 = vpop.f32.mrb[0].mxu0
  %v1726 = vadd.f32 0.0, %v1725
  %v1727 = vpop.f32.mrb[0].mxu0
  %v1728 = vadd.f32 0.0, %v1727
  %1729 = vmatprep.mubr.bf16.mxu0 %v1080
  %1730 = vmatmul.mubr.bf16.gmra.mrb[0].mxu0 %v820
  %v1731 = vpop.f32.mrb[0].mxu0
  %v1732 = vadd.f32 0.0, %v1731
  %v1733 = vpop.f32.mrb[0].mxu0
  %v1734 = vadd.f32 0.0, %v1733
  %v1735 = vpop.f32.mrb[0].mxu0
  %v1736 = vadd.f32 0.0, %v1735
  %v1737 = vpop.f32.mrb[0].mxu0
  %v1738 = vadd.f32 0.0, %v1737
  %1739 = vmatprep.mubr.bf16.mxu0 %v1083
  %1740 = vmatmul.mubr.bf16.gmra.mrb[0].mxu0 %v822
  %v1741 = vpop.f32.mrb[0].mxu0
  %v1742 = vadd.f32 0.0, %v1741
  %v1743 = vpop.f32.mrb[0].mxu0
  %v1744 = vadd.f32 0.0, %v1743
  %v1745 = vpop.f32.mrb[0].mxu0
  %v1746 = vadd.f32 0.0, %v1745
  %v1747 = vpop.f32.mrb[0].mxu0
  %v1748 = vadd.f32 0.0, %v1747
  %1749 = vmatprep.mubr.bf16.mxu0 %v1086
  %1750 = vmatmul.mubr.bf16.gmra.mrb[0].mxu0 %v824
  %v1751 = vpop.f32.mrb[0].mxu0
  %v1752 = vadd.f32 0.0, %v1751
  %v1753 = vpop.f32.mrb[0].mxu0
  %v1754 = vadd.f32 0.0, %v1753
  %v1755 = vpop.f32.mrb[0].mxu0
  %v1756 = vadd.f32 0.0, %v1755
  %v1757 = vpop.f32.mrb[0].mxu0
  %v1758 = vadd.f32 0.0, %v1757
  %1759 = vmatprep.mubr.bf16.mxu0 %v1089
  %1760 = vmatmul.mubr.bf16.gmra.mrb[0].mxu0 %v826
  %v1761 = vpop.f32.mrb[0].mxu0
  %v1762 = vadd.f32 0.0, %v1761
  %v1763 = vpop.f32.mrb[0].mxu0
  %v1764 = vadd.f32 0.0, %v1763
  %v1765 = vpop.f32.mrb[0].mxu0
  %v1766 = vadd.f32 0.0, %v1765
  %v1767 = vpop.f32.mrb[0].mxu0
  %v1768 = vadd.f32 0.0, %v1767
  %1769 = vmatprep.mubr.bf16.mxu0 %v1092
  %1770 = vmatmul.mubr.bf16.gmra.mrb[0].mxu0 %v828
  %v1771 = vpop.f32.mrb[0].mxu0
  %v1772 = vadd.f32 0.0, %v1771
  %v1773 = vpop.f32.mrb[0].mxu0
  %v1774 = vadd.f32 0.0, %v1773
  %v1775 = vpop.f32.mrb[0].mxu0
  %v1776 = vadd.f32 0.0, %v1775
  %v1777 = vpop.f32.mrb[0].mxu0
  %v1778 = vadd.f32 0.0, %v1777
  %1779 = vmatprep.mubr.bf16.mxu0 %v1095
  %1780 = vmatmul.mubr.bf16.gmra.mrb[0].mxu0 %v830
  %v1781 = vpop.f32.mrb[0].mxu0
  %v1782 = vadd.f32 0.0, %v1781
  %v1783 = vpop.f32.mrb[0].mxu0
  %v1784 = vadd.f32 0.0, %v1783
  %v1785 = vpop.f32.mrb[0].mxu0
  %v1786 = vadd.f32 0.0, %v1785
  %v1787 = vpop.f32.mrb[0].mxu0
  %v1788 = vadd.f32 0.0, %v1787
  %1789 = vdwg.mxu0
  %vm1790 = vcmask 556032
  %v1791 = vsel %vm1790, %v1134, 0.0
  %v1792 = vadd.f32 %v1132, %v1791
  %1793 = vadd.xlane.f32.xlu0 %v1792
  %v1794 = vpop.xlane.xlu0 %1793
  %v1795 = vsel %vm1790, %v1138, 0.0
  %v1796 = vadd.f32 %v1136, %v1795
  %1797 = vadd.xlane.f32.xlu0 %v1796
  %v1798 = vpop.xlane.xlu0 %1797
  %v1799 = vsel %vm1790, %v1144, 0.0
  %v1800 = vadd.f32 %v1142, %v1799
  %1801 = vadd.xlane.f32.xlu0 %v1800
  %v1802 = vpop.xlane.xlu0 %1801
  %v1803 = vsel %vm1790, %v1148, 0.0
  %v1804 = vadd.f32 %v1146, %v1803
  %1805 = vadd.xlane.f32.xlu0 %v1804
  %v1806 = vpop.xlane.xlu0 %1805
  %v1807 = vsel %vm1790, %v1154, 0.0
  %v1808 = vadd.f32 %v1152, %v1807
  %1809 = vadd.xlane.f32.xlu0 %v1808
  %v1810 = vpop.xlane.xlu0 %1809
  %v1811 = vsel %vm1790, %v1158, 0.0
  %v1812 = vadd.f32 %v1156, %v1811
  %1813 = vadd.xlane.f32.xlu0 %v1812
  %v1814 = vpop.xlane.xlu0 %1813
  %v1815 = vsel %vm1790, %v1164, 0.0
  %v1816 = vadd.f32 %v1162, %v1815
  %1817 = vadd.xlane.f32.xlu0 %v1816
  %v1818 = vpop.xlane.xlu0 %1817
  %v1819 = vsel %vm1790, %v1168, 0.0
  %v1820 = vadd.f32 %v1166, %v1819
  %1821 = vadd.xlane.f32.xlu0 %v1820
  %v1822 = vpop.xlane.xlu0 %1821
  %v1823 = vsel %vm1790, %v1174, 0.0
  %v1824 = vadd.f32 %v1172, %v1823
  %1825 = vadd.xlane.f32.xlu0 %v1824
  %v1826 = vpop.xlane.xlu0 %1825
  %v1827 = vsel %vm1790, %v1178, 0.0
  %v1828 = vadd.f32 %v1176, %v1827
  %1829 = vadd.xlane.f32.xlu0 %v1828
  %v1830 = vpop.xlane.xlu0 %1829
  %v1831 = vsel %vm1790, %v1184, 0.0
  %v1832 = vadd.f32 %v1182, %v1831
  %1833 = vadd.xlane.f32.xlu0 %v1832
  %v1834 = vpop.xlane.xlu0 %1833
  %v1835 = vsel %vm1790, %v1188, 0.0
  %v1836 = vadd.f32 %v1186, %v1835
  %1837 = vadd.xlane.f32.xlu0 %v1836
  %v1838 = vpop.xlane.xlu0 %1837
  %v1839 = vsel %vm1790, %v1194, 0.0
  %v1840 = vadd.f32 %v1192, %v1839
  %1841 = vadd.xlane.f32.xlu0 %v1840
  %v1842 = vpop.xlane.xlu0 %1841
  %v1843 = vsel %vm1790, %v1198, 0.0
  %v1844 = vadd.f32 %v1196, %v1843
  %1845 = vadd.xlane.f32.xlu0 %v1844
  %v1846 = vpop.xlane.xlu0 %1845
  %v1847 = vsel %vm1790, %v1204, 0.0
  %v1848 = vadd.f32 %v1202, %v1847
  %1849 = vadd.xlane.f32.xlu0 %v1848
  %v1850 = vpop.xlane.xlu0 %1849
  %v1851 = vsel %vm1790, %v1208, 0.0
  %v1852 = vadd.f32 %v1206, %v1851
  %1853 = vadd.xlane.f32.xlu0 %v1852
  %v1854 = vpop.xlane.xlu0 %1853
  %v1855 = vsel %vm1790, %v1214, 0.0
  %v1856 = vadd.f32 %v1212, %v1855
  %1857 = vadd.xlane.f32.xlu0 %v1856
  %v1858 = vpop.xlane.xlu0 %1857
  %v1859 = vsel %vm1790, %v1218, 0.0
  %v1860 = vadd.f32 %v1216, %v1859
  %1861 = vadd.xlane.f32.xlu0 %v1860
  %v1862 = vpop.xlane.xlu0 %1861
  %v1863 = vsel %vm1790, %v1224, 0.0
  %v1864 = vadd.f32 %v1222, %v1863
  %1865 = vadd.xlane.f32.xlu0 %v1864
  %v1866 = vpop.xlane.xlu0 %1865
  %v1867 = vsel %vm1790, %v1228, 0.0
  %v1868 = vadd.f32 %v1226, %v1867
  %1869 = vadd.xlane.f32.xlu0 %v1868
  %v1870 = vpop.xlane.xlu0 %1869
  %v1871 = vsel %vm1790, %v1234, 0.0
  %v1872 = vadd.f32 %v1232, %v1871
  %1873 = vadd.xlane.f32.xlu0 %v1872
  %v1874 = vpop.xlane.xlu0 %1873
  %v1875 = vsel %vm1790, %v1238, 0.0
  %v1876 = vadd.f32 %v1236, %v1875
  %1877 = vadd.xlane.f32.xlu0 %v1876
  %v1878 = vpop.xlane.xlu0 %1877
  %v1879 = vsel %vm1790, %v1244, 0.0
  %v1880 = vadd.f32 %v1242, %v1879
  %1881 = vadd.xlane.f32.xlu0 %v1880
  %v1882 = vpop.xlane.xlu0 %1881
  %v1883 = vsel %vm1790, %v1248, 0.0
  %v1884 = vadd.f32 %v1246, %v1883
  %1885 = vadd.xlane.f32.xlu0 %v1884
  %v1886 = vpop.xlane.xlu0 %1885
  %v1887 = vsel %vm1790, %v1254, 0.0
  %v1888 = vadd.f32 %v1252, %v1887
  %1889 = vadd.xlane.f32.xlu0 %v1888
  %v1890 = vpop.xlane.xlu0 %1889
  %v1891 = vsel %vm1790, %v1258, 0.0
  %v1892 = vadd.f32 %v1256, %v1891
  %1893 = vadd.xlane.f32.xlu0 %v1892
  %v1894 = vpop.xlane.xlu0 %1893
  %v1895 = vsel %vm1790, %v1264, 0.0
  %v1896 = vadd.f32 %v1262, %v1895
  %1897 = vadd.xlane.f32.xlu0 %v1896
  %v1898 = vpop.xlane.xlu0 %1897
  %v1899 = vsel %vm1790, %v1268, 0.0
  %v1900 = vadd.f32 %v1266, %v1899
  %1901 = vadd.xlane.f32.xlu0 %v1900
  %v1902 = vpop.xlane.xlu0 %1901
  %v1903 = vsel %vm1790, %v1274, 0.0
  %v1904 = vadd.f32 %v1272, %v1903
  %1905 = vadd.xlane.f32.xlu0 %v1904
  %v1906 = vpop.xlane.xlu0 %1905
  %v1907 = vsel %vm1790, %v1278, 0.0
  %v1908 = vadd.f32 %v1276, %v1907
  %1909 = vadd.xlane.f32.xlu0 %v1908
  %v1910 = vpop.xlane.xlu0 %1909
  %v1911 = vsel %vm1790, %v1284, 0.0
  %v1912 = vadd.f32 %v1282, %v1911
  %1913 = vadd.xlane.f32.xlu0 %v1912
  %v1914 = vpop.xlane.xlu0 %1913
  %v1915 = vsel %vm1790, %v1288, 0.0
  %v1916 = vadd.f32 %v1286, %v1915
  %1917 = vadd.xlane.f32.xlu0 %v1916
  %v1918 = vpop.xlane.xlu0 %1917
  %v1919 = vsel %vm1790, %v1294, 0.0
  %v1920 = vadd.f32 %v1292, %v1919
  %1921 = vadd.xlane.f32.xlu0 %v1920
  %v1922 = vpop.xlane.xlu0 %1921
  %v1923 = vsel %vm1790, %v1298, 0.0
  %v1924 = vadd.f32 %v1296, %v1923
  %1925 = vadd.xlane.f32.xlu0 %v1924
  %v1926 = vpop.xlane.xlu0 %1925
  %v1927 = vsel %vm1790, %v1304, 0.0
  %v1928 = vadd.f32 %v1302, %v1927
  %1929 = vadd.xlane.f32.xlu0 %v1928
  %v1930 = vpop.xlane.xlu0 %1929
  %v1931 = vsel %vm1790, %v1308, 0.0
  %v1932 = vadd.f32 %v1306, %v1931
  %1933 = vadd.xlane.f32.xlu0 %v1932
  %v1934 = vpop.xlane.xlu0 %1933
  %v1935 = vsel %vm1790, %v1314, 0.0
  %v1936 = vadd.f32 %v1312, %v1935
  %1937 = vadd.xlane.f32.xlu0 %v1936
  %v1938 = vpop.xlane.xlu0 %1937
  %v1939 = vsel %vm1790, %v1318, 0.0
  %v1940 = vadd.f32 %v1316, %v1939
  %1941 = vadd.xlane.f32.xlu0 %v1940
  %v1942 = vpop.xlane.xlu0 %1941
  %v1943 = vsel %vm1790, %v1324, 0.0
  %v1944 = vadd.f32 %v1322, %v1943
  %1945 = vadd.xlane.f32.xlu0 %v1944
  %v1946 = vpop.xlane.xlu0 %1945
  %v1947 = vsel %vm1790, %v1328, 0.0
  %v1948 = vadd.f32 %v1326, %v1947
  %1949 = vadd.xlane.f32.xlu0 %v1948
  %v1950 = vpop.xlane.xlu0 %1949
  %v1951 = vsel %vm1790, %v1334, 0.0
  %v1952 = vadd.f32 %v1332, %v1951
  %1953 = vadd.xlane.f32.xlu0 %v1952
  %v1954 = vpop.xlane.xlu0 %1953
  %v1955 = vsel %vm1790, %v1338, 0.0
  %v1956 = vadd.f32 %v1336, %v1955
  %1957 = vadd.xlane.f32.xlu0 %v1956
  %v1958 = vpop.xlane.xlu0 %1957
  %v1959 = vsel %vm1790, %v1344, 0.0
  %v1960 = vadd.f32 %v1342, %v1959
  %1961 = vadd.xlane.f32.xlu0 %v1960
  %v1962 = vpop.xlane.xlu0 %1961
  %v1963 = vsel %vm1790, %v1348, 0.0
  %v1964 = vadd.f32 %v1346, %v1963
  %1965 = vadd.xlane.f32.xlu0 %v1964
  %v1966 = vpop.xlane.xlu0 %1965
  %v1967 = vsel %vm1790, %v1354, 0.0
  %v1968 = vadd.f32 %v1352, %v1967
  %1969 = vadd.xlane.f32.xlu0 %v1968
  %v1970 = vpop.xlane.xlu0 %1969
  %v1971 = vsel %vm1790, %v1358, 0.0
  %v1972 = vadd.f32 %v1356, %v1971
  %1973 = vadd.xlane.f32.xlu0 %v1972
  %v1974 = vpop.xlane.xlu0 %1973
  %v1975 = vsel %vm1790, %v1364, 0.0
  %v1976 = vadd.f32 %v1362, %v1975
  %1977 = vadd.xlane.f32.xlu0 %v1976
  %v1978 = vpop.xlane.xlu0 %1977
  %v1979 = vsel %vm1790, %v1368, 0.0
  %v1980 = vadd.f32 %v1366, %v1979
  %1981 = vadd.xlane.f32.xlu0 %v1980
  %v1982 = vpop.xlane.xlu0 %1981
  %v1983 = vsel %vm1790, %v1374, 0.0
  %v1984 = vadd.f32 %v1372, %v1983
  %1985 = vadd.xlane.f32.xlu0 %v1984
  %v1986 = vpop.xlane.xlu0 %1985
  %v1987 = vsel %vm1790, %v1378, 0.0
  %v1988 = vadd.f32 %v1376, %v1987
  %1989 = vadd.xlane.f32.xlu0 %v1988
  %v1990 = vpop.xlane.xlu0 %1989
  %v1991 = vsel %vm1790, %v1384, 0.0
  %v1992 = vadd.f32 %v1382, %v1991
  %1993 = vadd.xlane.f32.xlu0 %v1992
  %v1994 = vpop.xlane.xlu0 %1993
  %v1995 = vsel %vm1790, %v1388, 0.0
  %v1996 = vadd.f32 %v1386, %v1995
  %1997 = vadd.xlane.f32.xlu0 %v1996
  %v1998 = vpop.xlane.xlu0 %1997
  %v1999 = vsel %vm1790, %v1394, 0.0
  %v2000 = vadd.f32 %v1392, %v1999
  %2001 = vadd.xlane.f32.xlu0 %v2000
  %v2002 = vpop.xlane.xlu0 %2001
  %v2003 = vsel %vm1790, %v1398, 0.0
  %v2004 = vadd.f32 %v1396, %v2003
  %2005 = vadd.xlane.f32.xlu0 %v2004
  %v2006 = vpop.xlane.xlu0 %2005
  %v2007 = vsel %vm1790, %v1404, 0.0
  %v2008 = vadd.f32 %v1402, %v2007
  %2009 = vadd.xlane.f32.xlu0 %v2008
  %v2010 = vpop.xlane.xlu0 %2009
  %v2011 = vsel %vm1790, %v1408, 0.0
  %v2012 = vadd.f32 %v1406, %v2011
  %2013 = vadd.xlane.f32.xlu0 %v2012
  %v2014 = vpop.xlane.xlu0 %2013
  %v2015 = vsel %vm1790, %v1414, 0.0
  %v2016 = vadd.f32 %v1412, %v2015
  %2017 = vadd.xlane.f32.xlu0 %v2016
  %v2018 = vpop.xlane.xlu0 %2017
  %v2019 = vsel %vm1790, %v1418, 0.0
  %v2020 = vadd.f32 %v1416, %v2019
  %2021 = vadd.xlane.f32.xlu0 %v2020
  %v2022 = vpop.xlane.xlu0 %2021
  %v2023 = vsel %vm1790, %v1424, 0.0
  %v2024 = vadd.f32 %v1422, %v2023
  %2025 = vadd.xlane.f32.xlu0 %v2024
  %v2026 = vpop.xlane.xlu0 %2025
  %v2027 = vsel %vm1790, %v1428, 0.0
  %v2028 = vadd.f32 %v1426, %v2027
  %2029 = vadd.xlane.f32.xlu0 %v2028
  %v2030 = vpop.xlane.xlu0 %2029
  %v2031 = vsel %vm1790, %v1434, 0.0
  %v2032 = vadd.f32 %v1432, %v2031
  %2033 = vadd.xlane.f32.xlu0 %v2032
  %v2034 = vpop.xlane.xlu0 %2033
  %v2035 = vsel %vm1790, %v1438, 0.0
  %v2036 = vadd.f32 %v1436, %v2035
  %2037 = vadd.xlane.f32.xlu0 %v2036
  %v2038 = vpop.xlane.xlu0 %2037
  %v2039 = vsel %vm1790, %v1444, 0.0
  %v2040 = vadd.f32 %v1442, %v2039
  %2041 = vadd.xlane.f32.xlu0 %v2040
  %v2042 = vpop.xlane.xlu0 %2041
  %v2043 = vsel %vm1790, %v1448, 0.0
  %v2044 = vadd.f32 %v1446, %v2043
  %2045 = vadd.xlane.f32.xlu0 %v2044
  %v2046 = vpop.xlane.xlu0 %2045
  %v2047 = vsel %vm1790, %v1454, 0.0
  %v2048 = vadd.f32 %v1452, %v2047
  %2049 = vadd.xlane.f32.xlu0 %v2048
  %v2050 = vpop.xlane.xlu0 %2049
  %v2051 = vsel %vm1790, %v1458, 0.0
  %v2052 = vadd.f32 %v1456, %v2051
  %2053 = vadd.xlane.f32.xlu0 %v2052
  %v2054 = vpop.xlane.xlu0 %2053
  %v2055 = vsel %vm1790, %v1464, 0.0
  %v2056 = vadd.f32 %v1462, %v2055
  %2057 = vadd.xlane.f32.xlu0 %v2056
  %v2058 = vpop.xlane.xlu0 %2057
  %v2059 = vsel %vm1790, %v1468, 0.0
  %v2060 = vadd.f32 %v1466, %v2059
  %2061 = vadd.xlane.f32.xlu0 %v2060
  %v2062 = vpop.xlane.xlu0 %2061
  %v2063 = vsel %vm1790, %v1474, 0.0
  %v2064 = vadd.f32 %v1472, %v2063
  %2065 = vadd.xlane.f32.xlu0 %v2064
  %v2066 = vpop.xlane.xlu0 %2065
  %v2067 = vsel %vm1790, %v1478, 0.0
  %v2068 = vadd.f32 %v1476, %v2067
  %2069 = vadd.xlane.f32.xlu0 %v2068
  %v2070 = vpop.xlane.xlu0 %2069
  %v2071 = vsel %vm1790, %v1484, 0.0
  %v2072 = vadd.f32 %v1482, %v2071
  %2073 = vadd.xlane.f32.xlu0 %v2072
  %v2074 = vpop.xlane.xlu0 %2073
  %v2075 = vsel %vm1790, %v1488, 0.0
  %v2076 = vadd.f32 %v1486, %v2075
  %2077 = vadd.xlane.f32.xlu0 %v2076
  %v2078 = vpop.xlane.xlu0 %2077
  %v2079 = vsel %vm1790, %v1494, 0.0
  %v2080 = vadd.f32 %v1492, %v2079
  %2081 = vadd.xlane.f32.xlu0 %v2080
  %v2082 = vpop.xlane.xlu0 %2081
  %v2083 = vsel %vm1790, %v1498, 0.0
  %v2084 = vadd.f32 %v1496, %v2083
  %2085 = vadd.xlane.f32.xlu0 %v2084
  %v2086 = vpop.xlane.xlu0 %2085
  %v2087 = vsel %vm1790, %v1504, 0.0
  %v2088 = vadd.f32 %v1502, %v2087
  %2089 = vadd.xlane.f32.xlu0 %v2088
  %v2090 = vpop.xlane.xlu0 %2089
  %v2091 = vsel %vm1790, %v1508, 0.0
  %v2092 = vadd.f32 %v1506, %v2091
  %2093 = vadd.xlane.f32.xlu0 %v2092
  %v2094 = vpop.xlane.xlu0 %2093
  %v2095 = vsel %vm1790, %v1514, 0.0
  %v2096 = vadd.f32 %v1512, %v2095
  %2097 = vadd.xlane.f32.xlu0 %v2096
  %v2098 = vpop.xlane.xlu0 %2097
  %v2099 = vsel %vm1790, %v1518, 0.0
  %v2100 = vadd.f32 %v1516, %v2099
  %2101 = vadd.xlane.f32.xlu0 %v2100
  %v2102 = vpop.xlane.xlu0 %2101
  %v2103 = vsel %vm1790, %v1524, 0.0
  %v2104 = vadd.f32 %v1522, %v2103
  %2105 = vadd.xlane.f32.xlu0 %v2104
  %v2106 = vpop.xlane.xlu0 %2105
  %v2107 = vsel %vm1790, %v1528, 0.0
  %v2108 = vadd.f32 %v1526, %v2107
  %2109 = vadd.xlane.f32.xlu0 %v2108
  %v2110 = vpop.xlane.xlu0 %2109
  %v2111 = vsel %vm1790, %v1534, 0.0
  %v2112 = vadd.f32 %v1532, %v2111
  %2113 = vadd.xlane.f32.xlu0 %v2112
  %v2114 = vpop.xlane.xlu0 %2113
  %v2115 = vsel %vm1790, %v1538, 0.0
  %v2116 = vadd.f32 %v1536, %v2115
  %2117 = vadd.xlane.f32.xlu0 %v2116
  %v2118 = vpop.xlane.xlu0 %2117
  %v2119 = vsel %vm1790, %v1544, 0.0
  %v2120 = vadd.f32 %v1542, %v2119
  %2121 = vadd.xlane.f32.xlu0 %v2120
  %v2122 = vpop.xlane.xlu0 %2121
  %v2123 = vsel %vm1790, %v1548, 0.0
  %v2124 = vadd.f32 %v1546, %v2123
  %2125 = vadd.xlane.f32.xlu0 %v2124
  %v2126 = vpop.xlane.xlu0 %2125
  %v2127 = vsel %vm1790, %v1554, 0.0
  %v2128 = vadd.f32 %v1552, %v2127
  %2129 = vadd.xlane.f32.xlu0 %v2128
  %v2130 = vpop.xlane.xlu0 %2129
  %v2131 = vsel %vm1790, %v1558, 0.0
  %v2132 = vadd.f32 %v1556, %v2131
  %2133 = vadd.xlane.f32.xlu0 %v2132
  %v2134 = vpop.xlane.xlu0 %2133
  %v2135 = vsel %vm1790, %v1564, 0.0
  %v2136 = vadd.f32 %v1562, %v2135
  %2137 = vadd.xlane.f32.xlu0 %v2136
  %v2138 = vpop.xlane.xlu0 %2137
  %v2139 = vsel %vm1790, %v1568, 0.0
  %v2140 = vadd.f32 %v1566, %v2139
  %2141 = vadd.xlane.f32.xlu0 %v2140
  %v2142 = vpop.xlane.xlu0 %2141
  %v2143 = vsel %vm1790, %v1574, 0.0
  %v2144 = vadd.f32 %v1572, %v2143
  %2145 = vadd.xlane.f32.xlu0 %v2144
  %v2146 = vpop.xlane.xlu0 %2145
  %v2147 = vsel %vm1790, %v1578, 0.0
  %v2148 = vadd.f32 %v1576, %v2147
  %2149 = vadd.xlane.f32.xlu0 %v2148
  %v2150 = vpop.xlane.xlu0 %2149
  %v2151 = vsel %vm1790, %v1584, 0.0
  %v2152 = vadd.f32 %v1582, %v2151
  %2153 = vadd.xlane.f32.xlu0 %v2152
  %v2154 = vpop.xlane.xlu0 %2153
  %v2155 = vsel %vm1790, %v1588, 0.0
  %v2156 = vadd.f32 %v1586, %v2155
  %2157 = vadd.xlane.f32.xlu0 %v2156
  %v2158 = vpop.xlane.xlu0 %2157
  %v2159 = vsel %vm1790, %v1594, 0.0
  %v2160 = vadd.f32 %v1592, %v2159
  %2161 = vadd.xlane.f32.xlu0 %v2160
  %v2162 = vpop.xlane.xlu0 %2161
  %v2163 = vsel %vm1790, %v1598, 0.0
  %v2164 = vadd.f32 %v1596, %v2163
  %2165 = vadd.xlane.f32.xlu0 %v2164
  %v2166 = vpop.xlane.xlu0 %2165
  %v2167 = vsel %vm1790, %v1604, 0.0
  %v2168 = vadd.f32 %v1602, %v2167
  %2169 = vadd.xlane.f32.xlu0 %v2168
  %v2170 = vpop.xlane.xlu0 %2169
  %v2171 = vsel %vm1790, %v1608, 0.0
  %v2172 = vadd.f32 %v1606, %v2171
  %2173 = vadd.xlane.f32.xlu0 %v2172
  %v2174 = vpop.xlane.xlu0 %2173
  %v2175 = vsel %vm1790, %v1614, 0.0
  %v2176 = vadd.f32 %v1612, %v2175
  %2177 = vadd.xlane.f32.xlu0 %v2176
  %v2178 = vpop.xlane.xlu0 %2177
  %v2179 = vsel %vm1790, %v1618, 0.0
  %v2180 = vadd.f32 %v1616, %v2179
  %2181 = vadd.xlane.f32.xlu0 %v2180
  %v2182 = vpop.xlane.xlu0 %2181
  %v2183 = vsel %vm1790, %v1624, 0.0
  %v2184 = vadd.f32 %v1622, %v2183
  %2185 = vadd.xlane.f32.xlu0 %v2184
  %v2186 = vpop.xlane.xlu0 %2185
  %v2187 = vsel %vm1790, %v1628, 0.0
  %v2188 = vadd.f32 %v1626, %v2187
  %2189 = vadd.xlane.f32.xlu0 %v2188
  %v2190 = vpop.xlane.xlu0 %2189
  %v2191 = vsel %vm1790, %v1634, 0.0
  %v2192 = vadd.f32 %v1632, %v2191
  %2193 = vadd.xlane.f32.xlu0 %v2192
  %v2194 = vpop.xlane.xlu0 %2193
  %v2195 = vsel %vm1790, %v1638, 0.0
  %v2196 = vadd.f32 %v1636, %v2195
  %2197 = vadd.xlane.f32.xlu0 %v2196
  %v2198 = vpop.xlane.xlu0 %2197
  %v2199 = vsel %vm1790, %v1644, 0.0
  %v2200 = vadd.f32 %v1642, %v2199
  %2201 = vadd.xlane.f32.xlu0 %v2200
  %v2202 = vpop.xlane.xlu0 %2201
  %v2203 = vsel %vm1790, %v1648, 0.0
  %v2204 = vadd.f32 %v1646, %v2203
  %2205 = vadd.xlane.f32.xlu0 %v2204
  %v2206 = vpop.xlane.xlu0 %2205
  %v2207 = vsel %vm1790, %v1654, 0.0
  %v2208 = vadd.f32 %v1652, %v2207
  %2209 = vadd.xlane.f32.xlu0 %v2208
  %v2210 = vpop.xlane.xlu0 %2209
  %v2211 = vsel %vm1790, %v1658, 0.0
  %v2212 = vadd.f32 %v1656, %v2211
  %2213 = vadd.xlane.f32.xlu0 %v2212
  %v2214 = vpop.xlane.xlu0 %2213
  %v2215 = vsel %vm1790, %v1664, 0.0
  %v2216 = vadd.f32 %v1662, %v2215
  %2217 = vadd.xlane.f32.xlu0 %v2216
  %v2218 = vpop.xlane.xlu0 %2217
  %v2219 = vsel %vm1790, %v1668, 0.0
  %v2220 = vadd.f32 %v1666, %v2219
  %2221 = vadd.xlane.f32.xlu0 %v2220
  %v2222 = vpop.xlane.xlu0 %2221
  %v2223 = vsel %vm1790, %v1674, 0.0
  %v2224 = vadd.f32 %v1672, %v2223
  %2225 = vadd.xlane.f32.xlu0 %v2224
  %v2226 = vpop.xlane.xlu0 %2225
  %v2227 = vsel %vm1790, %v1678, 0.0
  %v2228 = vadd.f32 %v1676, %v2227
  %2229 = vadd.xlane.f32.xlu0 %v2228
  %v2230 = vpop.xlane.xlu0 %2229
  %v2231 = vsel %vm1790, %v1684, 0.0
  %v2232 = vadd.f32 %v1682, %v2231
  %2233 = vadd.xlane.f32.xlu0 %v2232
  %v2234 = vpop.xlane.xlu0 %2233
  %v2235 = vsel %vm1790, %v1688, 0.0
  %v2236 = vadd.f32 %v1686, %v2235
  %2237 = vadd.xlane.f32.xlu0 %v2236
  %v2238 = vpop.xlane.xlu0 %2237
  %v2239 = vsel %vm1790, %v1694, 0.0
  %v2240 = vadd.f32 %v1692, %v2239
  %2241 = vadd.xlane.f32.xlu0 %v2240
  %v2242 = vpop.xlane.xlu0 %2241
  %v2243 = vsel %vm1790, %v1698, 0.0
  %v2244 = vadd.f32 %v1696, %v2243
  %2245 = vadd.xlane.f32.xlu0 %v2244
  %v2246 = vpop.xlane.xlu0 %2245
  %v2247 = vsel %vm1790, %v1704, 0.0
  %v2248 = vadd.f32 %v1702, %v2247
  %2249 = vadd.xlane.f32.xlu0 %v2248
  %v2250 = vpop.xlane.xlu0 %2249
  %v2251 = vsel %vm1790, %v1708, 0.0
  %v2252 = vadd.f32 %v1706, %v2251
  %2253 = vadd.xlane.f32.xlu0 %v2252
  %v2254 = vpop.xlane.xlu0 %2253
  %v2255 = vsel %vm1790, %v1714, 0.0
  %v2256 = vadd.f32 %v1712, %v2255
  %2257 = vadd.xlane.f32.xlu0 %v2256
  %v2258 = vpop.xlane.xlu0 %2257
  %v2259 = vsel %vm1790, %v1718, 0.0
  %v2260 = vadd.f32 %v1716, %v2259
  %2261 = vadd.xlane.f32.xlu0 %v2260
  %v2262 = vpop.xlane.xlu0 %2261
  %v2263 = vsel %vm1790, %v1724, 0.0
  %v2264 = vadd.f32 %v1722, %v2263
  %2265 = vadd.xlane.f32.xlu0 %v2264
  %v2266 = vpop.xlane.xlu0 %2265
  %v2267 = vsel %vm1790, %v1728, 0.0
  %v2268 = vadd.f32 %v1726, %v2267
  %2269 = vadd.xlane.f32.xlu0 %v2268
  %v2270 = vpop.xlane.xlu0 %2269
  %v2271 = vsel %vm1790, %v1734, 0.0
  %v2272 = vadd.f32 %v1732, %v2271
  %2273 = vadd.xlane.f32.xlu0 %v2272
  %v2274 = vpop.xlane.xlu0 %2273
  %v2275 = vsel %vm1790, %v1738, 0.0
  %v2276 = vadd.f32 %v1736, %v2275
  %2277 = vadd.xlane.f32.xlu0 %v2276
  %v2278 = vpop.xlane.xlu0 %2277
  %v2279 = vsel %vm1790, %v1744, 0.0
  %v2280 = vadd.f32 %v1742, %v2279
  %2281 = vadd.xlane.f32.xlu0 %v2280
  %v2282 = vpop.xlane.xlu0 %2281
  %v2283 = vsel %vm1790, %v1748, 0.0
  %v2284 = vadd.f32 %v1746, %v2283
  %2285 = vadd.xlane.f32.xlu0 %v2284
  %v2286 = vpop.xlane.xlu0 %2285
  %v2287 = vsel %vm1790, %v1754, 0.0
  %v2288 = vadd.f32 %v1752, %v2287
  %2289 = vadd.xlane.f32.xlu0 %v2288
  %v2290 = vpop.xlane.xlu0 %2289
  %v2291 = vsel %vm1790, %v1758, 0.0
  %v2292 = vadd.f32 %v1756, %v2291
  %2293 = vadd.xlane.f32.xlu0 %v2292
  %v2294 = vpop.xlane.xlu0 %2293
  %v2295 = vsel %vm1790, %v1764, 0.0
  %v2296 = vadd.f32 %v1762, %v2295
  %2297 = vadd.xlane.f32.xlu0 %v2296
  %v2298 = vpop.xlane.xlu0 %2297
  %v2299 = vsel %vm1790, %v1768, 0.0
  %v2300 = vadd.f32 %v1766, %v2299
  %2301 = vadd.xlane.f32.xlu0 %v2300
  %v2302 = vpop.xlane.xlu0 %2301
  %v2303 = vsel %vm1790, %v1774, 0.0
  %v2304 = vadd.f32 %v1772, %v2303
  %2305 = vadd.xlane.f32.xlu0 %v2304
  %v2306 = vpop.xlane.xlu0 %2305
  %v2307 = vsel %vm1790, %v1778, 0.0
  %v2308 = vadd.f32 %v1776, %v2307
  %2309 = vadd.xlane.f32.xlu0 %v2308
  %v2310 = vpop.xlane.xlu0 %2309
  %v2311 = vsel %vm1790, %v1784, 0.0
  %v2312 = vadd.f32 %v1782, %v2311
  %2313 = vadd.xlane.f32.xlu0 %v2312
  %v2314 = vpop.xlane.xlu0 %2313
  %v2315 = vsel %vm1790, %v1788, 0.0
  %v2316 = vadd.f32 %v1786, %v2315
  %2317 = vadd.xlane.f32.xlu0 %v2316
  %v2318 = vpop.xlane.xlu0 %2317
  %v2319 = vmul.f32 %v1132, %v1132
  %v2320 = vmul.f32 %v1134, %v1134
  %v2321 = vmul.f32 %v1136, %v1136
  %v2322 = vmul.f32 %v1138, %v1138
  %v2323 = vmul.f32 %v1142, %v1142
  %v2324 = vmul.f32 %v1144, %v1144
  %v2325 = vmul.f32 %v1146, %v1146
  %v2326 = vmul.f32 %v1148, %v1148
  %v2327 = vmul.f32 %v1152, %v1152
  %v2328 = vmul.f32 %v1154, %v1154
  %v2329 = vmul.f32 %v1156, %v1156
  %v2330 = vmul.f32 %v1158, %v1158
  %v2331 = vmul.f32 %v1162, %v1162
  %v2332 = vmul.f32 %v1164, %v1164
  %v2333 = vmul.f32 %v1166, %v1166
  %v2334 = vmul.f32 %v1168, %v1168
  %v2335 = vmul.f32 %v1172, %v1172
  %v2336 = vmul.f32 %v1174, %v1174
  %v2337 = vmul.f32 %v1176, %v1176
  %v2338 = vmul.f32 %v1178, %v1178
  %v2339 = vmul.f32 %v1182, %v1182
  %v2340 = vmul.f32 %v1184, %v1184
  %v2341 = vmul.f32 %v1186, %v1186
  %v2342 = vmul.f32 %v1188, %v1188
  %v2343 = vmul.f32 %v1192, %v1192
  %v2344 = vmul.f32 %v1194, %v1194
  %v2345 = vmul.f32 %v1196, %v1196
  %v2346 = vmul.f32 %v1198, %v1198
  %v2347 = vmul.f32 %v1202, %v1202
  %v2348 = vmul.f32 %v1204, %v1204
  %v2349 = vmul.f32 %v1206, %v1206
  %v2350 = vmul.f32 %v1208, %v1208
  %v2351 = vmul.f32 %v1212, %v1212
  %v2352 = vmul.f32 %v1214, %v1214
  %v2353 = vmul.f32 %v1216, %v1216
  %v2354 = vmul.f32 %v1218, %v1218
  %v2355 = vmul.f32 %v1222, %v1222
  %v2356 = vmul.f32 %v1224, %v1224
  %v2357 = vmul.f32 %v1226, %v1226
  %v2358 = vmul.f32 %v1228, %v1228
  %v2359 = vmul.f32 %v1232, %v1232
  %v2360 = vmul.f32 %v1234, %v1234
  %v2361 = vmul.f32 %v1236, %v1236
  %v2362 = vmul.f32 %v1238, %v1238
  %v2363 = vmul.f32 %v1242, %v1242
  %v2364 = vmul.f32 %v1244, %v1244
  %v2365 = vmul.f32 %v1246, %v1246
  %v2366 = vmul.f32 %v1248, %v1248
  %v2367 = vmul.f32 %v1252, %v1252
  %v2368 = vmul.f32 %v1254, %v1254
  %v2369 = vmul.f32 %v1256, %v1256
  %v2370 = vmul.f32 %v1258, %v1258
  %v2371 = vmul.f32 %v1262, %v1262
  %v2372 = vmul.f32 %v1264, %v1264
  %v2373 = vmul.f32 %v1266, %v1266
  %v2374 = vmul.f32 %v1268, %v1268
  %v2375 = vmul.f32 %v1272, %v1272
  %v2376 = vmul.f32 %v1274, %v1274
  %v2377 = vmul.f32 %v1276, %v1276
  %v2378 = vmul.f32 %v1278, %v1278
  %v2379 = vmul.f32 %v1282, %v1282
  %v2380 = vmul.f32 %v1284, %v1284
  %v2381 = vmul.f32 %v1286, %v1286
  %v2382 = vmul.f32 %v1288, %v1288
  %v2383 = vmul.f32 %v1292, %v1292
  %v2384 = vmul.f32 %v1294, %v1294
  %v2385 = vmul.f32 %v1296, %v1296
  %v2386 = vmul.f32 %v1298, %v1298
  %v2387 = vmul.f32 %v1302, %v1302
  %v2388 = vmul.f32 %v1304, %v1304
  %v2389 = vmul.f32 %v1306, %v1306
  %v2390 = vmul.f32 %v1308, %v1308
  %v2391 = vmul.f32 %v1312, %v1312
  %v2392 = vmul.f32 %v1314, %v1314
  %v2393 = vmul.f32 %v1316, %v1316
  %v2394 = vmul.f32 %v1318, %v1318
  %v2395 = vmul.f32 %v1322, %v1322
  %v2396 = vmul.f32 %v1324, %v1324
  %v2397 = vmul.f32 %v1326, %v1326
  %v2398 = vmul.f32 %v1328, %v1328
  %v2399 = vmul.f32 %v1332, %v1332
  %v2400 = vmul.f32 %v1334, %v1334
  %v2401 = vmul.f32 %v1336, %v1336
  %v2402 = vmul.f32 %v1338, %v1338
  %v2403 = vmul.f32 %v1342, %v1342
  %v2404 = vmul.f32 %v1344, %v1344
  %v2405 = vmul.f32 %v1346, %v1346
  %v2406 = vmul.f32 %v1348, %v1348
  %v2407 = vmul.f32 %v1352, %v1352
  %v2408 = vmul.f32 %v1354, %v1354
  %v2409 = vmul.f32 %v1356, %v1356
  %v2410 = vmul.f32 %v1358, %v1358
  %v2411 = vmul.f32 %v1362, %v1362
  %v2412 = vmul.f32 %v1364, %v1364
  %v2413 = vmul.f32 %v1366, %v1366
  %v2414 = vmul.f32 %v1368, %v1368
  %v2415 = vmul.f32 %v1372, %v1372
  %v2416 = vmul.f32 %v1374, %v1374
  %v2417 = vmul.f32 %v1376, %v1376
  %v2418 = vmul.f32 %v1378, %v1378
  %v2419 = vmul.f32 %v1382, %v1382
  %v2420 = vmul.f32 %v1384, %v1384
  %v2421 = vmul.f32 %v1386, %v1386
  %v2422 = vmul.f32 %v1388, %v1388
  %v2423 = vmul.f32 %v1392, %v1392
  %v2424 = vmul.f32 %v1394, %v1394
  %v2425 = vmul.f32 %v1396, %v1396
  %v2426 = vmul.f32 %v1398, %v1398
  %v2427 = vmul.f32 %v1402, %v1402
  %v2428 = vmul.f32 %v1404, %v1404
  %v2429 = vmul.f32 %v1406, %v1406
  %v2430 = vmul.f32 %v1408, %v1408
  %v2431 = vmul.f32 %v1412, %v1412
  %v2432 = vmul.f32 %v1414, %v1414
  %v2433 = vmul.f32 %v1416, %v1416
  %v2434 = vmul.f32 %v1418, %v1418
  %v2435 = vmul.f32 %v1422, %v1422
  %v2436 = vmul.f32 %v1424, %v1424
  %v2437 = vmul.f32 %v1426, %v1426
  %v2438 = vmul.f32 %v1428, %v1428
  %v2439 = vmul.f32 %v1432, %v1432
  %v2440 = vmul.f32 %v1434, %v1434
  %v2441 = vmul.f32 %v1436, %v1436
  %v2442 = vmul.f32 %v1438, %v1438
  %v2443 = vmul.f32 %v1442, %v1442
  %v2444 = vmul.f32 %v1444, %v1444
  %v2445 = vmul.f32 %v1446, %v1446
  %v2446 = vmul.f32 %v1448, %v1448
  %v2447 = vmul.f32 %v1452, %v1452
  %v2448 = vmul.f32 %v1454, %v1454
  %v2449 = vmul.f32 %v1456, %v1456
  %v2450 = vmul.f32 %v1458, %v1458
  %v2451 = vmul.f32 %v1462, %v1462
  %v2452 = vmul.f32 %v1464, %v1464
  %v2453 = vmul.f32 %v1466, %v1466
  %v2454 = vmul.f32 %v1468, %v1468
  %v2455 = vmul.f32 %v1472, %v1472
  %v2456 = vmul.f32 %v1474, %v1474
  %v2457 = vmul.f32 %v1476, %v1476
  %v2458 = vmul.f32 %v1478, %v1478
  %v2459 = vmul.f32 %v1482, %v1482
  %v2460 = vmul.f32 %v1484, %v1484
  %v2461 = vmul.f32 %v1486, %v1486
  %v2462 = vmul.f32 %v1488, %v1488
  %v2463 = vmul.f32 %v1492, %v1492
  %v2464 = vmul.f32 %v1494, %v1494
  %v2465 = vmul.f32 %v1496, %v1496
  %v2466 = vmul.f32 %v1498, %v1498
  %v2467 = vmul.f32 %v1502, %v1502
  %v2468 = vmul.f32 %v1504, %v1504
  %v2469 = vmul.f32 %v1506, %v1506
  %v2470 = vmul.f32 %v1508, %v1508
  %v2471 = vmul.f32 %v1512, %v1512
  %v2472 = vmul.f32 %v1514, %v1514
  %v2473 = vmul.f32 %v1516, %v1516
  %v2474 = vmul.f32 %v1518, %v1518
  %v2475 = vmul.f32 %v1522, %v1522
  %v2476 = vmul.f32 %v1524, %v1524
  %v2477 = vmul.f32 %v1526, %v1526
  %v2478 = vmul.f32 %v1528, %v1528
  %v2479 = vmul.f32 %v1532, %v1532
  %v2480 = vmul.f32 %v1534, %v1534
  %v2481 = vmul.f32 %v1536, %v1536
  %v2482 = vmul.f32 %v1538, %v1538
  %v2483 = vmul.f32 %v1542, %v1542
  %v2484 = vmul.f32 %v1544, %v1544
  %v2485 = vmul.f32 %v1546, %v1546
  %v2486 = vmul.f32 %v1548, %v1548
  %v2487 = vmul.f32 %v1552, %v1552
  %v2488 = vmul.f32 %v1554, %v1554
  %v2489 = vmul.f32 %v1556, %v1556
  %v2490 = vmul.f32 %v1558, %v1558
  %v2491 = vmul.f32 %v1562, %v1562
  %v2492 = vmul.f32 %v1564, %v1564
  %v2493 = vmul.f32 %v1566, %v1566
  %v2494 = vmul.f32 %v1568, %v1568
  %v2495 = vmul.f32 %v1572, %v1572
  %v2496 = vmul.f32 %v1574, %v1574
  %v2497 = vmul.f32 %v1576, %v1576
  %v2498 = vmul.f32 %v1578, %v1578
  %v2499 = vmul.f32 %v1582, %v1582
  %v2500 = vmul.f32 %v1584, %v1584
  %v2501 = vmul.f32 %v1586, %v1586
  %v2502 = vmul.f32 %v1588, %v1588
  %v2503 = vmul.f32 %v1592, %v1592
  %v2504 = vmul.f32 %v1594, %v1594
  %v2505 = vmul.f32 %v1596, %v1596
  %v2506 = vmul.f32 %v1598, %v1598
  %v2507 = vmul.f32 %v1602, %v1602
  %v2508 = vmul.f32 %v1604, %v1604
  %v2509 = vmul.f32 %v1606, %v1606
  %v2510 = vmul.f32 %v1608, %v1608
  %v2511 = vmul.f32 %v1612, %v1612
  %v2512 = vmul.f32 %v1614, %v1614
  %v2513 = vmul.f32 %v1616, %v1616
  %v2514 = vmul.f32 %v1618, %v1618
  %v2515 = vmul.f32 %v1622, %v1622
  %v2516 = vmul.f32 %v1624, %v1624
  %v2517 = vmul.f32 %v1626, %v1626
  %v2518 = vmul.f32 %v1628, %v1628
  %v2519 = vmul.f32 %v1632, %v1632
  %v2520 = vmul.f32 %v1634, %v1634
  %v2521 = vmul.f32 %v1636, %v1636
  %v2522 = vmul.f32 %v1638, %v1638
  %v2523 = vmul.f32 %v1642, %v1642
  %v2524 = vmul.f32 %v1644, %v1644
  %v2525 = vmul.f32 %v1646, %v1646
  %v2526 = vmul.f32 %v1648, %v1648
  %v2527 = vmul.f32 %v1652, %v1652
  %v2528 = vmul.f32 %v1654, %v1654
  %v2529 = vmul.f32 %v1656, %v1656
  %v2530 = vmul.f32 %v1658, %v1658
  %v2531 = vmul.f32 %v1662, %v1662
  %v2532 = vmul.f32 %v1664, %v1664
  %v2533 = vmul.f32 %v1666, %v1666
  %v2534 = vmul.f32 %v1668, %v1668
  %v2535 = vmul.f32 %v1672, %v1672
  %v2536 = vmul.f32 %v1674, %v1674
  %v2537 = vmul.f32 %v1676, %v1676
  %v2538 = vmul.f32 %v1678, %v1678
  %v2539 = vmul.f32 %v1682, %v1682
  %v2540 = vmul.f32 %v1684, %v1684
  %v2541 = vmul.f32 %v1686, %v1686
  %v2542 = vmul.f32 %v1688, %v1688
  %v2543 = vmul.f32 %v1692, %v1692
  %v2544 = vmul.f32 %v1694, %v1694
  %v2545 = vmul.f32 %v1696, %v1696
  %v2546 = vmul.f32 %v1698, %v1698
  %v2547 = vmul.f32 %v1702, %v1702
  %v2548 = vmul.f32 %v1704, %v1704
  %v2549 = vmul.f32 %v1706, %v1706
  %v2550 = vmul.f32 %v1708, %v1708
  %v2551 = vmul.f32 %v1712, %v1712
  %v2552 = vmul.f32 %v1714, %v1714
  %v2553 = vmul.f32 %v1716, %v1716
  %v2554 = vmul.f32 %v1718, %v1718
  %v2555 = vmul.f32 %v1722, %v1722
  %v2556 = vmul.f32 %v1724, %v1724
  %v2557 = vmul.f32 %v1726, %v1726
  %v2558 = vmul.f32 %v1728, %v1728
  %v2559 = vmul.f32 %v1732, %v1732
  %v2560 = vmul.f32 %v1734, %v1734
  %v2561 = vmul.f32 %v1736, %v1736
  %v2562 = vmul.f32 %v1738, %v1738
  %v2563 = vmul.f32 %v1742, %v1742
  %v2564 = vmul.f32 %v1744, %v1744
  %v2565 = vmul.f32 %v1746, %v1746
  %v2566 = vmul.f32 %v1748, %v1748
  %v2567 = vmul.f32 %v1752, %v1752
  %v2568 = vmul.f32 %v1754, %v1754
  %v2569 = vmul.f32 %v1756, %v1756
  %v2570 = vmul.f32 %v1758, %v1758
  %v2571 = vmul.f32 %v1762, %v1762
  %v2572 = vmul.f32 %v1764, %v1764
  %v2573 = vmul.f32 %v1766, %v1766
  %v2574 = vmul.f32 %v1768, %v1768
  %v2575 = vmul.f32 %v1772, %v1772
  %v2576 = vmul.f32 %v1774, %v1774
  %v2577 = vmul.f32 %v1776, %v1776
  %v2578 = vmul.f32 %v1778, %v1778
  %v2579 = vmul.f32 %v1782, %v1782
  %v2580 = vmul.f32 %v1784, %v1784
  %v2581 = vmul.f32 %v1786, %v1786
  %v2582 = vmul.f32 %v1788, %v1788
  %v2583 = vsel %vm1790, %v2320, 0.0
  %v2584 = vadd.f32 %v2319, %v2583
  %2585 = vadd.xlane.f32.xlu0 %v2584
  %v2586 = vpop.xlane.xlu0 %2585
  %v2587 = vsel %vm1790, %v2322, 0.0
  %v2588 = vadd.f32 %v2321, %v2587
  %2589 = vadd.xlane.f32.xlu0 %v2588
  %v2590 = vpop.xlane.xlu0 %2589
  %v2591 = vsel %vm1790, %v2324, 0.0
  %v2592 = vadd.f32 %v2323, %v2591
  %2593 = vadd.xlane.f32.xlu0 %v2592
  %v2594 = vpop.xlane.xlu0 %2593
  %v2595 = vsel %vm1790, %v2326, 0.0
  %v2596 = vadd.f32 %v2325, %v2595
  %2597 = vadd.xlane.f32.xlu0 %v2596
  %v2598 = vpop.xlane.xlu0 %2597
  %v2599 = vsel %vm1790, %v2328, 0.0
  %v2600 = vadd.f32 %v2327, %v2599
  %2601 = vadd.xlane.f32.xlu0 %v2600
  %v2602 = vpop.xlane.xlu0 %2601
  %v2603 = vsel %vm1790, %v2330, 0.0
  %v2604 = vadd.f32 %v2329, %v2603
  %2605 = vadd.xlane.f32.xlu0 %v2604
  %v2606 = vpop.xlane.xlu0 %2605
  %v2607 = vsel %vm1790, %v2332, 0.0
  %v2608 = vadd.f32 %v2331, %v2607
  %2609 = vadd.xlane.f32.xlu0 %v2608
  %v2610 = vpop.xlane.xlu0 %2609
  %v2611 = vsel %vm1790, %v2334, 0.0
  %v2612 = vadd.f32 %v2333, %v2611
  %2613 = vadd.xlane.f32.xlu0 %v2612
  %v2614 = vpop.xlane.xlu0 %2613
  %v2615 = vsel %vm1790, %v2336, 0.0
  %v2616 = vadd.f32 %v2335, %v2615
  %2617 = vadd.xlane.f32.xlu0 %v2616
  %v2618 = vpop.xlane.xlu0 %2617
  %v2619 = vsel %vm1790, %v2338, 0.0
  %v2620 = vadd.f32 %v2337, %v2619
  %2621 = vadd.xlane.f32.xlu0 %v2620
  %v2622 = vpop.xlane.xlu0 %2621
  %v2623 = vsel %vm1790, %v2340, 0.0
  %v2624 = vadd.f32 %v2339, %v2623
  %2625 = vadd.xlane.f32.xlu0 %v2624
  %v2626 = vpop.xlane.xlu0 %2625
  %v2627 = vsel %vm1790, %v2342, 0.0
  %v2628 = vadd.f32 %v2341, %v2627
  %2629 = vadd.xlane.f32.xlu0 %v2628
  %v2630 = vpop.xlane.xlu0 %2629
  %v2631 = vsel %vm1790, %v2344, 0.0
  %v2632 = vadd.f32 %v2343, %v2631
  %2633 = vadd.xlane.f32.xlu0 %v2632
  %v2634 = vpop.xlane.xlu0 %2633
  %v2635 = vsel %vm1790, %v2346, 0.0
  %v2636 = vadd.f32 %v2345, %v2635
  %2637 = vadd.xlane.f32.xlu0 %v2636
  %v2638 = vpop.xlane.xlu0 %2637
  %v2639 = vsel %vm1790, %v2348, 0.0
  %v2640 = vadd.f32 %v2347, %v2639
  %2641 = vadd.xlane.f32.xlu0 %v2640
  %v2642 = vpop.xlane.xlu0 %2641
  %v2643 = vsel %vm1790, %v2350, 0.0
  %v2644 = vadd.f32 %v2349, %v2643
  %2645 = vadd.xlane.f32.xlu0 %v2644
  %v2646 = vpop.xlane.xlu0 %2645
  %v2647 = vsel %vm1790, %v2352, 0.0
  %v2648 = vadd.f32 %v2351, %v2647
  %2649 = vadd.xlane.f32.xlu0 %v2648
  %v2650 = vpop.xlane.xlu0 %2649
  %v2651 = vsel %vm1790, %v2354, 0.0
  %v2652 = vadd.f32 %v2353, %v2651
  %2653 = vadd.xlane.f32.xlu0 %v2652
  %v2654 = vpop.xlane.xlu0 %2653
  %v2655 = vsel %vm1790, %v2356, 0.0
  %v2656 = vadd.f32 %v2355, %v2655
  %2657 = vadd.xlane.f32.xlu0 %v2656
  %v2658 = vpop.xlane.xlu0 %2657
  %v2659 = vsel %vm1790, %v2358, 0.0
  %v2660 = vadd.f32 %v2357, %v2659
  %2661 = vadd.xlane.f32.xlu0 %v2660
  %v2662 = vpop.xlane.xlu0 %2661
  %v2663 = vsel %vm1790, %v2360, 0.0
  %v2664 = vadd.f32 %v2359, %v2663
  %2665 = vadd.xlane.f32.xlu0 %v2664
  %v2666 = vpop.xlane.xlu0 %2665
  %v2667 = vsel %vm1790, %v2362, 0.0
  %v2668 = vadd.f32 %v2361, %v2667
  %2669 = vadd.xlane.f32.xlu0 %v2668
  %v2670 = vpop.xlane.xlu0 %2669
  %v2671 = vsel %vm1790, %v2364, 0.0
  %v2672 = vadd.f32 %v2363, %v2671
  %2673 = vadd.xlane.f32.xlu0 %v2672
  %v2674 = vpop.xlane.xlu0 %2673
  %v2675 = vsel %vm1790, %v2366, 0.0
  %v2676 = vadd.f32 %v2365, %v2675
  %2677 = vadd.xlane.f32.xlu0 %v2676
  %v2678 = vpop.xlane.xlu0 %2677
  %v2679 = vsel %vm1790, %v2368, 0.0
  %v2680 = vadd.f32 %v2367, %v2679
  %2681 = vadd.xlane.f32.xlu0 %v2680
  %v2682 = vpop.xlane.xlu0 %2681
  %v2683 = vsel %vm1790, %v2370, 0.0
  %v2684 = vadd.f32 %v2369, %v2683
  %2685 = vadd.xlane.f32.xlu0 %v2684
  %v2686 = vpop.xlane.xlu0 %2685
  %v2687 = vsel %vm1790, %v2372, 0.0
  %v2688 = vadd.f32 %v2371, %v2687
  %2689 = vadd.xlane.f32.xlu0 %v2688
  %v2690 = vpop.xlane.xlu0 %2689
  %v2691 = vsel %vm1790, %v2374, 0.0
  %v2692 = vadd.f32 %v2373, %v2691
  %2693 = vadd.xlane.f32.xlu0 %v2692
  %v2694 = vpop.xlane.xlu0 %2693
  %v2695 = vsel %vm1790, %v2376, 0.0
  %v2696 = vadd.f32 %v2375, %v2695
  %2697 = vadd.xlane.f32.xlu0 %v2696
  %v2698 = vpop.xlane.xlu0 %2697
  %v2699 = vsel %vm1790, %v2378, 0.0
  %v2700 = vadd.f32 %v2377, %v2699
  %2701 = vadd.xlane.f32.xlu0 %v2700
  %v2702 = vpop.xlane.xlu0 %2701
  %v2703 = vsel %vm1790, %v2380, 0.0
  %v2704 = vadd.f32 %v2379, %v2703
  %2705 = vadd.xlane.f32.xlu0 %v2704
  %v2706 = vpop.xlane.xlu0 %2705
  %v2707 = vsel %vm1790, %v2382, 0.0
  %v2708 = vadd.f32 %v2381, %v2707
  %2709 = vadd.xlane.f32.xlu0 %v2708
  %v2710 = vpop.xlane.xlu0 %2709
  %v2711 = vsel %vm1790, %v2384, 0.0
  %v2712 = vadd.f32 %v2383, %v2711
  %2713 = vadd.xlane.f32.xlu0 %v2712
  %v2714 = vpop.xlane.xlu0 %2713
  %v2715 = vsel %vm1790, %v2386, 0.0
  %v2716 = vadd.f32 %v2385, %v2715
  %2717 = vadd.xlane.f32.xlu0 %v2716
  %v2718 = vpop.xlane.xlu0 %2717
  %v2719 = vsel %vm1790, %v2388, 0.0
  %v2720 = vadd.f32 %v2387, %v2719
  %2721 = vadd.xlane.f32.xlu0 %v2720
  %v2722 = vpop.xlane.xlu0 %2721
  %v2723 = vsel %vm1790, %v2390, 0.0
  %v2724 = vadd.f32 %v2389, %v2723
  %2725 = vadd.xlane.f32.xlu0 %v2724
  %v2726 = vpop.xlane.xlu0 %2725
  %v2727 = vsel %vm1790, %v2392, 0.0
  %v2728 = vadd.f32 %v2391, %v2727
  %2729 = vadd.xlane.f32.xlu0 %v2728
  %v2730 = vpop.xlane.xlu0 %2729
  %v2731 = vsel %vm1790, %v2394, 0.0
  %v2732 = vadd.f32 %v2393, %v2731
  %2733 = vadd.xlane.f32.xlu0 %v2732
  %v2734 = vpop.xlane.xlu0 %2733
  %v2735 = vsel %vm1790, %v2396, 0.0
  %v2736 = vadd.f32 %v2395, %v2735
  %2737 = vadd.xlane.f32.xlu0 %v2736
  %v2738 = vpop.xlane.xlu0 %2737
  %v2739 = vsel %vm1790, %v2398, 0.0
  %v2740 = vadd.f32 %v2397, %v2739
  %2741 = vadd.xlane.f32.xlu0 %v2740
  %v2742 = vpop.xlane.xlu0 %2741
  %v2743 = vsel %vm1790, %v2400, 0.0
  %v2744 = vadd.f32 %v2399, %v2743
  %2745 = vadd.xlane.f32.xlu0 %v2744
  %v2746 = vpop.xlane.xlu0 %2745
  %v2747 = vsel %vm1790, %v2402, 0.0
  %v2748 = vadd.f32 %v2401, %v2747
  %2749 = vadd.xlane.f32.xlu0 %v2748
  %v2750 = vpop.xlane.xlu0 %2749
  %v2751 = vsel %vm1790, %v2404, 0.0
  %v2752 = vadd.f32 %v2403, %v2751
  %2753 = vadd.xlane.f32.xlu0 %v2752
  %v2754 = vpop.xlane.xlu0 %2753
  %v2755 = vsel %vm1790, %v2406, 0.0
  %v2756 = vadd.f32 %v2405, %v2755
  %2757 = vadd.xlane.f32.xlu0 %v2756
  %v2758 = vpop.xlane.xlu0 %2757
  %v2759 = vsel %vm1790, %v2408, 0.0
  %v2760 = vadd.f32 %v2407, %v2759
  %2761 = vadd.xlane.f32.xlu0 %v2760
  %v2762 = vpop.xlane.xlu0 %2761
  %v2763 = vsel %vm1790, %v2410, 0.0
  %v2764 = vadd.f32 %v2409, %v2763
  %2765 = vadd.xlane.f32.xlu0 %v2764
  %v2766 = vpop.xlane.xlu0 %2765
  %v2767 = vsel %vm1790, %v2412, 0.0
  %v2768 = vadd.f32 %v2411, %v2767
  %2769 = vadd.xlane.f32.xlu0 %v2768
  %v2770 = vpop.xlane.xlu0 %2769
  %v2771 = vsel %vm1790, %v2414, 0.0
  %v2772 = vadd.f32 %v2413, %v2771
  %2773 = vadd.xlane.f32.xlu0 %v2772
  %v2774 = vpop.xlane.xlu0 %2773
  %v2775 = vsel %vm1790, %v2416, 0.0
  %v2776 = vadd.f32 %v2415, %v2775
  %2777 = vadd.xlane.f32.xlu0 %v2776
  %v2778 = vpop.xlane.xlu0 %2777
  %v2779 = vsel %vm1790, %v2418, 0.0
  %v2780 = vadd.f32 %v2417, %v2779
  %2781 = vadd.xlane.f32.xlu0 %v2780
  %v2782 = vpop.xlane.xlu0 %2781
  %v2783 = vsel %vm1790, %v2420, 0.0
  %v2784 = vadd.f32 %v2419, %v2783
  %2785 = vadd.xlane.f32.xlu0 %v2784
  %v2786 = vpop.xlane.xlu0 %2785
  %v2787 = vsel %vm1790, %v2422, 0.0
  %v2788 = vadd.f32 %v2421, %v2787
  %2789 = vadd.xlane.f32.xlu0 %v2788
  %v2790 = vpop.xlane.xlu0 %2789
  %v2791 = vsel %vm1790, %v2424, 0.0
  %v2792 = vadd.f32 %v2423, %v2791
  %2793 = vadd.xlane.f32.xlu0 %v2792
  %v2794 = vpop.xlane.xlu0 %2793
  %v2795 = vsel %vm1790, %v2426, 0.0
  %v2796 = vadd.f32 %v2425, %v2795
  %2797 = vadd.xlane.f32.xlu0 %v2796
  %v2798 = vpop.xlane.xlu0 %2797
  %v2799 = vsel %vm1790, %v2428, 0.0
  %v2800 = vadd.f32 %v2427, %v2799
  %2801 = vadd.xlane.f32.xlu0 %v2800
  %v2802 = vpop.xlane.xlu0 %2801
  %v2803 = vsel %vm1790, %v2430, 0.0
  %v2804 = vadd.f32 %v2429, %v2803
  %2805 = vadd.xlane.f32.xlu0 %v2804
  %v2806 = vpop.xlane.xlu0 %2805
  %v2807 = vsel %vm1790, %v2432, 0.0
  %v2808 = vadd.f32 %v2431, %v2807
  %2809 = vadd.xlane.f32.xlu0 %v2808
  %v2810 = vpop.xlane.xlu0 %2809
  %v2811 = vsel %vm1790, %v2434, 0.0
  %v2812 = vadd.f32 %v2433, %v2811
  %2813 = vadd.xlane.f32.xlu0 %v2812
  %v2814 = vpop.xlane.xlu0 %2813
  %v2815 = vsel %vm1790, %v2436, 0.0
  %v2816 = vadd.f32 %v2435, %v2815
  %2817 = vadd.xlane.f32.xlu0 %v2816
  %v2818 = vpop.xlane.xlu0 %2817
  %v2819 = vsel %vm1790, %v2438, 0.0
  %v2820 = vadd.f32 %v2437, %v2819
  %2821 = vadd.xlane.f32.xlu0 %v2820
  %v2822 = vpop.xlane.xlu0 %2821
  %v2823 = vsel %vm1790, %v2440, 0.0
  %v2824 = vadd.f32 %v2439, %v2823
  %2825 = vadd.xlane.f32.xlu0 %v2824
  %v2826 = vpop.xlane.xlu0 %2825
  %v2827 = vsel %vm1790, %v2442, 0.0
  %v2828 = vadd.f32 %v2441, %v2827
  %2829 = vadd.xlane.f32.xlu0 %v2828
  %v2830 = vpop.xlane.xlu0 %2829
  %v2831 = vsel %vm1790, %v2444, 0.0
  %v2832 = vadd.f32 %v2443, %v2831
  %2833 = vadd.xlane.f32.xlu0 %v2832
  %v2834 = vpop.xlane.xlu0 %2833
  %v2835 = vsel %vm1790, %v2446, 0.0
  %v2836 = vadd.f32 %v2445, %v2835
  %2837 = vadd.xlane.f32.xlu0 %v2836
  %v2838 = vpop.xlane.xlu0 %2837
  %v2839 = vsel %vm1790, %v2448, 0.0
  %v2840 = vadd.f32 %v2447, %v2839
  %2841 = vadd.xlane.f32.xlu0 %v2840
  %v2842 = vpop.xlane.xlu0 %2841
  %v2843 = vsel %vm1790, %v2450, 0.0
  %v2844 = vadd.f32 %v2449, %v2843
  %2845 = vadd.xlane.f32.xlu0 %v2844
  %v2846 = vpop.xlane.xlu0 %2845
  %v2847 = vsel %vm1790, %v2452, 0.0
  %v2848 = vadd.f32 %v2451, %v2847
  %2849 = vadd.xlane.f32.xlu0 %v2848
  %v2850 = vpop.xlane.xlu0 %2849
  %v2851 = vsel %vm1790, %v2454, 0.0
  %v2852 = vadd.f32 %v2453, %v2851
  %2853 = vadd.xlane.f32.xlu0 %v2852
  %v2854 = vpop.xlane.xlu0 %2853
  %v2855 = vsel %vm1790, %v2456, 0.0
  %v2856 = vadd.f32 %v2455, %v2855
  %2857 = vadd.xlane.f32.xlu0 %v2856
  %v2858 = vpop.xlane.xlu0 %2857
  %v2859 = vsel %vm1790, %v2458, 0.0
  %v2860 = vadd.f32 %v2457, %v2859
  %2861 = vadd.xlane.f32.xlu0 %v2860
  %v2862 = vpop.xlane.xlu0 %2861
  %v2863 = vsel %vm1790, %v2460, 0.0
  %v2864 = vadd.f32 %v2459, %v2863
  %2865 = vadd.xlane.f32.xlu0 %v2864
  %v2866 = vpop.xlane.xlu0 %2865
  %v2867 = vsel %vm1790, %v2462, 0.0
  %v2868 = vadd.f32 %v2461, %v2867
  %2869 = vadd.xlane.f32.xlu0 %v2868
  %v2870 = vpop.xlane.xlu0 %2869
  %v2871 = vsel %vm1790, %v2464, 0.0
  %v2872 = vadd.f32 %v2463, %v2871
  %2873 = vadd.xlane.f32.xlu0 %v2872
  %v2874 = vpop.xlane.xlu0 %2873
  %v2875 = vsel %vm1790, %v2466, 0.0
  %v2876 = vadd.f32 %v2465, %v2875
  %2877 = vadd.xlane.f32.xlu0 %v2876
  %v2878 = vpop.xlane.xlu0 %2877
  %v2879 = vsel %vm1790, %v2468, 0.0
  %v2880 = vadd.f32 %v2467, %v2879
  %2881 = vadd.xlane.f32.xlu0 %v2880
  %v2882 = vpop.xlane.xlu0 %2881
  %v2883 = vsel %vm1790, %v2470, 0.0
  %v2884 = vadd.f32 %v2469, %v2883
  %2885 = vadd.xlane.f32.xlu0 %v2884
  %v2886 = vpop.xlane.xlu0 %2885
  %v2887 = vsel %vm1790, %v2472, 0.0
  %v2888 = vadd.f32 %v2471, %v2887
  %2889 = vadd.xlane.f32.xlu0 %v2888
  %v2890 = vpop.xlane.xlu0 %2889
  %v2891 = vsel %vm1790, %v2474, 0.0
  %v2892 = vadd.f32 %v2473, %v2891
  %2893 = vadd.xlane.f32.xlu0 %v2892
  %v2894 = vpop.xlane.xlu0 %2893
  %v2895 = vsel %vm1790, %v2476, 0.0
  %v2896 = vadd.f32 %v2475, %v2895
  %2897 = vadd.xlane.f32.xlu0 %v2896
  %v2898 = vpop.xlane.xlu0 %2897
  %v2899 = vsel %vm1790, %v2478, 0.0
  %v2900 = vadd.f32 %v2477, %v2899
  %2901 = vadd.xlane.f32.xlu0 %v2900
  %v2902 = vpop.xlane.xlu0 %2901
  %v2903 = vsel %vm1790, %v2480, 0.0
  %v2904 = vadd.f32 %v2479, %v2903
  %2905 = vadd.xlane.f32.xlu0 %v2904
  %v2906 = vpop.xlane.xlu0 %2905
  %v2907 = vsel %vm1790, %v2482, 0.0
  %v2908 = vadd.f32 %v2481, %v2907
  %2909 = vadd.xlane.f32.xlu0 %v2908
  %v2910 = vpop.xlane.xlu0 %2909
  %v2911 = vsel %vm1790, %v2484, 0.0
  %v2912 = vadd.f32 %v2483, %v2911
  %2913 = vadd.xlane.f32.xlu0 %v2912
  %v2914 = vpop.xlane.xlu0 %2913
  %v2915 = vsel %vm1790, %v2486, 0.0
  %v2916 = vadd.f32 %v2485, %v2915
  %2917 = vadd.xlane.f32.xlu0 %v2916
  %v2918 = vpop.xlane.xlu0 %2917
  %v2919 = vsel %vm1790, %v2488, 0.0
  %v2920 = vadd.f32 %v2487, %v2919
  %2921 = vadd.xlane.f32.xlu0 %v2920
  %v2922 = vpop.xlane.xlu0 %2921
  %v2923 = vsel %vm1790, %v2490, 0.0
  %v2924 = vadd.f32 %v2489, %v2923
  %2925 = vadd.xlane.f32.xlu0 %v2924
  %v2926 = vpop.xlane.xlu0 %2925
  %v2927 = vsel %vm1790, %v2492, 0.0
  %v2928 = vadd.f32 %v2491, %v2927
  %2929 = vadd.xlane.f32.xlu0 %v2928
  %v2930 = vpop.xlane.xlu0 %2929
  %v2931 = vsel %vm1790, %v2494, 0.0
  %v2932 = vadd.f32 %v2493, %v2931
  %2933 = vadd.xlane.f32.xlu0 %v2932
  %v2934 = vpop.xlane.xlu0 %2933
  %v2935 = vsel %vm1790, %v2496, 0.0
  %v2936 = vadd.f32 %v2495, %v2935
  %2937 = vadd.xlane.f32.xlu0 %v2936
  %v2938 = vpop.xlane.xlu0 %2937
  %v2939 = vsel %vm1790, %v2498, 0.0
  %v2940 = vadd.f32 %v2497, %v2939
  %2941 = vadd.xlane.f32.xlu0 %v2940
  %v2942 = vpop.xlane.xlu0 %2941
  %v2943 = vsel %vm1790, %v2500, 0.0
  %v2944 = vadd.f32 %v2499, %v2943
  %2945 = vadd.xlane.f32.xlu0 %v2944
  %v2946 = vpop.xlane.xlu0 %2945
  %v2947 = vsel %vm1790, %v2502, 0.0
  %v2948 = vadd.f32 %v2501, %v2947
  %2949 = vadd.xlane.f32.xlu0 %v2948
  %v2950 = vpop.xlane.xlu0 %2949
  %v2951 = vsel %vm1790, %v2504, 0.0
  %v2952 = vadd.f32 %v2503, %v2951
  %2953 = vadd.xlane.f32.xlu0 %v2952
  %v2954 = vpop.xlane.xlu0 %2953
  %v2955 = vsel %vm1790, %v2506, 0.0
  %v2956 = vadd.f32 %v2505, %v2955
  %2957 = vadd.xlane.f32.xlu0 %v2956
  %v2958 = vpop.xlane.xlu0 %2957
  %v2959 = vsel %vm1790, %v2508, 0.0
  %v2960 = vadd.f32 %v2507, %v2959
  %2961 = vadd.xlane.f32.xlu0 %v2960
  %v2962 = vpop.xlane.xlu0 %2961
  %v2963 = vsel %vm1790, %v2510, 0.0
  %v2964 = vadd.f32 %v2509, %v2963
  %2965 = vadd.xlane.f32.xlu0 %v2964
  %v2966 = vpop.xlane.xlu0 %2965
  %v2967 = vsel %vm1790, %v2512, 0.0
  %v2968 = vadd.f32 %v2511, %v2967
  %2969 = vadd.xlane.f32.xlu0 %v2968
  %v2970 = vpop.xlane.xlu0 %2969
  %v2971 = vsel %vm1790, %v2514, 0.0
  %v2972 = vadd.f32 %v2513, %v2971
  %2973 = vadd.xlane.f32.xlu0 %v2972
  %v2974 = vpop.xlane.xlu0 %2973
  %v2975 = vsel %vm1790, %v2516, 0.0
  %v2976 = vadd.f32 %v2515, %v2975
  %2977 = vadd.xlane.f32.xlu0 %v2976
  %v2978 = vpop.xlane.xlu0 %2977
  %v2979 = vsel %vm1790, %v2518, 0.0
  %v2980 = vadd.f32 %v2517, %v2979
  %2981 = vadd.xlane.f32.xlu0 %v2980
  %v2982 = vpop.xlane.xlu0 %2981
  %v2983 = vsel %vm1790, %v2520, 0.0
  %v2984 = vadd.f32 %v2519, %v2983
  %2985 = vadd.xlane.f32.xlu0 %v2984
  %v2986 = vpop.xlane.xlu0 %2985
  %v2987 = vsel %vm1790, %v2522, 0.0
  %v2988 = vadd.f32 %v2521, %v2987
  %2989 = vadd.xlane.f32.xlu0 %v2988
  %v2990 = vpop.xlane.xlu0 %2989
  %v2991 = vsel %vm1790, %v2524, 0.0
  %v2992 = vadd.f32 %v2523, %v2991
  %2993 = vadd.xlane.f32.xlu0 %v2992
  %v2994 = vpop.xlane.xlu0 %2993
  %v2995 = vsel %vm1790, %v2526, 0.0
  %v2996 = vadd.f32 %v2525, %v2995
  %2997 = vadd.xlane.f32.xlu0 %v2996
  %v2998 = vpop.xlane.xlu0 %2997
  %v2999 = vsel %vm1790, %v2528, 0.0
  %v3000 = vadd.f32 %v2527, %v2999
  %3001 = vadd.xlane.f32.xlu0 %v3000
  %v3002 = vpop.xlane.xlu0 %3001
  %v3003 = vsel %vm1790, %v2530, 0.0
  %v3004 = vadd.f32 %v2529, %v3003
  %3005 = vadd.xlane.f32.xlu0 %v3004
  %v3006 = vpop.xlane.xlu0 %3005
  %v3007 = vsel %vm1790, %v2532, 0.0
  %v3008 = vadd.f32 %v2531, %v3007
  %3009 = vadd.xlane.f32.xlu0 %v3008
  %v3010 = vpop.xlane.xlu0 %3009
  %v3011 = vsel %vm1790, %v2534, 0.0
  %v3012 = vadd.f32 %v2533, %v3011
  %3013 = vadd.xlane.f32.xlu0 %v3012
  %v3014 = vpop.xlane.xlu0 %3013
  %v3015 = vsel %vm1790, %v2536, 0.0
  %v3016 = vadd.f32 %v2535, %v3015
  %3017 = vadd.xlane.f32.xlu0 %v3016
  %v3018 = vpop.xlane.xlu0 %3017
  %v3019 = vsel %vm1790, %v2538, 0.0
  %v3020 = vadd.f32 %v2537, %v3019
  %3021 = vadd.xlane.f32.xlu0 %v3020
  %v3022 = vpop.xlane.xlu0 %3021
  %v3023 = vsel %vm1790, %v2540, 0.0
  %v3024 = vadd.f32 %v2539, %v3023
  %3025 = vadd.xlane.f32.xlu0 %v3024
  %v3026 = vpop.xlane.xlu0 %3025
  %v3027 = vsel %vm1790, %v2542, 0.0
  %v3028 = vadd.f32 %v2541, %v3027
  %3029 = vadd.xlane.f32.xlu0 %v3028
  %v3030 = vpop.xlane.xlu0 %3029
  %v3031 = vsel %vm1790, %v2544, 0.0
  %v3032 = vadd.f32 %v2543, %v3031
  %3033 = vadd.xlane.f32.xlu0 %v3032
  %v3034 = vpop.xlane.xlu0 %3033
  %v3035 = vsel %vm1790, %v2546, 0.0
  %v3036 = vadd.f32 %v2545, %v3035
  %3037 = vadd.xlane.f32.xlu0 %v3036
  %v3038 = vpop.xlane.xlu0 %3037
  %v3039 = vsel %vm1790, %v2548, 0.0
  %v3040 = vadd.f32 %v2547, %v3039
  %3041 = vadd.xlane.f32.xlu0 %v3040
  %v3042 = vpop.xlane.xlu0 %3041
  %v3043 = vsel %vm1790, %v2550, 0.0
  %v3044 = vadd.f32 %v2549, %v3043
  %3045 = vadd.xlane.f32.xlu0 %v3044
  %v3046 = vpop.xlane.xlu0 %3045
  %v3047 = vsel %vm1790, %v2552, 0.0
  %v3048 = vadd.f32 %v2551, %v3047
  %3049 = vadd.xlane.f32.xlu0 %v3048
  %v3050 = vpop.xlane.xlu0 %3049
  %v3051 = vsel %vm1790, %v2554, 0.0
  %v3052 = vadd.f32 %v2553, %v3051
  %3053 = vadd.xlane.f32.xlu0 %v3052
  %v3054 = vpop.xlane.xlu0 %3053
  %v3055 = vsel %vm1790, %v2556, 0.0
  %v3056 = vadd.f32 %v2555, %v3055
  %3057 = vadd.xlane.f32.xlu0 %v3056
  %v3058 = vpop.xlane.xlu0 %3057
  %v3059 = vsel %vm1790, %v2558, 0.0
  %v3060 = vadd.f32 %v2557, %v3059
  %3061 = vadd.xlane.f32.xlu0 %v3060
  %v3062 = vpop.xlane.xlu0 %3061
  %v3063 = vsel %vm1790, %v2560, 0.0
  %v3064 = vadd.f32 %v2559, %v3063
  %3065 = vadd.xlane.f32.xlu0 %v3064
  %v3066 = vpop.xlane.xlu0 %3065
  %v3067 = vsel %vm1790, %v2562, 0.0
  %v3068 = vadd.f32 %v2561, %v3067
  %3069 = vadd.xlane.f32.xlu0 %v3068
  %v3070 = vpop.xlane.xlu0 %3069
  %v3071 = vsel %vm1790, %v2564, 0.0
  %v3072 = vadd.f32 %v2563, %v3071
  %3073 = vadd.xlane.f32.xlu0 %v3072
  %v3074 = vpop.xlane.xlu0 %3073
  %v3075 = vsel %vm1790, %v2566, 0.0
  %v3076 = vadd.f32 %v2565, %v3075
  %3077 = vadd.xlane.f32.xlu0 %v3076
  %v3078 = vpop.xlane.xlu0 %3077
  %v3079 = vsel %vm1790, %v2568, 0.0
  %v3080 = vadd.f32 %v2567, %v3079
  %3081 = vadd.xlane.f32.xlu0 %v3080
  %v3082 = vpop.xlane.xlu0 %3081
  %v3083 = vsel %vm1790, %v2570, 0.0
  %v3084 = vadd.f32 %v2569, %v3083
  %3085 = vadd.xlane.f32.xlu0 %v3084
  %v3086 = vpop.xlane.xlu0 %3085
  %v3087 = vsel %vm1790, %v2572, 0.0
  %v3088 = vadd.f32 %v2571, %v3087
  %3089 = vadd.xlane.f32.xlu0 %v3088
  %v3090 = vpop.xlane.xlu0 %3089
  %v3091 = vsel %vm1790, %v2574, 0.0
  %v3092 = vadd.f32 %v2573, %v3091
  %3093 = vadd.xlane.f32.xlu0 %v3092
  %v3094 = vpop.xlane.xlu0 %3093
  %v3095 = vsel %vm1790, %v2576, 0.0
  %v3096 = vadd.f32 %v2575, %v3095
  %3097 = vadd.xlane.f32.xlu0 %v3096
  %v3098 = vpop.xlane.xlu0 %3097
  %v3099 = vsel %vm1790, %v2578, 0.0
  %v3100 = vadd.f32 %v2577, %v3099
  %3101 = vadd.xlane.f32.xlu0 %v3100
  %v3102 = vpop.xlane.xlu0 %3101
  %v3103 = vsel %vm1790, %v2580, 0.0
  %v3104 = vadd.f32 %v2579, %v3103
  %3105 = vadd.xlane.f32.xlu0 %v3104
  %v3106 = vpop.xlane.xlu0 %3105
  %v3107 = vsel %vm1790, %v2582, 0.0
  %v3108 = vadd.f32 %v2581, %v3107
  %3109 = vadd.xlane.f32.xlu0 %v3108
  %v3110 = vpop.xlane.xlu0 %3109
  %v3111 = vmul.f32 %v1794, 0.0051020407
  %v3112 = vmul.f32 %v1798, 0.0051020407
  %v3113 = vmul.f32 %v1802, 0.0051020407
  %v3114 = vmul.f32 %v1806, 0.0051020407
  %v3115 = vmul.f32 %v1810, 0.0051020407
  %v3116 = vmul.f32 %v1814, 0.0051020407
  %v3117 = vmul.f32 %v1818, 0.0051020407
  %v3118 = vmul.f32 %v1822, 0.0051020407
  %v3119 = vmul.f32 %v1826, 0.0051020407
  %v3120 = vmul.f32 %v1830, 0.0051020407
  %v3121 = vmul.f32 %v1834, 0.0051020407
  %v3122 = vmul.f32 %v1838, 0.0051020407
  %v3123 = vmul.f32 %v1842, 0.0051020407
  %v3124 = vmul.f32 %v1846, 0.0051020407
  %v3125 = vmul.f32 %v1850, 0.0051020407
  %v3126 = vmul.f32 %v1854, 0.0051020407
  %v3127 = vmul.f32 %v1858, 0.0051020407
  %v3128 = vmul.f32 %v1862, 0.0051020407
  %v3129 = vmul.f32 %v1866, 0.0051020407
  %v3130 = vmul.f32 %v1870, 0.0051020407
  %v3131 = vmul.f32 %v1874, 0.0051020407
  %v3132 = vmul.f32 %v1878, 0.0051020407
  %v3133 = vmul.f32 %v1882, 0.0051020407
  %v3134 = vmul.f32 %v1886, 0.0051020407
  %v3135 = vmul.f32 %v1890, 0.0051020407
  %v3136 = vmul.f32 %v1894, 0.0051020407
  %v3137 = vmul.f32 %v1898, 0.0051020407
  %v3138 = vmul.f32 %v1902, 0.0051020407
  %v3139 = vmul.f32 %v1906, 0.0051020407
  %v3140 = vmul.f32 %v1910, 0.0051020407
  %v3141 = vmul.f32 %v1914, 0.0051020407
  %v3142 = vmul.f32 %v1918, 0.0051020407
  %v3143 = vmul.f32 %v1922, 0.0051020407
  %v3144 = vmul.f32 %v1926, 0.0051020407
  %v3145 = vmul.f32 %v1930, 0.0051020407
  %v3146 = vmul.f32 %v1934, 0.0051020407
  %v3147 = vmul.f32 %v1938, 0.0051020407
  %v3148 = vmul.f32 %v1942, 0.0051020407
  %v3149 = vmul.f32 %v1946, 0.0051020407
  %v3150 = vmul.f32 %v1950, 0.0051020407
  %v3151 = vmul.f32 %v1954, 0.0051020407
  %v3152 = vmul.f32 %v1958, 0.0051020407
  %v3153 = vmul.f32 %v1962, 0.0051020407
  %v3154 = vmul.f32 %v1966, 0.0051020407
  %v3155 = vmul.f32 %v1970, 0.0051020407
  %v3156 = vmul.f32 %v1974, 0.0051020407
  %v3157 = vmul.f32 %v1978, 0.0051020407
  %v3158 = vmul.f32 %v1982, 0.0051020407
  %v3159 = vmul.f32 %v1986, 0.0051020407
  %v3160 = vmul.f32 %v1990, 0.0051020407
  %v3161 = vmul.f32 %v1994, 0.0051020407
  %v3162 = vmul.f32 %v1998, 0.0051020407
  %v3163 = vmul.f32 %v2002, 0.0051020407
  %v3164 = vmul.f32 %v2006, 0.0051020407
  %v3165 = vmul.f32 %v2010, 0.0051020407
  %v3166 = vmul.f32 %v2014, 0.0051020407
  %v3167 = vmul.f32 %v2018, 0.0051020407
  %v3168 = vmul.f32 %v2022, 0.0051020407
  %v3169 = vmul.f32 %v2026, 0.0051020407
  %v3170 = vmul.f32 %v2030, 0.0051020407
  %v3171 = vmul.f32 %v2034, 0.0051020407
  %v3172 = vmul.f32 %v2038, 0.0051020407
  %v3173 = vmul.f32 %v2042, 0.0051020407
  %v3174 = vmul.f32 %v2046, 0.0051020407
  %v3175 = vmul.f32 %v2050, 0.0051020407
  %v3176 = vmul.f32 %v2054, 0.0051020407
  %v3177 = vmul.f32 %v2058, 0.0051020407
  %v3178 = vmul.f32 %v2062, 0.0051020407
  %v3179 = vmul.f32 %v2066, 0.0051020407
  %v3180 = vmul.f32 %v2070, 0.0051020407
  %v3181 = vmul.f32 %v2074, 0.0051020407
  %v3182 = vmul.f32 %v2078, 0.0051020407
  %v3183 = vmul.f32 %v2082, 0.0051020407
  %v3184 = vmul.f32 %v2086, 0.0051020407
  %v3185 = vmul.f32 %v2090, 0.0051020407
  %v3186 = vmul.f32 %v2094, 0.0051020407
  %v3187 = vmul.f32 %v2098, 0.0051020407
  %v3188 = vmul.f32 %v2102, 0.0051020407
  %v3189 = vmul.f32 %v2106, 0.0051020407
  %v3190 = vmul.f32 %v2110, 0.0051020407
  %v3191 = vmul.f32 %v2114, 0.0051020407
  %v3192 = vmul.f32 %v2118, 0.0051020407
  %v3193 = vmul.f32 %v2122, 0.0051020407
  %v3194 = vmul.f32 %v2126, 0.0051020407
  %v3195 = vmul.f32 %v2130, 0.0051020407
  %v3196 = vmul.f32 %v2134, 0.0051020407
  %v3197 = vmul.f32 %v2138, 0.0051020407
  %v3198 = vmul.f32 %v2142, 0.0051020407
  %v3199 = vmul.f32 %v2146, 0.0051020407
  %v3200 = vmul.f32 %v2150, 0.0051020407
  %v3201 = vmul.f32 %v2154, 0.0051020407
  %v3202 = vmul.f32 %v2158, 0.0051020407
  %v3203 = vmul.f32 %v2162, 0.0051020407
  %v3204 = vmul.f32 %v2166, 0.0051020407
  %v3205 = vmul.f32 %v2170, 0.0051020407
  %v3206 = vmul.f32 %v2174, 0.0051020407
  %v3207 = vmul.f32 %v2178, 0.0051020407
  %v3208 = vmul.f32 %v2182, 0.0051020407
  %v3209 = vmul.f32 %v2186, 0.0051020407
  %v3210 = vmul.f32 %v2190, 0.0051020407
  %v3211 = vmul.f32 %v2194, 0.0051020407
  %v3212 = vmul.f32 %v2198, 0.0051020407
  %v3213 = vmul.f32 %v2202, 0.0051020407
  %v3214 = vmul.f32 %v2206, 0.0051020407
  %v3215 = vmul.f32 %v2210, 0.0051020407
  %v3216 = vmul.f32 %v2214, 0.0051020407
  %v3217 = vmul.f32 %v2218, 0.0051020407
  %v3218 = vmul.f32 %v2222, 0.0051020407
  %v3219 = vmul.f32 %v2226, 0.0051020407
  %v3220 = vmul.f32 %v2230, 0.0051020407
  %v3221 = vmul.f32 %v2234, 0.0051020407
  %v3222 = vmul.f32 %v2238, 0.0051020407
  %v3223 = vmul.f32 %v2242, 0.0051020407
  %v3224 = vmul.f32 %v2246, 0.0051020407
  %v3225 = vmul.f32 %v2250, 0.0051020407
  %v3226 = vmul.f32 %v2254, 0.0051020407
  %v3227 = vmul.f32 %v2258, 0.0051020407
  %v3228 = vmul.f32 %v2262, 0.0051020407
  %v3229 = vmul.f32 %v2266, 0.0051020407
  %v3230 = vmul.f32 %v2270, 0.0051020407
  %v3231 = vmul.f32 %v2274, 0.0051020407
  %v3232 = vmul.f32 %v2278, 0.0051020407
  %v3233 = vmul.f32 %v2282, 0.0051020407
  %v3234 = vmul.f32 %v2286, 0.0051020407
  %v3235 = vmul.f32 %v2290, 0.0051020407
  %v3236 = vmul.f32 %v2294, 0.0051020407
  %v3237 = vmul.f32 %v2298, 0.0051020407
  %v3238 = vmul.f32 %v2302, 0.0051020407
  %v3239 = vmul.f32 %v2306, 0.0051020407
  %v3240 = vmul.f32 %v2310, 0.0051020407
  %v3241 = vmul.f32 %v2314, 0.0051020407
  %v3242 = vmul.f32 %v2318, 0.0051020407
  %v3243 = vmul.f32 %v2586, 0.0051020407
  %v3244 = vmul.f32 %v2590, 0.0051020407
  %v3245 = vmul.f32 %v2594, 0.0051020407
  %v3246 = vmul.f32 %v2598, 0.0051020407
  %v3247 = vmul.f32 %v2602, 0.0051020407
  %v3248 = vmul.f32 %v2606, 0.0051020407
  %v3249 = vmul.f32 %v2610, 0.0051020407
  %v3250 = vmul.f32 %v2614, 0.0051020407
  %v3251 = vmul.f32 %v2618, 0.0051020407
  %v3252 = vmul.f32 %v2622, 0.0051020407
  %v3253 = vmul.f32 %v2626, 0.0051020407
  %v3254 = vmul.f32 %v2630, 0.0051020407
  %v3255 = vmul.f32 %v2634, 0.0051020407
  %v3256 = vmul.f32 %v2638, 0.0051020407
  %v3257 = vmul.f32 %v2642, 0.0051020407
  %v3258 = vmul.f32 %v2646, 0.0051020407
  %v3259 = vmul.f32 %v2650, 0.0051020407
  %v3260 = vmul.f32 %v2654, 0.0051020407
  %v3261 = vmul.f32 %v2658, 0.0051020407
  %v3262 = vmul.f32 %v2662, 0.0051020407
  %v3263 = vmul.f32 %v2666, 0.0051020407
  %v3264 = vmul.f32 %v2670, 0.0051020407
  %v3265 = vmul.f32 %v2674, 0.0051020407
  %v3266 = vmul.f32 %v2678, 0.0051020407
  %v3267 = vmul.f32 %v2682, 0.0051020407
  %v3268 = vmul.f32 %v2686, 0.0051020407
  %v3269 = vmul.f32 %v2690, 0.0051020407
  %v3270 = vmul.f32 %v2694, 0.0051020407
  %v3271 = vmul.f32 %v2698, 0.0051020407
  %v3272 = vmul.f32 %v2702, 0.0051020407
  %v3273 = vmul.f32 %v2706, 0.0051020407
  %v3274 = vmul.f32 %v2710, 0.0051020407
  %v3275 = vmul.f32 %v2714, 0.0051020407
  %v3276 = vmul.f32 %v2718, 0.0051020407
  %v3277 = vmul.f32 %v2722, 0.0051020407
  %v3278 = vmul.f32 %v2726, 0.0051020407
  %v3279 = vmul.f32 %v2730, 0.0051020407
  %v3280 = vmul.f32 %v2734, 0.0051020407
  %v3281 = vmul.f32 %v2738, 0.0051020407
  %v3282 = vmul.f32 %v2742, 0.0051020407
  %v3283 = vmul.f32 %v2746, 0.0051020407
  %v3284 = vmul.f32 %v2750, 0.0051020407
  %v3285 = vmul.f32 %v2754, 0.0051020407
  %v3286 = vmul.f32 %v2758, 0.0051020407
  %v3287 = vmul.f32 %v2762, 0.0051020407
  %v3288 = vmul.f32 %v2766, 0.0051020407
  %v3289 = vmul.f32 %v2770, 0.0051020407
  %v3290 = vmul.f32 %v2774, 0.0051020407
  %v3291 = vmul.f32 %v2778, 0.0051020407
  %v3292 = vmul.f32 %v2782, 0.0051020407
  %v3293 = vmul.f32 %v2786, 0.0051020407
  %v3294 = vmul.f32 %v2790, 0.0051020407
  %v3295 = vmul.f32 %v2794, 0.0051020407
  %v3296 = vmul.f32 %v2798, 0.0051020407
  %v3297 = vmul.f32 %v2802, 0.0051020407
  %v3298 = vmul.f32 %v2806, 0.0051020407
  %v3299 = vmul.f32 %v2810, 0.0051020407
  %v3300 = vmul.f32 %v2814, 0.0051020407
  %v3301 = vmul.f32 %v2818, 0.0051020407
  %v3302 = vmul.f32 %v2822, 0.0051020407
  %v3303 = vmul.f32 %v2826, 0.0051020407
  %v3304 = vmul.f32 %v2830, 0.0051020407
  %v3305 = vmul.f32 %v2834, 0.0051020407
  %v3306 = vmul.f32 %v2838, 0.0051020407
  %v3307 = vmul.f32 %v2842, 0.0051020407
  %v3308 = vmul.f32 %v2846, 0.0051020407
  %v3309 = vmul.f32 %v2850, 0.0051020407
  %v3310 = vmul.f32 %v2854, 0.0051020407
  %v3311 = vmul.f32 %v2858, 0.0051020407
  %v3312 = vmul.f32 %v2862, 0.0051020407
  %v3313 = vmul.f32 %v2866, 0.0051020407
  %v3314 = vmul.f32 %v2870, 0.0051020407
  %v3315 = vmul.f32 %v2874, 0.0051020407
  %v3316 = vmul.f32 %v2878, 0.0051020407
  %v3317 = vmul.f32 %v2882, 0.0051020407
  %v3318 = vmul.f32 %v2886, 0.0051020407
  %v3319 = vmul.f32 %v2890, 0.0051020407
  %v3320 = vmul.f32 %v2894, 0.0051020407
  %v3321 = vmul.f32 %v2898, 0.0051020407
  %v3322 = vmul.f32 %v2902, 0.0051020407
  %v3323 = vmul.f32 %v2906, 0.0051020407
  %v3324 = vmul.f32 %v2910, 0.0051020407
  %v3325 = vmul.f32 %v2914, 0.0051020407
  %v3326 = vmul.f32 %v2918, 0.0051020407
  %v3327 = vmul.f32 %v2922, 0.0051020407
  %v3328 = vmul.f32 %v2926, 0.0051020407
  %v3329 = vmul.f32 %v2930, 0.0051020407
  %v3330 = vmul.f32 %v2934, 0.0051020407
  %v3331 = vmul.f32 %v2938, 0.0051020407
  %v3332 = vmul.f32 %v2942, 0.0051020407
  %v3333 = vmul.f32 %v2946, 0.0051020407
  %v3334 = vmul.f32 %v2950, 0.0051020407
  %v3335 = vmul.f32 %v2954, 0.0051020407
  %v3336 = vmul.f32 %v2958, 0.0051020407
  %v3337 = vmul.f32 %v2962, 0.0051020407
  %v3338 = vmul.f32 %v2966, 0.0051020407
  %v3339 = vmul.f32 %v2970, 0.0051020407
  %v3340 = vmul.f32 %v2974, 0.0051020407
  %v3341 = vmul.f32 %v2978, 0.0051020407
  %v3342 = vmul.f32 %v2982, 0.0051020407
  %v3343 = vmul.f32 %v2986, 0.0051020407
  %v3344 = vmul.f32 %v2990, 0.0051020407
  %v3345 = vmul.f32 %v2994, 0.0051020407
  %v3346 = vmul.f32 %v2998, 0.0051020407
  %v3347 = vmul.f32 %v3002, 0.0051020407
  %v3348 = vmul.f32 %v3006, 0.0051020407
  %v3349 = vmul.f32 %v3010, 0.0051020407
  %v3350 = vmul.f32 %v3014, 0.0051020407
  %v3351 = vmul.f32 %v3018, 0.0051020407
  %v3352 = vmul.f32 %v3022, 0.0051020407
  %v3353 = vmul.f32 %v3026, 0.0051020407
  %v3354 = vmul.f32 %v3030, 0.0051020407
  %v3355 = vmul.f32 %v3034, 0.0051020407
  %v3356 = vmul.f32 %v3038, 0.0051020407
  %v3357 = vmul.f32 %v3042, 0.0051020407
  %v3358 = vmul.f32 %v3046, 0.0051020407
  %v3359 = vmul.f32 %v3050, 0.0051020407
  %v3360 = vmul.f32 %v3054, 0.0051020407
  %v3361 = vmul.f32 %v3058, 0.0051020407
  %v3362 = vmul.f32 %v3062, 0.0051020407
  %v3363 = vmul.f32 %v3066, 0.0051020407
  %v3364 = vmul.f32 %v3070, 0.0051020407
  %v3365 = vmul.f32 %v3074, 0.0051020407
  %v3366 = vmul.f32 %v3078, 0.0051020407
  %v3367 = vmul.f32 %v3082, 0.0051020407
  %v3368 = vmul.f32 %v3086, 0.0051020407
  %v3369 = vmul.f32 %v3090, 0.0051020407
  %v3370 = vmul.f32 %v3094, 0.0051020407
  %v3371 = vmul.f32 %v3098, 0.0051020407
  %v3372 = vmul.f32 %v3102, 0.0051020407
  %v3373 = vmul.f32 %v3106, 0.0051020407
  %v3374 = vmul.f32 %v3110, 0.0051020407
  %v3375 = vmul.f32 %v3111, %v3111
  %v3376 = vmul.f32 %v3112, %v3112
  %v3377 = vmul.f32 %v3113, %v3113
  %v3378 = vmul.f32 %v3114, %v3114
  %v3379 = vmul.f32 %v3115, %v3115
  %v3380 = vmul.f32 %v3116, %v3116
  %v3381 = vmul.f32 %v3117, %v3117
  %v3382 = vmul.f32 %v3118, %v3118
  %v3383 = vmul.f32 %v3119, %v3119
  %v3384 = vmul.f32 %v3120, %v3120
  %v3385 = vmul.f32 %v3121, %v3121
  %v3386 = vmul.f32 %v3122, %v3122
  %v3387 = vmul.f32 %v3123, %v3123
  %v3388 = vmul.f32 %v3124, %v3124
  %v3389 = vmul.f32 %v3125, %v3125
  %v3390 = vmul.f32 %v3126, %v3126
  %v3391 = vmul.f32 %v3127, %v3127
  %v3392 = vmul.f32 %v3128, %v3128
  %v3393 = vmul.f32 %v3129, %v3129
  %v3394 = vmul.f32 %v3130, %v3130
  %v3395 = vmul.f32 %v3131, %v3131
  %v3396 = vmul.f32 %v3132, %v3132
  %v3397 = vmul.f32 %v3133, %v3133
  %v3398 = vmul.f32 %v3134, %v3134
  %v3399 = vmul.f32 %v3135, %v3135
  %v3400 = vmul.f32 %v3136, %v3136
  %v3401 = vmul.f32 %v3137, %v3137
  %v3402 = vmul.f32 %v3138, %v3138
  %v3403 = vmul.f32 %v3139, %v3139
  %v3404 = vmul.f32 %v3140, %v3140
  %v3405 = vmul.f32 %v3141, %v3141
  %v3406 = vmul.f32 %v3142, %v3142
  %v3407 = vmul.f32 %v3143, %v3143
  %v3408 = vmul.f32 %v3144, %v3144
  %v3409 = vmul.f32 %v3145, %v3145
  %v3410 = vmul.f32 %v3146, %v3146
  %v3411 = vmul.f32 %v3147, %v3147
  %v3412 = vmul.f32 %v3148, %v3148
  %v3413 = vmul.f32 %v3149, %v3149
  %v3414 = vmul.f32 %v3150, %v3150
  %v3415 = vmul.f32 %v3151, %v3151
  %v3416 = vmul.f32 %v3152, %v3152
  %v3417 = vmul.f32 %v3153, %v3153
  %v3418 = vmul.f32 %v3154, %v3154
  %v3419 = vmul.f32 %v3155, %v3155
  %v3420 = vmul.f32 %v3156, %v3156
  %v3421 = vmul.f32 %v3157, %v3157
  %v3422 = vmul.f32 %v3158, %v3158
  %v3423 = vmul.f32 %v3159, %v3159
  %v3424 = vmul.f32 %v3160, %v3160
  %v3425 = vmul.f32 %v3161, %v3161
  %v3426 = vmul.f32 %v3162, %v3162
  %v3427 = vmul.f32 %v3163, %v3163
  %v3428 = vmul.f32 %v3164, %v3164
  %v3429 = vmul.f32 %v3165, %v3165
  %v3430 = vmul.f32 %v3166, %v3166
  %v3431 = vmul.f32 %v3167, %v3167
  %v3432 = vmul.f32 %v3168, %v3168
  %v3433 = vmul.f32 %v3169, %v3169
  %v3434 = vmul.f32 %v3170, %v3170
  %v3435 = vmul.f32 %v3171, %v3171
  %v3436 = vmul.f32 %v3172, %v3172
  %v3437 = vmul.f32 %v3173, %v3173
  %v3438 = vmul.f32 %v3174, %v3174
  %v3439 = vmul.f32 %v3175, %v3175
  %v3440 = vmul.f32 %v3176, %v3176
  %v3441 = vmul.f32 %v3177, %v3177
  %v3442 = vmul.f32 %v3178, %v3178
  %v3443 = vmul.f32 %v3179, %v3179
  %v3444 = vmul.f32 %v3180, %v3180
  %v3445 = vmul.f32 %v3181, %v3181
  %v3446 = vmul.f32 %v3182, %v3182
  %v3447 = vmul.f32 %v3183, %v3183
  %v3448 = vmul.f32 %v3184, %v3184
  %v3449 = vmul.f32 %v3185, %v3185
  %v3450 = vmul.f32 %v3186, %v3186
  %v3451 = vmul.f32 %v3187, %v3187
  %v3452 = vmul.f32 %v3188, %v3188
  %v3453 = vmul.f32 %v3189, %v3189
  %v3454 = vmul.f32 %v3190, %v3190
  %v3455 = vmul.f32 %v3191, %v3191
  %v3456 = vmul.f32 %v3192, %v3192
  %v3457 = vmul.f32 %v3193, %v3193
  %v3458 = vmul.f32 %v3194, %v3194
  %v3459 = vmul.f32 %v3195, %v3195
  %v3460 = vmul.f32 %v3196, %v3196
  %v3461 = vmul.f32 %v3197, %v3197
  %v3462 = vmul.f32 %v3198, %v3198
  %v3463 = vmul.f32 %v3199, %v3199
  %v3464 = vmul.f32 %v3200, %v3200
  %v3465 = vmul.f32 %v3201, %v3201
  %v3466 = vmul.f32 %v3202, %v3202
  %v3467 = vmul.f32 %v3203, %v3203
  %v3468 = vmul.f32 %v3204, %v3204
  %v3469 = vmul.f32 %v3205, %v3205
  %v3470 = vmul.f32 %v3206, %v3206
  %v3471 = vmul.f32 %v3207, %v3207
  %v3472 = vmul.f32 %v3208, %v3208
  %v3473 = vmul.f32 %v3209, %v3209
  %v3474 = vmul.f32 %v3210, %v3210
  %v3475 = vmul.f32 %v3211, %v3211
  %v3476 = vmul.f32 %v3212, %v3212
  %v3477 = vmul.f32 %v3213, %v3213
  %v3478 = vmul.f32 %v3214, %v3214
  %v3479 = vmul.f32 %v3215, %v3215
  %v3480 = vmul.f32 %v3216, %v3216
  %v3481 = vmul.f32 %v3217, %v3217
  %v3482 = vmul.f32 %v3218, %v3218
  %v3483 = vmul.f32 %v3219, %v3219
  %v3484 = vmul.f32 %v3220, %v3220
  %v3485 = vmul.f32 %v3221, %v3221
  %v3486 = vmul.f32 %v3222, %v3222
  %v3487 = vmul.f32 %v3223, %v3223
  %v3488 = vmul.f32 %v3224, %v3224
  %v3489 = vmul.f32 %v3225, %v3225
  %v3490 = vmul.f32 %v3226, %v3226
  %v3491 = vmul.f32 %v3227, %v3227
  %v3492 = vmul.f32 %v3228, %v3228
  %v3493 = vmul.f32 %v3229, %v3229
  %v3494 = vmul.f32 %v3230, %v3230
  %v3495 = vmul.f32 %v3231, %v3231
  %v3496 = vmul.f32 %v3232, %v3232
  %v3497 = vmul.f32 %v3233, %v3233
  %v3498 = vmul.f32 %v3234, %v3234
  %v3499 = vmul.f32 %v3235, %v3235
  %v3500 = vmul.f32 %v3236, %v3236
  %v3501 = vmul.f32 %v3237, %v3237
  %v3502 = vmul.f32 %v3238, %v3238
  %v3503 = vmul.f32 %v3239, %v3239
  %v3504 = vmul.f32 %v3240, %v3240
  %v3505 = vmul.f32 %v3241, %v3241
  %v3506 = vmul.f32 %v3242, %v3242
  %v3507 = vsub.f32 %v3243, %v3375
  %v3508 = vsub.f32 %v3244, %v3376
  %v3509 = vsub.f32 %v3245, %v3377
  %v3510 = vsub.f32 %v3246, %v3378
  %v3511 = vsub.f32 %v3247, %v3379
  %v3512 = vsub.f32 %v3248, %v3380
  %v3513 = vsub.f32 %v3249, %v3381
  %v3514 = vsub.f32 %v3250, %v3382
  %v3515 = vsub.f32 %v3251, %v3383
  %v3516 = vsub.f32 %v3252, %v3384
  %v3517 = vsub.f32 %v3253, %v3385
  %v3518 = vsub.f32 %v3254, %v3386
  %v3519 = vsub.f32 %v3255, %v3387
  %v3520 = vsub.f32 %v3256, %v3388
  %v3521 = vsub.f32 %v3257, %v3389
  %v3522 = vsub.f32 %v3258, %v3390
  %v3523 = vsub.f32 %v3259, %v3391
  %v3524 = vsub.f32 %v3260, %v3392
  %v3525 = vsub.f32 %v3261, %v3393
  %v3526 = vsub.f32 %v3262, %v3394
  %v3527 = vsub.f32 %v3263, %v3395
  %v3528 = vsub.f32 %v3264, %v3396
  %v3529 = vsub.f32 %v3265, %v3397
  %v3530 = vsub.f32 %v3266, %v3398
  %v3531 = vsub.f32 %v3267, %v3399
  %v3532 = vsub.f32 %v3268, %v3400
  %v3533 = vsub.f32 %v3269, %v3401
  %v3534 = vsub.f32 %v3270, %v3402
  %v3535 = vsub.f32 %v3271, %v3403
  %v3536 = vsub.f32 %v3272, %v3404
  %v3537 = vsub.f32 %v3273, %v3405
  %v3538 = vsub.f32 %v3274, %v3406
  %v3539 = vsub.f32 %v3275, %v3407
  %v3540 = vsub.f32 %v3276, %v3408
  %v3541 = vsub.f32 %v3277, %v3409
  %v3542 = vsub.f32 %v3278, %v3410
  %v3543 = vsub.f32 %v3279, %v3411
  %v3544 = vsub.f32 %v3280, %v3412
  %v3545 = vsub.f32 %v3281, %v3413
  %v3546 = vsub.f32 %v3282, %v3414
  %v3547 = vsub.f32 %v3283, %v3415
  %v3548 = vsub.f32 %v3284, %v3416
  %v3549 = vsub.f32 %v3285, %v3417
  %v3550 = vsub.f32 %v3286, %v3418
  %v3551 = vsub.f32 %v3287, %v3419
  %v3552 = vsub.f32 %v3288, %v3420
  %v3553 = vsub.f32 %v3289, %v3421
  %v3554 = vsub.f32 %v3290, %v3422
  %v3555 = vsub.f32 %v3291, %v3423
  %v3556 = vsub.f32 %v3292, %v3424
  %v3557 = vsub.f32 %v3293, %v3425
  %v3558 = vsub.f32 %v3294, %v3426
  %v3559 = vsub.f32 %v3295, %v3427
  %v3560 = vsub.f32 %v3296, %v3428
  %v3561 = vsub.f32 %v3297, %v3429
  %v3562 = vsub.f32 %v3298, %v3430
  %v3563 = vsub.f32 %v3299, %v3431
  %v3564 = vsub.f32 %v3300, %v3432
  %v3565 = vsub.f32 %v3301, %v3433
  %v3566 = vsub.f32 %v3302, %v3434
  %v3567 = vsub.f32 %v3303, %v3435
  %v3568 = vsub.f32 %v3304, %v3436
  %v3569 = vsub.f32 %v3305, %v3437
  %v3570 = vsub.f32 %v3306, %v3438
  %v3571 = vsub.f32 %v3307, %v3439
  %v3572 = vsub.f32 %v3308, %v3440
  %v3573 = vsub.f32 %v3309, %v3441
  %v3574 = vsub.f32 %v3310, %v3442
  %v3575 = vsub.f32 %v3311, %v3443
  %v3576 = vsub.f32 %v3312, %v3444
  %v3577 = vsub.f32 %v3313, %v3445
  %v3578 = vsub.f32 %v3314, %v3446
  %v3579 = vsub.f32 %v3315, %v3447
  %v3580 = vsub.f32 %v3316, %v3448
  %v3581 = vsub.f32 %v3317, %v3449
  %v3582 = vsub.f32 %v3318, %v3450
  %v3583 = vsub.f32 %v3319, %v3451
  %v3584 = vsub.f32 %v3320, %v3452
  %v3585 = vsub.f32 %v3321, %v3453
  %v3586 = vsub.f32 %v3322, %v3454
  %v3587 = vsub.f32 %v3323, %v3455
  %v3588 = vsub.f32 %v3324, %v3456
  %v3589 = vsub.f32 %v3325, %v3457
  %v3590 = vsub.f32 %v3326, %v3458
  %v3591 = vsub.f32 %v3327, %v3459
  %v3592 = vsub.f32 %v3328, %v3460
  %v3593 = vsub.f32 %v3329, %v3461
  %v3594 = vsub.f32 %v3330, %v3462
  %v3595 = vsub.f32 %v3331, %v3463
  %v3596 = vsub.f32 %v3332, %v3464
  %v3597 = vsub.f32 %v3333, %v3465
  %v3598 = vsub.f32 %v3334, %v3466
  %v3599 = vsub.f32 %v3335, %v3467
  %v3600 = vsub.f32 %v3336, %v3468
  %v3601 = vsub.f32 %v3337, %v3469
  %v3602 = vsub.f32 %v3338, %v3470
  %v3603 = vsub.f32 %v3339, %v3471
  %v3604 = vsub.f32 %v3340, %v3472
  %v3605 = vsub.f32 %v3341, %v3473
  %v3606 = vsub.f32 %v3342, %v3474
  %v3607 = vsub.f32 %v3343, %v3475
  %v3608 = vsub.f32 %v3344, %v3476
  %v3609 = vsub.f32 %v3345, %v3477
  %v3610 = vsub.f32 %v3346, %v3478
  %v3611 = vsub.f32 %v3347, %v3479
  %v3612 = vsub.f32 %v3348, %v3480
  %v3613 = vsub.f32 %v3349, %v3481
  %v3614 = vsub.f32 %v3350, %v3482
  %v3615 = vsub.f32 %v3351, %v3483
  %v3616 = vsub.f32 %v3352, %v3484
  %v3617 = vsub.f32 %v3353, %v3485
  %v3618 = vsub.f32 %v3354, %v3486
  %v3619 = vsub.f32 %v3355, %v3487
  %v3620 = vsub.f32 %v3356, %v3488
  %v3621 = vsub.f32 %v3357, %v3489
  %v3622 = vsub.f32 %v3358, %v3490
  %v3623 = vsub.f32 %v3359, %v3491
  %v3624 = vsub.f32 %v3360, %v3492
  %v3625 = vsub.f32 %v3361, %v3493
  %v3626 = vsub.f32 %v3362, %v3494
  %v3627 = vsub.f32 %v3363, %v3495
  %v3628 = vsub.f32 %v3364, %v3496
  %v3629 = vsub.f32 %v3365, %v3497
  %v3630 = vsub.f32 %v3366, %v3498
  %v3631 = vsub.f32 %v3367, %v3499
  %v3632 = vsub.f32 %v3368, %v3500
  %v3633 = vsub.f32 %v3369, %v3501
  %v3634 = vsub.f32 %v3370, %v3502
  %v3635 = vsub.f32 %v3371, %v3503
  %v3636 = vsub.f32 %v3372, %v3504
  %v3637 = vsub.f32 %v3373, %v3505
  %v3638 = vsub.f32 %v3374, %v3506
  %v3639 = vmax.f32 %v3507, 0.0
  %v3640 = vmax.f32 %v3508, 0.0
  %v3641 = vmax.f32 %v3509, 0.0
  %v3642 = vmax.f32 %v3510, 0.0
  %v3643 = vmax.f32 %v3511, 0.0
  %v3644 = vmax.f32 %v3512, 0.0
  %v3645 = vmax.f32 %v3513, 0.0
  %v3646 = vmax.f32 %v3514, 0.0
  %v3647 = vmax.f32 %v3515, 0.0
  %v3648 = vmax.f32 %v3516, 0.0
  %v3649 = vmax.f32 %v3517, 0.0
  %v3650 = vmax.f32 %v3518, 0.0
  %v3651 = vmax.f32 %v3519, 0.0
  %v3652 = vmax.f32 %v3520, 0.0
  %v3653 = vmax.f32 %v3521, 0.0
  %v3654 = vmax.f32 %v3522, 0.0
  %v3655 = vmax.f32 %v3523, 0.0
  %v3656 = vmax.f32 %v3524, 0.0
  %v3657 = vmax.f32 %v3525, 0.0
  %v3658 = vmax.f32 %v3526, 0.0
  %v3659 = vmax.f32 %v3527, 0.0
  %v3660 = vmax.f32 %v3528, 0.0
  %v3661 = vmax.f32 %v3529, 0.0
  %v3662 = vmax.f32 %v3530, 0.0
  %v3663 = vmax.f32 %v3531, 0.0
  %v3664 = vmax.f32 %v3532, 0.0
  %v3665 = vmax.f32 %v3533, 0.0
  %v3666 = vmax.f32 %v3534, 0.0
  %v3667 = vmax.f32 %v3535, 0.0
  %v3668 = vmax.f32 %v3536, 0.0
  %v3669 = vmax.f32 %v3537, 0.0
  %v3670 = vmax.f32 %v3538, 0.0
  %v3671 = vmax.f32 %v3539, 0.0
  %v3672 = vmax.f32 %v3540, 0.0
  %v3673 = vmax.f32 %v3541, 0.0
  %v3674 = vmax.f32 %v3542, 0.0
  %v3675 = vmax.f32 %v3543, 0.0
  %v3676 = vmax.f32 %v3544, 0.0
  %v3677 = vmax.f32 %v3545, 0.0
  %v3678 = vmax.f32 %v3546, 0.0
  %v3679 = vmax.f32 %v3547, 0.0
  %v3680 = vmax.f32 %v3548, 0.0
  %v3681 = vmax.f32 %v3549, 0.0
  %v3682 = vmax.f32 %v3550, 0.0
  %v3683 = vmax.f32 %v3551, 0.0
  %v3684 = vmax.f32 %v3552, 0.0
  %v3685 = vmax.f32 %v3553, 0.0
  %v3686 = vmax.f32 %v3554, 0.0
  %v3687 = vmax.f32 %v3555, 0.0
  %v3688 = vmax.f32 %v3556, 0.0
  %v3689 = vmax.f32 %v3557, 0.0
  %v3690 = vmax.f32 %v3558, 0.0
  %v3691 = vmax.f32 %v3559, 0.0
  %v3692 = vmax.f32 %v3560, 0.0
  %v3693 = vmax.f32 %v3561, 0.0
  %v3694 = vmax.f32 %v3562, 0.0
  %v3695 = vmax.f32 %v3563, 0.0
  %v3696 = vmax.f32 %v3564, 0.0
  %v3697 = vmax.f32 %v3565, 0.0
  %v3698 = vmax.f32 %v3566, 0.0
  %v3699 = vmax.f32 %v3567, 0.0
  %v3700 = vmax.f32 %v3568, 0.0
  %v3701 = vmax.f32 %v3569, 0.0
  %v3702 = vmax.f32 %v3570, 0.0
  %v3703 = vmax.f32 %v3571, 0.0
  %v3704 = vmax.f32 %v3572, 0.0
  %v3705 = vmax.f32 %v3573, 0.0
  %v3706 = vmax.f32 %v3574, 0.0
  %v3707 = vmax.f32 %v3575, 0.0
  %v3708 = vmax.f32 %v3576, 0.0
  %v3709 = vmax.f32 %v3577, 0.0
  %v3710 = vmax.f32 %v3578, 0.0
  %v3711 = vmax.f32 %v3579, 0.0
  %v3712 = vmax.f32 %v3580, 0.0
  %v3713 = vmax.f32 %v3581, 0.0
  %v3714 = vmax.f32 %v3582, 0.0
  %v3715 = vmax.f32 %v3583, 0.0
  %v3716 = vmax.f32 %v3584, 0.0
  %v3717 = vmax.f32 %v3585, 0.0
  %v3718 = vmax.f32 %v3586, 0.0
  %v3719 = vmax.f32 %v3587, 0.0
  %v3720 = vmax.f32 %v3588, 0.0
  %v3721 = vmax.f32 %v3589, 0.0
  %v3722 = vmax.f32 %v3590, 0.0
  %v3723 = vmax.f32 %v3591, 0.0
  %v3724 = vmax.f32 %v3592, 0.0
  %v3725 = vmax.f32 %v3593, 0.0
  %v3726 = vmax.f32 %v3594, 0.0
  %v3727 = vmax.f32 %v3595, 0.0
  %v3728 = vmax.f32 %v3596, 0.0
  %v3729 = vmax.f32 %v3597, 0.0
  %v3730 = vmax.f32 %v3598, 0.0
  %v3731 = vmax.f32 %v3599, 0.0
  %v3732 = vmax.f32 %v3600, 0.0
  %v3733 = vmax.f32 %v3601, 0.0
  %v3734 = vmax.f32 %v3602, 0.0
  %v3735 = vmax.f32 %v3603, 0.0
  %v3736 = vmax.f32 %v3604, 0.0
  %v3737 = vmax.f32 %v3605, 0.0
  %v3738 = vmax.f32 %v3606, 0.0
  %v3739 = vmax.f32 %v3607, 0.0
  %v3740 = vmax.f32 %v3608, 0.0
  %v3741 = vmax.f32 %v3609, 0.0
  %v3742 = vmax.f32 %v3610, 0.0
  %v3743 = vmax.f32 %v3611, 0.0
  %v3744 = vmax.f32 %v3612, 0.0
  %v3745 = vmax.f32 %v3613, 0.0
  %v3746 = vmax.f32 %v3614, 0.0
  %v3747 = vmax.f32 %v3615, 0.0
  %v3748 = vmax.f32 %v3616, 0.0
  %v3749 = vmax.f32 %v3617, 0.0
  %v3750 = vmax.f32 %v3618, 0.0
  %v3751 = vmax.f32 %v3619, 0.0
  %v3752 = vmax.f32 %v3620, 0.0
  %v3753 = vmax.f32 %v3621, 0.0
  %v3754 = vmax.f32 %v3622, 0.0
  %v3755 = vmax.f32 %v3623, 0.0
  %v3756 = vmax.f32 %v3624, 0.0
  %v3757 = vmax.f32 %v3625, 0.0
  %v3758 = vmax.f32 %v3626, 0.0
  %v3759 = vmax.f32 %v3627, 0.0
  %v3760 = vmax.f32 %v3628, 0.0
  %v3761 = vmax.f32 %v3629, 0.0
  %v3762 = vmax.f32 %v3630, 0.0
  %v3763 = vmax.f32 %v3631, 0.0
  %v3764 = vmax.f32 %v3632, 0.0
  %v3765 = vmax.f32 %v3633, 0.0
  %v3766 = vmax.f32 %v3634, 0.0
  %v3767 = vmax.f32 %v3635, 0.0
  %v3768 = vmax.f32 %v3636, 0.0
  %v3769 = vmax.f32 %v3637, 0.0
  %v3770 = vmax.f32 %v3638, 0.0
  %v3771 = vadd.f32 %v3639, 1e-05
  %v3772 = vadd.f32 %v3640, 1e-05
  %v3773 = vadd.f32 %v3641, 1e-05
  %v3774 = vadd.f32 %v3642, 1e-05
  %v3775 = vadd.f32 %v3643, 1e-05
  %v3776 = vadd.f32 %v3644, 1e-05
  %v3777 = vadd.f32 %v3645, 1e-05
  %v3778 = vadd.f32 %v3646, 1e-05
  %v3779 = vadd.f32 %v3647, 1e-05
  %v3780 = vadd.f32 %v3648, 1e-05
  %v3781 = vadd.f32 %v3649, 1e-05
  %v3782 = vadd.f32 %v3650, 1e-05
  %v3783 = vadd.f32 %v3651, 1e-05
  %v3784 = vadd.f32 %v3652, 1e-05
  %v3785 = vadd.f32 %v3653, 1e-05
  %v3786 = vadd.f32 %v3654, 1e-05
  %v3787 = vadd.f32 %v3655, 1e-05
  %v3788 = vadd.f32 %v3656, 1e-05
  %v3789 = vadd.f32 %v3657, 1e-05
  %v3790 = vadd.f32 %v3658, 1e-05
  %v3791 = vadd.f32 %v3659, 1e-05
  %v3792 = vadd.f32 %v3660, 1e-05
  %v3793 = vadd.f32 %v3661, 1e-05
  %v3794 = vadd.f32 %v3662, 1e-05
  %v3795 = vadd.f32 %v3663, 1e-05
  %v3796 = vadd.f32 %v3664, 1e-05
  %v3797 = vadd.f32 %v3665, 1e-05
  %v3798 = vadd.f32 %v3666, 1e-05
  %v3799 = vadd.f32 %v3667, 1e-05
  %v3800 = vadd.f32 %v3668, 1e-05
  %v3801 = vadd.f32 %v3669, 1e-05
  %v3802 = vadd.f32 %v3670, 1e-05
  %v3803 = vadd.f32 %v3671, 1e-05
  %v3804 = vadd.f32 %v3672, 1e-05
  %v3805 = vadd.f32 %v3673, 1e-05
  %v3806 = vadd.f32 %v3674, 1e-05
  %v3807 = vadd.f32 %v3675, 1e-05
  %v3808 = vadd.f32 %v3676, 1e-05
  %v3809 = vadd.f32 %v3677, 1e-05
  %v3810 = vadd.f32 %v3678, 1e-05
  %v3811 = vadd.f32 %v3679, 1e-05
  %v3812 = vadd.f32 %v3680, 1e-05
  %v3813 = vadd.f32 %v3681, 1e-05
  %v3814 = vadd.f32 %v3682, 1e-05
  %v3815 = vadd.f32 %v3683, 1e-05
  %v3816 = vadd.f32 %v3684, 1e-05
  %v3817 = vadd.f32 %v3685, 1e-05
  %v3818 = vadd.f32 %v3686, 1e-05
  %v3819 = vadd.f32 %v3687, 1e-05
  %v3820 = vadd.f32 %v3688, 1e-05
  %v3821 = vadd.f32 %v3689, 1e-05
  %v3822 = vadd.f32 %v3690, 1e-05
  %v3823 = vadd.f32 %v3691, 1e-05
  %v3824 = vadd.f32 %v3692, 1e-05
  %v3825 = vadd.f32 %v3693, 1e-05
  %v3826 = vadd.f32 %v3694, 1e-05
  %v3827 = vadd.f32 %v3695, 1e-05
  %v3828 = vadd.f32 %v3696, 1e-05
  %v3829 = vadd.f32 %v3697, 1e-05
  %v3830 = vadd.f32 %v3698, 1e-05
  %v3831 = vadd.f32 %v3699, 1e-05
  %v3832 = vadd.f32 %v3700, 1e-05
  %v3833 = vadd.f32 %v3701, 1e-05
  %v3834 = vadd.f32 %v3702, 1e-05
  %v3835 = vadd.f32 %v3703, 1e-05
  %v3836 = vadd.f32 %v3704, 1e-05
  %v3837 = vadd.f32 %v3705, 1e-05
  %v3838 = vadd.f32 %v3706, 1e-05
  %v3839 = vadd.f32 %v3707, 1e-05
  %v3840 = vadd.f32 %v3708, 1e-05
  %v3841 = vadd.f32 %v3709, 1e-05
  %v3842 = vadd.f32 %v3710, 1e-05
  %v3843 = vadd.f32 %v3711, 1e-05
  %v3844 = vadd.f32 %v3712, 1e-05
  %v3845 = vadd.f32 %v3713, 1e-05
  %v3846 = vadd.f32 %v3714, 1e-05
  %v3847 = vadd.f32 %v3715, 1e-05
  %v3848 = vadd.f32 %v3716, 1e-05
  %v3849 = vadd.f32 %v3717, 1e-05
  %v3850 = vadd.f32 %v3718, 1e-05
  %v3851 = vadd.f32 %v3719, 1e-05
  %v3852 = vadd.f32 %v3720, 1e-05
  %v3853 = vadd.f32 %v3721, 1e-05
  %v3854 = vadd.f32 %v3722, 1e-05
  %v3855 = vadd.f32 %v3723, 1e-05
  %v3856 = vadd.f32 %v3724, 1e-05
  %v3857 = vadd.f32 %v3725, 1e-05
  %v3858 = vadd.f32 %v3726, 1e-05
  %v3859 = vadd.f32 %v3727, 1e-05
  %v3860 = vadd.f32 %v3728, 1e-05
  %v3861 = vadd.f32 %v3729, 1e-05
  %v3862 = vadd.f32 %v3730, 1e-05
  %v3863 = vadd.f32 %v3731, 1e-05
  %v3864 = vadd.f32 %v3732, 1e-05
  %v3865 = vadd.f32 %v3733, 1e-05
  %v3866 = vadd.f32 %v3734, 1e-05
  %v3867 = vadd.f32 %v3735, 1e-05
  %v3868 = vadd.f32 %v3736, 1e-05
  %v3869 = vadd.f32 %v3737, 1e-05
  %v3870 = vadd.f32 %v3738, 1e-05
  %v3871 = vadd.f32 %v3739, 1e-05
  %v3872 = vadd.f32 %v3740, 1e-05
  %v3873 = vadd.f32 %v3741, 1e-05
  %v3874 = vadd.f32 %v3742, 1e-05
  %v3875 = vadd.f32 %v3743, 1e-05
  %v3876 = vadd.f32 %v3744, 1e-05
  %v3877 = vadd.f32 %v3745, 1e-05
  %v3878 = vadd.f32 %v3746, 1e-05
  %v3879 = vadd.f32 %v3747, 1e-05
  %v3880 = vadd.f32 %v3748, 1e-05
  %v3881 = vadd.f32 %v3749, 1e-05
  %v3882 = vadd.f32 %v3750, 1e-05
  %v3883 = vadd.f32 %v3751, 1e-05
  %v3884 = vadd.f32 %v3752, 1e-05
  %v3885 = vadd.f32 %v3753, 1e-05
  %v3886 = vadd.f32 %v3754, 1e-05
  %v3887 = vadd.f32 %v3755, 1e-05
  %v3888 = vadd.f32 %v3756, 1e-05
  %v3889 = vadd.f32 %v3757, 1e-05
  %v3890 = vadd.f32 %v3758, 1e-05
  %v3891 = vadd.f32 %v3759, 1e-05
  %v3892 = vadd.f32 %v3760, 1e-05
  %v3893 = vadd.f32 %v3761, 1e-05
  %v3894 = vadd.f32 %v3762, 1e-05
  %v3895 = vadd.f32 %v3763, 1e-05
  %v3896 = vadd.f32 %v3764, 1e-05
  %v3897 = vadd.f32 %v3765, 1e-05
  %v3898 = vadd.f32 %v3766, 1e-05
  %v3899 = vadd.f32 %v3767, 1e-05
  %v3900 = vadd.f32 %v3768, 1e-05
  %v3901 = vadd.f32 %v3769, 1e-05
  %v3902 = vadd.f32 %v3770, 1e-05
  %v3903 = vrsqrt.pop %v3771
  %v3904 = vrsqrt.pop %v3772
  %v3905 = vrsqrt.pop %v3773
  %v3906 = vrsqrt.pop %v3774
  %v3907 = vrsqrt.pop %v3775
  %v3908 = vrsqrt.pop %v3776
  %v3909 = vrsqrt.pop %v3777
  %v3910 = vrsqrt.pop %v3778
  %v3911 = vrsqrt.pop %v3779
  %v3912 = vrsqrt.pop %v3780
  %v3913 = vrsqrt.pop %v3781
  %v3914 = vrsqrt.pop %v3782
  %v3915 = vrsqrt.pop %v3783
  %v3916 = vrsqrt.pop %v3784
  %v3917 = vrsqrt.pop %v3785
  %v3918 = vrsqrt.pop %v3786
  %v3919 = vrsqrt.pop %v3787
  %v3920 = vrsqrt.pop %v3788
  %v3921 = vrsqrt.pop %v3789
  %v3922 = vrsqrt.pop %v3790
  %v3923 = vrsqrt.pop %v3791
  %v3924 = vrsqrt.pop %v3792
  %v3925 = vrsqrt.pop %v3793
  %v3926 = vrsqrt.pop %v3794
  %v3927 = vrsqrt.pop %v3795
  %v3928 = vrsqrt.pop %v3796
  %v3929 = vrsqrt.pop %v3797
  %v3930 = vrsqrt.pop %v3798
  %v3931 = vrsqrt.pop %v3799
  %v3932 = vrsqrt.pop %v3800
  %v3933 = vrsqrt.pop %v3801
  %v3934 = vrsqrt.pop %v3802
  %v3935 = vrsqrt.pop %v3803
  %v3936 = vrsqrt.pop %v3804
  %v3937 = vrsqrt.pop %v3805
  %v3938 = vrsqrt.pop %v3806
  %v3939 = vrsqrt.pop %v3807
  %v3940 = vrsqrt.pop %v3808
  %v3941 = vrsqrt.pop %v3809
  %v3942 = vrsqrt.pop %v3810
  %v3943 = vrsqrt.pop %v3811
  %v3944 = vrsqrt.pop %v3812
  %v3945 = vrsqrt.pop %v3813
  %v3946 = vrsqrt.pop %v3814
  %v3947 = vrsqrt.pop %v3815
  %v3948 = vrsqrt.pop %v3816
  %v3949 = vrsqrt.pop %v3817
  %v3950 = vrsqrt.pop %v3818
  %v3951 = vrsqrt.pop %v3819
  %v3952 = vrsqrt.pop %v3820
  %v3953 = vrsqrt.pop %v3821
  %v3954 = vrsqrt.pop %v3822
  %v3955 = vrsqrt.pop %v3823
  %v3956 = vrsqrt.pop %v3824
  %v3957 = vrsqrt.pop %v3825
  %v3958 = vrsqrt.pop %v3826
  %v3959 = vrsqrt.pop %v3827
  %v3960 = vrsqrt.pop %v3828
  %v3961 = vrsqrt.pop %v3829
  %v3962 = vrsqrt.pop %v3830
  %v3963 = vrsqrt.pop %v3831
  %v3964 = vrsqrt.pop %v3832
  %v3965 = vrsqrt.pop %v3833
  %v3966 = vrsqrt.pop %v3834
  %v3967 = vrsqrt.pop %v3835
  %v3968 = vrsqrt.pop %v3836
  %v3969 = vrsqrt.pop %v3837
  %v3970 = vrsqrt.pop %v3838
  %v3971 = vrsqrt.pop %v3839
  %v3972 = vrsqrt.pop %v3840
  %v3973 = vrsqrt.pop %v3841
  %v3974 = vrsqrt.pop %v3842
  %v3975 = vrsqrt.pop %v3843
  %v3976 = vrsqrt.pop %v3844
  %v3977 = vrsqrt.pop %v3845
  %v3978 = vrsqrt.pop %v3846
  %v3979 = vrsqrt.pop %v3847
  %v3980 = vrsqrt.pop %v3848
  %v3981 = vrsqrt.pop %v3849
  %v3982 = vrsqrt.pop %v3850
  %v3983 = vrsqrt.pop %v3851
  %v3984 = vrsqrt.pop %v3852
  %v3985 = vrsqrt.pop %v3853
  %v3986 = vrsqrt.pop %v3854
  %v3987 = vrsqrt.pop %v3855
  %v3988 = vrsqrt.pop %v3856
  %v3989 = vrsqrt.pop %v3857
  %v3990 = vrsqrt.pop %v3858
  %v3991 = vrsqrt.pop %v3859
  %v3992 = vrsqrt.pop %v3860
  %v3993 = vrsqrt.pop %v3861
  %v3994 = vrsqrt.pop %v3862
  %v3995 = vrsqrt.pop %v3863
  %v3996 = vrsqrt.pop %v3864
  %v3997 = vrsqrt.pop %v3865
  %v3998 = vrsqrt.pop %v3866
  %v3999 = vrsqrt.pop %v3867
  %v4000 = vrsqrt.pop %v3868
  %v4001 = vrsqrt.pop %v3869
  %v4002 = vrsqrt.pop %v3870
  %v4003 = vrsqrt.pop %v3871
  %v4004 = vrsqrt.pop %v3872
  %v4005 = vrsqrt.pop %v3873
  %v4006 = vrsqrt.pop %v3874
  %v4007 = vrsqrt.pop %v3875
  %v4008 = vrsqrt.pop %v3876
  %v4009 = vrsqrt.pop %v3877
  %v4010 = vrsqrt.pop %v3878
  %v4011 = vrsqrt.pop %v3879
  %v4012 = vrsqrt.pop %v3880
  %v4013 = vrsqrt.pop %v3881
  %v4014 = vrsqrt.pop %v3882
  %v4015 = vrsqrt.pop %v3883
  %v4016 = vrsqrt.pop %v3884
  %v4017 = vrsqrt.pop %v3885
  %v4018 = vrsqrt.pop %v3886
  %v4019 = vrsqrt.pop %v3887
  %v4020 = vrsqrt.pop %v3888
  %v4021 = vrsqrt.pop %v3889
  %v4022 = vrsqrt.pop %v3890
  %v4023 = vrsqrt.pop %v3891
  %v4024 = vrsqrt.pop %v3892
  %v4025 = vrsqrt.pop %v3893
  %v4026 = vrsqrt.pop %v3894
  %v4027 = vrsqrt.pop %v3895
  %v4028 = vrsqrt.pop %v3896
  %v4029 = vrsqrt.pop %v3897
  %v4030 = vrsqrt.pop %v3898
  %v4031 = vrsqrt.pop %v3899
  %v4032 = vrsqrt.pop %v3900
  %v4033 = vrsqrt.pop %v3901
  %v4034 = vrsqrt.pop %v3902
  %v4035 = vld [vmem:[%s3] sm:$0xff]
  %v4036 = vld [vmem:[%s3 + $0x8] sm:$0xff]
  %v4037 = vld [vmem:[%s3 + $0x10] sm:$0xff]
  %v4038 = vld [vmem:[%s3 + $0x18] sm:$0xff]
  %v4039 = vld [vmem:[%s3 + $0x20] sm:$0xff]
  %v4040 = vld [vmem:[%s3 + $0x28] sm:$0xff]
  %v4041 = vld [vmem:[%s3 + $0x30] sm:$0xff]
  %v4042 = vld [vmem:[%s3 + $0x38] sm:$0xff]
  %v4043 = vld [vmem:[%s3 + $0x40] sm:$0xff]
  %v4044 = vld [vmem:[%s3 + $0x48] sm:$0xff]
  %v4045 = vld [vmem:[%s3 + $0x50] sm:$0xff]
  %v4046 = vld [vmem:[%s3 + $0x58] sm:$0xff]
  %v4047 = vld [vmem:[%s3 + $0x60] sm:$0xff]
  %v4048 = vld [vmem:[%s3 + $0x68] sm:$0xff]
  %v4049 = vld [vmem:[%s3 + $0x70] sm:$0xff]
  %v4050 = vld [vmem:[%s3 + $0x78] sm:$0xff]
  %v4051 = vld [vmem:[%s3 + $0x80] sm:$0xff]
  %v4052 = vld [vmem:[%s3 + $0x88] sm:$0xff]
  %v4053 = vld [vmem:[%s3 + $0x90] sm:$0xff]
  %v4054 = vld [vmem:[%s3 + $0x98] sm:$0xff]
  %v4055 = vld [vmem:[%s3 + $0xa0] sm:$0xff]
  %v4056 = vld [vmem:[%s3 + $0xa8] sm:$0xff]
  %v4057 = vld [vmem:[%s3 + $0xb0] sm:$0xff]
  %v4058 = vld [vmem:[%s3 + $0xb8] sm:$0xff]
  %v4059 = vld [vmem:[%s3 + $0xc0] sm:$0xff]
  %v4060 = vld [vmem:[%s3 + $0xc8] sm:$0xff]
  %v4061 = vld [vmem:[%s3 + $0xd0] sm:$0xff]
  %v4062 = vld [vmem:[%s3 + $0xd8] sm:$0xff]
  %v4063 = vld [vmem:[%s3 + $0xe0] sm:$0xff]
  %v4064 = vld [vmem:[%s3 + $0xe8] sm:$0xff]
  %v4065 = vld [vmem:[%s3 + $0xf0] sm:$0xff]
  %v4066 = vld [vmem:[%s3 + $0xf8] sm:$0xff]
  %v4067 = vld [vmem:[%s3 + $0x100] sm:$0xff]
  %v4068 = vld [vmem:[%s3 + $0x108] sm:$0xff]
  %v4069 = vld [vmem:[%s3 + $0x110] sm:$0xff]
  %v4070 = vld [vmem:[%s3 + $0x118] sm:$0xff]
  %v4071 = vld [vmem:[%s3 + $0x120] sm:$0xff]
  %v4072 = vld [vmem:[%s3 + $0x128] sm:$0xff]
  %v4073 = vld [vmem:[%s3 + $0x130] sm:$0xff]
  %v4074 = vld [vmem:[%s3 + $0x138] sm:$0xff]
  %v4075 = vld [vmem:[%s3 + $0x140] sm:$0xff]
  %v4076 = vld [vmem:[%s3 + $0x148] sm:$0xff]
  %v4077 = vld [vmem:[%s3 + $0x150] sm:$0xff]
  %v4078 = vld [vmem:[%s3 + $0x158] sm:$0xff]
  %v4079 = vld [vmem:[%s3 + $0x160] sm:$0xff]
  %v4080 = vld [vmem:[%s3 + $0x168] sm:$0xff]
  %v4081 = vld [vmem:[%s3 + $0x170] sm:$0xff]
  %v4082 = vld [vmem:[%s3 + $0x178] sm:$0xff]
  %v4083 = vld [vmem:[%s3 + $0x180] sm:$0xff]
  %v4084 = vld [vmem:[%s3 + $0x188] sm:$0xff]
  %v4085 = vld [vmem:[%s3 + $0x190] sm:$0xff]
  %v4086 = vld [vmem:[%s3 + $0x198] sm:$0xff]
  %v4087 = vld [vmem:[%s3 + $0x1a0] sm:$0xff]
  %v4088 = vld [vmem:[%s3 + $0x1a8] sm:$0xff]
  %v4089 = vld [vmem:[%s3 + $0x1b0] sm:$0xff]
  %v4090 = vld [vmem:[%s3 + $0x1b8] sm:$0xff]
  %v4091 = vld [vmem:[%s3 + $0x1c0] sm:$0xff]
  %v4092 = vld [vmem:[%s3 + $0x1c8] sm:$0xff]
  %v4093 = vld [vmem:[%s3 + $0x1d0] sm:$0xff]
  %v4094 = vld [vmem:[%s3 + $0x1d8] sm:$0xff]
  %v4095 = vld [vmem:[%s3 + $0x1e0] sm:$0xff]
  %v4096 = vld [vmem:[%s3 + $0x1e8] sm:$0xff]
  %v4097 = vld [vmem:[%s3 + $0x1f0] sm:$0xff]
  %v4098 = vld [vmem:[%s3 + $0x1f8] sm:$0xff]
  %v4099 = vld [vmem:[%s3 + $0x200] sm:$0xff]
  %v4100 = vld [vmem:[%s3 + $0x208] sm:$0xff]
  %v4101 = vld [vmem:[%s3 + $0x210] sm:$0xff]
  %v4102 = vld [vmem:[%s3 + $0x218] sm:$0xff]
  %v4103 = vld [vmem:[%s3 + $0x220] sm:$0xff]
  %v4104 = vld [vmem:[%s3 + $0x228] sm:$0xff]
  %v4105 = vld [vmem:[%s3 + $0x230] sm:$0xff]
  %v4106 = vld [vmem:[%s3 + $0x238] sm:$0xff]
  %v4107 = vld [vmem:[%s3 + $0x240] sm:$0xff]
  %v4108 = vld [vmem:[%s3 + $0x248] sm:$0xff]
  %v4109 = vld [vmem:[%s3 + $0x250] sm:$0xff]
  %v4110 = vld [vmem:[%s3 + $0x258] sm:$0xff]
  %v4111 = vld [vmem:[%s3 + $0x260] sm:$0xff]
  %v4112 = vld [vmem:[%s3 + $0x268] sm:$0xff]
  %v4113 = vld [vmem:[%s3 + $0x270] sm:$0xff]
  %v4114 = vld [vmem:[%s3 + $0x278] sm:$0xff]
  %v4115 = vld [vmem:[%s3 + $0x280] sm:$0xff]
  %v4116 = vld [vmem:[%s3 + $0x288] sm:$0xff]
  %v4117 = vld [vmem:[%s3 + $0x290] sm:$0xff]
  %v4118 = vld [vmem:[%s3 + $0x298] sm:$0xff]
  %v4119 = vld [vmem:[%s3 + $0x2a0] sm:$0xff]
  %v4120 = vld [vmem:[%s3 + $0x2a8] sm:$0xff]
  %v4121 = vld [vmem:[%s3 + $0x2b0] sm:$0xff]
  %v4122 = vld [vmem:[%s3 + $0x2b8] sm:$0xff]
  %v4123 = vld [vmem:[%s3 + $0x2c0] sm:$0xff]
  %v4124 = vld [vmem:[%s3 + $0x2c8] sm:$0xff]
  %v4125 = vld [vmem:[%s3 + $0x2d0] sm:$0xff]
  %v4126 = vld [vmem:[%s3 + $0x2d8] sm:$0xff]
  %v4127 = vld [vmem:[%s3 + $0x2e0] sm:$0xff]
  %v4128 = vld [vmem:[%s3 + $0x2e8] sm:$0xff]
  %v4129 = vld [vmem:[%s3 + $0x2f0] sm:$0xff]
  %v4130 = vld [vmem:[%s3 + $0x2f8] sm:$0xff]
  %v4131 = vld [vmem:[%s3 + $0x300] sm:$0xff]
  %v4132 = vld [vmem:[%s3 + $0x308] sm:$0xff]
  %v4133 = vld [vmem:[%s3 + $0x310] sm:$0xff]
  %v4134 = vld [vmem:[%s3 + $0x318] sm:$0xff]
  %v4135 = vld [vmem:[%s3 + $0x320] sm:$0xff]
  %v4136 = vld [vmem:[%s3 + $0x328] sm:$0xff]
  %v4137 = vld [vmem:[%s3 + $0x330] sm:$0xff]
  %v4138 = vld [vmem:[%s3 + $0x338] sm:$0xff]
  %v4139 = vld [vmem:[%s3 + $0x340] sm:$0xff]
  %v4140 = vld [vmem:[%s3 + $0x348] sm:$0xff]
  %v4141 = vld [vmem:[%s3 + $0x350] sm:$0xff]
  %v4142 = vld [vmem:[%s3 + $0x358] sm:$0xff]
  %v4143 = vld [vmem:[%s3 + $0x360] sm:$0xff]
  %v4144 = vld [vmem:[%s3 + $0x368] sm:$0xff]
  %v4145 = vld [vmem:[%s3 + $0x370] sm:$0xff]
  %v4146 = vld [vmem:[%s3 + $0x378] sm:$0xff]
  %v4147 = vld [vmem:[%s3 + $0x380] sm:$0xff]
  %v4148 = vld [vmem:[%s3 + $0x388] sm:$0xff]
  %v4149 = vld [vmem:[%s3 + $0x390] sm:$0xff]
  %v4150 = vld [vmem:[%s3 + $0x398] sm:$0xff]
  %v4151 = vld [vmem:[%s3 + $0x3a0] sm:$0xff]
  %v4152 = vld [vmem:[%s3 + $0x3a8] sm:$0xff]
  %v4153 = vld [vmem:[%s3 + $0x3b0] sm:$0xff]
  %v4154 = vld [vmem:[%s3 + $0x3b8] sm:$0xff]
  %v4155 = vld [vmem:[%s3 + $0x3c0] sm:$0xff]
  %v4156 = vld [vmem:[%s3 + $0x3c8] sm:$0xff]
  %v4157 = vld [vmem:[%s3 + $0x3d0] sm:$0xff]
  %v4158 = vld [vmem:[%s3 + $0x3d8] sm:$0xff]
  %v4159 = vld [vmem:[%s3 + $0x3e0] sm:$0xff]
  %v4160 = vld [vmem:[%s3 + $0x3e8] sm:$0xff]
  %v4161 = vld [vmem:[%s3 + $0x3f0] sm:$0xff]
  %v4162 = vld [vmem:[%s3 + $0x3f8] sm:$0xff]
  %v4163 = vld [vmem:[%s3 + $0x400] sm:$0xff]
  %v4164 = vld [vmem:[%s3 + $0x408] sm:$0xff]
  %v4165 = vld [vmem:[%s3 + $0x410] sm:$0xff]
  %v4166 = vld [vmem:[%s3 + $0x418] sm:$0xff]
  %v4167 = vmul.f32 %v4035, %v3903
  %v4168 = vmul.f32 %v4036, %v3904
  %v4169 = vmul.f32 %v4037, %v3905
  %v4170 = vmul.f32 %v4038, %v3906
  %v4171 = vmul.f32 %v4039, %v3907
  %v4172 = vmul.f32 %v4040, %v3908
  %v4173 = vmul.f32 %v4041, %v3909
  %v4174 = vmul.f32 %v4042, %v3910
  %v4175 = vmul.f32 %v4043, %v3911
  %v4176 = vmul.f32 %v4044, %v3912
  %v4177 = vmul.f32 %v4045, %v3913
  %v4178 = vmul.f32 %v4046, %v3914
  %v4179 = vmul.f32 %v4047, %v3915
  %v4180 = vmul.f32 %v4048, %v3916
  %v4181 = vmul.f32 %v4049, %v3917
  %v4182 = vmul.f32 %v4050, %v3918
  %v4183 = vmul.f32 %v4051, %v3919
  %v4184 = vmul.f32 %v4052, %v3920
  %v4185 = vmul.f32 %v4053, %v3921
  %v4186 = vmul.f32 %v4054, %v3922
  %v4187 = vmul.f32 %v4055, %v3923
  %v4188 = vmul.f32 %v4056, %v3924
  %v4189 = vmul.f32 %v4057, %v3925
  %v4190 = vmul.f32 %v4058, %v3926
  %v4191 = vmul.f32 %v4059, %v3927
  %v4192 = vmul.f32 %v4060, %v3928
  %v4193 = vmul.f32 %v4061, %v3929
  %v4194 = vmul.f32 %v4062, %v3930
  %v4195 = vmul.f32 %v4063, %v3931
  %v4196 = vmul.f32 %v4064, %v3932
  %v4197 = vmul.f32 %v4065, %v3933
  %v4198 = vmul.f32 %v4066, %v3934
  %v4199 = vmul.f32 %v4067, %v3935
  %v4200 = vmul.f32 %v4068, %v3936
  %v4201 = vmul.f32 %v4069, %v3937
  %v4202 = vmul.f32 %v4070, %v3938
  %v4203 = vmul.f32 %v4071, %v3939
  %v4204 = vmul.f32 %v4072, %v3940
  %v4205 = vmul.f32 %v4073, %v3941
  %v4206 = vmul.f32 %v4074, %v3942
  %v4207 = vmul.f32 %v4075, %v3943
  %v4208 = vmul.f32 %v4076, %v3944
  %v4209 = vmul.f32 %v4077, %v3945
  %v4210 = vmul.f32 %v4078, %v3946
  %v4211 = vmul.f32 %v4079, %v3947
  %v4212 = vmul.f32 %v4080, %v3948
  %v4213 = vmul.f32 %v4081, %v3949
  %v4214 = vmul.f32 %v4082, %v3950
  %v4215 = vmul.f32 %v4083, %v3951
  %v4216 = vmul.f32 %v4084, %v3952
  %v4217 = vmul.f32 %v4085, %v3953
  %v4218 = vmul.f32 %v4086, %v3954
  %v4219 = vmul.f32 %v4087, %v3955
  %v4220 = vmul.f32 %v4088, %v3956
  %v4221 = vmul.f32 %v4089, %v3957
  %v4222 = vmul.f32 %v4090, %v3958
  %v4223 = vmul.f32 %v4091, %v3959
  %v4224 = vmul.f32 %v4092, %v3960
  %v4225 = vmul.f32 %v4093, %v3961
  %v4226 = vmul.f32 %v4094, %v3962
  %v4227 = vmul.f32 %v4095, %v3963
  %v4228 = vmul.f32 %v4096, %v3964
  %v4229 = vmul.f32 %v4097, %v3965
  %v4230 = vmul.f32 %v4098, %v3966
  %v4231 = vmul.f32 %v4099, %v3967
  %v4232 = vmul.f32 %v4100, %v3968
  %v4233 = vmul.f32 %v4101, %v3969
  %v4234 = vmul.f32 %v4102, %v3970
  %v4235 = vmul.f32 %v4103, %v3971
  %v4236 = vmul.f32 %v4104, %v3972
  %v4237 = vmul.f32 %v4105, %v3973
  %v4238 = vmul.f32 %v4106, %v3974
  %v4239 = vmul.f32 %v4107, %v3975
  %v4240 = vmul.f32 %v4108, %v3976
  %v4241 = vmul.f32 %v4109, %v3977
  %v4242 = vmul.f32 %v4110, %v3978
  %v4243 = vmul.f32 %v4111, %v3979
  %v4244 = vmul.f32 %v4112, %v3980
  %v4245 = vmul.f32 %v4113, %v3981
  %v4246 = vmul.f32 %v4114, %v3982
  %v4247 = vmul.f32 %v4115, %v3983
  %v4248 = vmul.f32 %v4116, %v3984
  %v4249 = vmul.f32 %v4117, %v3985
  %v4250 = vmul.f32 %v4118, %v3986
  %v4251 = vmul.f32 %v4119, %v3987
  %v4252 = vmul.f32 %v4120, %v3988
  %v4253 = vmul.f32 %v4121, %v3989
  %v4254 = vmul.f32 %v4122, %v3990
  %v4255 = vmul.f32 %v4123, %v3991
  %v4256 = vmul.f32 %v4124, %v3992
  %v4257 = vmul.f32 %v4125, %v3993
  %v4258 = vmul.f32 %v4126, %v3994
  %v4259 = vmul.f32 %v4127, %v3995
  %v4260 = vmul.f32 %v4128, %v3996
  %v4261 = vmul.f32 %v4129, %v3997
  %v4262 = vmul.f32 %v4130, %v3998
  %v4263 = vmul.f32 %v4131, %v3999
  %v4264 = vmul.f32 %v4132, %v4000
  %v4265 = vmul.f32 %v4133, %v4001
  %v4266 = vmul.f32 %v4134, %v4002
  %v4267 = vmul.f32 %v4135, %v4003
  %v4268 = vmul.f32 %v4136, %v4004
  %v4269 = vmul.f32 %v4137, %v4005
  %v4270 = vmul.f32 %v4138, %v4006
  %v4271 = vmul.f32 %v4139, %v4007
  %v4272 = vmul.f32 %v4140, %v4008
  %v4273 = vmul.f32 %v4141, %v4009
  %v4274 = vmul.f32 %v4142, %v4010
  %v4275 = vmul.f32 %v4143, %v4011
  %v4276 = vmul.f32 %v4144, %v4012
  %v4277 = vmul.f32 %v4145, %v4013
  %v4278 = vmul.f32 %v4146, %v4014
  %v4279 = vmul.f32 %v4147, %v4015
  %v4280 = vmul.f32 %v4148, %v4016
  %v4281 = vmul.f32 %v4149, %v4017
  %v4282 = vmul.f32 %v4150, %v4018
  %v4283 = vmul.f32 %v4151, %v4019
  %v4284 = vmul.f32 %v4152, %v4020
  %v4285 = vmul.f32 %v4153, %v4021
  %v4286 = vmul.f32 %v4154, %v4022
  %v4287 = vmul.f32 %v4155, %v4023
  %v4288 = vmul.f32 %v4156, %v4024
  %v4289 = vmul.f32 %v4157, %v4025
  %v4290 = vmul.f32 %v4158, %v4026
  %v4291 = vmul.f32 %v4159, %v4027
  %v4292 = vmul.f32 %v4160, %v4028
  %v4293 = vmul.f32 %v4161, %v4029
  %v4294 = vmul.f32 %v4162, %v4030
  %v4295 = vmul.f32 %v4163, %v4031
  %v4296 = vmul.f32 %v4164, %v4032
  %v4297 = vmul.f32 %v4165, %v4033
  %v4298 = vmul.f32 %v4166, %v4034
  %v4299 = vmul.f32 %v3111, %v4167
  %v4300 = vmul.f32 %v3112, %v4168
  %v4301 = vmul.f32 %v3113, %v4169
  %v4302 = vmul.f32 %v3114, %v4170
  %v4303 = vmul.f32 %v3115, %v4171
  %v4304 = vmul.f32 %v3116, %v4172
  %v4305 = vmul.f32 %v3117, %v4173
  %v4306 = vmul.f32 %v3118, %v4174
  %v4307 = vmul.f32 %v3119, %v4175
  %v4308 = vmul.f32 %v3120, %v4176
  %v4309 = vmul.f32 %v3121, %v4177
  %v4310 = vmul.f32 %v3122, %v4178
  %v4311 = vmul.f32 %v3123, %v4179
  %v4312 = vmul.f32 %v3124, %v4180
  %v4313 = vmul.f32 %v3125, %v4181
  %v4314 = vmul.f32 %v3126, %v4182
  %v4315 = vmul.f32 %v3127, %v4183
  %v4316 = vmul.f32 %v3128, %v4184
  %v4317 = vmul.f32 %v3129, %v4185
  %v4318 = vmul.f32 %v3130, %v4186
  %v4319 = vmul.f32 %v3131, %v4187
  %v4320 = vmul.f32 %v3132, %v4188
  %v4321 = vmul.f32 %v3133, %v4189
  %v4322 = vmul.f32 %v3134, %v4190
  %v4323 = vmul.f32 %v3135, %v4191
  %v4324 = vmul.f32 %v3136, %v4192
  %v4325 = vmul.f32 %v3137, %v4193
  %v4326 = vmul.f32 %v3138, %v4194
  %v4327 = vmul.f32 %v3139, %v4195
  %v4328 = vmul.f32 %v3140, %v4196
  %v4329 = vmul.f32 %v3141, %v4197
  %v4330 = vmul.f32 %v3142, %v4198
  %v4331 = vmul.f32 %v3143, %v4199
  %v4332 = vmul.f32 %v3144, %v4200
  %v4333 = vmul.f32 %v3145, %v4201
  %v4334 = vmul.f32 %v3146, %v4202
  %v4335 = vmul.f32 %v3147, %v4203
  %v4336 = vmul.f32 %v3148, %v4204
  %v4337 = vmul.f32 %v3149, %v4205
  %v4338 = vmul.f32 %v3150, %v4206
  %v4339 = vmul.f32 %v3151, %v4207
  %v4340 = vmul.f32 %v3152, %v4208
  %v4341 = vmul.f32 %v3153, %v4209
  %v4342 = vmul.f32 %v3154, %v4210
  %v4343 = vmul.f32 %v3155, %v4211
  %v4344 = vmul.f32 %v3156, %v4212
  %v4345 = vmul.f32 %v3157, %v4213
  %v4346 = vmul.f32 %v3158, %v4214
  %v4347 = vmul.f32 %v3159, %v4215
  %v4348 = vmul.f32 %v3160, %v4216
  %v4349 = vmul.f32 %v3161, %v4217
  %v4350 = vmul.f32 %v3162, %v4218
  %v4351 = vmul.f32 %v3163, %v4219
  %v4352 = vmul.f32 %v3164, %v4220
  %v4353 = vmul.f32 %v3165, %v4221
  %v4354 = vmul.f32 %v3166, %v4222
  %v4355 = vmul.f32 %v3167, %v4223
  %v4356 = vmul.f32 %v3168, %v4224
  %v4357 = vmul.f32 %v3169, %v4225
  %v4358 = vmul.f32 %v3170, %v4226
  %v4359 = vmul.f32 %v3171, %v4227
  %v4360 = vmul.f32 %v3172, %v4228
  %v4361 = vmul.f32 %v3173, %v4229
  %v4362 = vmul.f32 %v3174, %v4230
  %v4363 = vmul.f32 %v3175, %v4231
  %v4364 = vmul.f32 %v3176, %v4232
  %v4365 = vmul.f32 %v3177, %v4233
  %v4366 = vmul.f32 %v3178, %v4234
  %v4367 = vmul.f32 %v3179, %v4235
  %v4368 = vmul.f32 %v3180, %v4236
  %v4369 = vmul.f32 %v3181, %v4237
  %v4370 = vmul.f32 %v3182, %v4238
  %v4371 = vmul.f32 %v3183, %v4239
  %v4372 = vmul.f32 %v3184, %v4240
  %v4373 = vmul.f32 %v3185, %v4241
  %v4374 = vmul.f32 %v3186, %v4242
  %v4375 = vmul.f32 %v3187, %v4243
  %v4376 = vmul.f32 %v3188, %v4244
  %v4377 = vmul.f32 %v3189, %v4245
  %v4378 = vmul.f32 %v3190, %v4246
  %v4379 = vmul.f32 %v3191, %v4247
  %v4380 = vmul.f32 %v3192, %v4248
  %v4381 = vmul.f32 %v3193, %v4249
  %v4382 = vmul.f32 %v3194, %v4250
  %v4383 = vmul.f32 %v3195, %v4251
  %v4384 = vmul.f32 %v3196, %v4252
  %v4385 = vmul.f32 %v3197, %v4253
  %v4386 = vmul.f32 %v3198, %v4254
  %v4387 = vmul.f32 %v3199, %v4255
  %v4388 = vmul.f32 %v3200, %v4256
  %v4389 = vmul.f32 %v3201, %v4257
  %v4390 = vmul.f32 %v3202, %v4258
  %v4391 = vmul.f32 %v3203, %v4259
  %v4392 = vmul.f32 %v3204, %v4260
  %v4393 = vmul.f32 %v3205, %v4261
  %v4394 = vmul.f32 %v3206, %v4262
  %v4395 = vmul.f32 %v3207, %v4263
  %v4396 = vmul.f32 %v3208, %v4264
  %v4397 = vmul.f32 %v3209, %v4265
  %v4398 = vmul.f32 %v3210, %v4266
  %v4399 = vmul.f32 %v3211, %v4267
  %v4400 = vmul.f32 %v3212, %v4268
  %v4401 = vmul.f32 %v3213, %v4269
  %v4402 = vmul.f32 %v3214, %v4270
  %v4403 = vmul.f32 %v3215, %v4271
  %v4404 = vmul.f32 %v3216, %v4272
  %v4405 = vmul.f32 %v3217, %v4273
  %v4406 = vmul.f32 %v3218, %v4274
  %v4407 = vmul.f32 %v3219, %v4275
  %v4408 = vmul.f32 %v3220, %v4276
  %v4409 = vmul.f32 %v3221, %v4277
  %v4410 = vmul.f32 %v3222, %v4278
  %v4411 = vmul.f32 %v3223, %v4279
  %v4412 = vmul.f32 %v3224, %v4280
  %v4413 = vmul.f32 %v3225, %v4281
  %v4414 = vmul.f32 %v3226, %v4282
  %v4415 = vmul.f32 %v3227, %v4283
  %v4416 = vmul.f32 %v3228, %v4284
  %v4417 = vmul.f32 %v3229, %v4285
  %v4418 = vmul.f32 %v3230, %v4286
  %v4419 = vmul.f32 %v3231, %v4287
  %v4420 = vmul.f32 %v3232, %v4288
  %v4421 = vmul.f32 %v3233, %v4289
  %v4422 = vmul.f32 %v3234, %v4290
  %v4423 = vmul.f32 %v3235, %v4291
  %v4424 = vmul.f32 %v3236, %v4292
  %v4425 = vmul.f32 %v3237, %v4293
  %v4426 = vmul.f32 %v3238, %v4294
  %v4427 = vmul.f32 %v3239, %v4295
  %v4428 = vmul.f32 %v3240, %v4296
  %v4429 = vmul.f32 %v3241, %v4297
  %v4430 = vmul.f32 %v3242, %v4298
  %4563 = vrot.lane.b32.xlu0 %v4299, 1
  %v4564 = vpop.permute.xlu0 %4563
  %4565 = vrot.lane.b32.xlu0 %v4300, 1
  %v4566 = vpop.permute.xlu0 %4565
  %4567 = vrot.lane.b32.xlu0 %v4301, 1
  %v4568 = vpop.permute.xlu0 %4567
  %4569 = vrot.lane.b32.xlu0 %v4302, 1
  %v4570 = vpop.permute.xlu0 %4569
  %4571 = vrot.lane.b32.xlu0 %v4303, 1
  %v4572 = vpop.permute.xlu0 %4571
  %4573 = vrot.lane.b32.xlu0 %v4304, 1
  %v4574 = vpop.permute.xlu0 %4573
  %4575 = vrot.lane.b32.xlu0 %v4305, 1
  %v4576 = vpop.permute.xlu0 %4575
  %4577 = vrot.lane.b32.xlu0 %v4306, 1
  %v4578 = vpop.permute.xlu0 %4577
  %4579 = vrot.lane.b32.xlu0 %v4307, 1
  %v4580 = vpop.permute.xlu0 %4579
  %4581 = vrot.lane.b32.xlu0 %v4308, 1
  %v4582 = vpop.permute.xlu0 %4581
  %4583 = vrot.lane.b32.xlu0 %v4309, 1
  %v4584 = vpop.permute.xlu0 %4583
  %4585 = vrot.lane.b32.xlu0 %v4310, 1
  %v4586 = vpop.permute.xlu0 %4585
  %4587 = vrot.lane.b32.xlu0 %v4311, 1
  %v4588 = vpop.permute.xlu0 %4587
  %4589 = vrot.lane.b32.xlu0 %v4312, 1
  %v4590 = vpop.permute.xlu0 %4589
  %4591 = vrot.lane.b32.xlu0 %v4313, 1
  %v4592 = vpop.permute.xlu0 %4591
  %4593 = vrot.lane.b32.xlu0 %v4314, 1
  %v4594 = vpop.permute.xlu0 %4593
  %4595 = vrot.lane.b32.xlu0 %v4315, 1
  %v4596 = vpop.permute.xlu0 %4595
  %4597 = vrot.lane.b32.xlu0 %v4316, 1
  %v4598 = vpop.permute.xlu0 %4597
  %4599 = vrot.lane.b32.xlu0 %v4317, 1
  %v4600 = vpop.permute.xlu0 %4599
  %4601 = vrot.lane.b32.xlu0 %v4318, 1
  %v4602 = vpop.permute.xlu0 %4601
  %4603 = vrot.lane.b32.xlu0 %v4319, 1
  %v4604 = vpop.permute.xlu0 %4603
  %4605 = vrot.lane.b32.xlu0 %v4320, 1
  %v4606 = vpop.permute.xlu0 %4605
  %4607 = vrot.lane.b32.xlu0 %v4321, 1
  %v4608 = vpop.permute.xlu0 %4607
  %4609 = vrot.lane.b32.xlu0 %v4322, 1
  %v4610 = vpop.permute.xlu0 %4609
  %4611 = vrot.lane.b32.xlu0 %v4323, 1
  %v4612 = vpop.permute.xlu0 %4611
  %4613 = vrot.lane.b32.xlu0 %v4324, 1
  %v4614 = vpop.permute.xlu0 %4613
  %4615 = vrot.lane.b32.xlu0 %v4325, 1
  %v4616 = vpop.permute.xlu0 %4615
  %4617 = vrot.lane.b32.xlu0 %v4326, 1
  %v4618 = vpop.permute.xlu0 %4617
  %4619 = vrot.lane.b32.xlu0 %v4327, 1
  %v4620 = vpop.permute.xlu0 %4619
  %4621 = vrot.lane.b32.xlu0 %v4328, 1
  %v4622 = vpop.permute.xlu0 %4621
  %4623 = vrot.lane.b32.xlu0 %v4329, 1
  %v4624 = vpop.permute.xlu0 %4623
  %4625 = vrot.lane.b32.xlu0 %v4330, 1
  %v4626 = vpop.permute.xlu0 %4625
  %4627 = vrot.lane.b32.xlu0 %v4331, 1
  %v4628 = vpop.permute.xlu0 %4627
  %4629 = vrot.lane.b32.xlu0 %v4332, 1
  %v4630 = vpop.permute.xlu0 %4629
  %4631 = vrot.lane.b32.xlu0 %v4333, 1
  %v4632 = vpop.permute.xlu0 %4631
  %4633 = vrot.lane.b32.xlu0 %v4334, 1
  %v4634 = vpop.permute.xlu0 %4633
  %4635 = vrot.lane.b32.xlu0 %v4335, 1
  %v4636 = vpop.permute.xlu0 %4635
  %4637 = vrot.lane.b32.xlu0 %v4336, 1
  %v4638 = vpop.permute.xlu0 %4637
  %4639 = vrot.lane.b32.xlu0 %v4337, 1
  %v4640 = vpop.permute.xlu0 %4639
  %4641 = vrot.lane.b32.xlu0 %v4338, 1
  %v4642 = vpop.permute.xlu0 %4641
  %4643 = vrot.lane.b32.xlu0 %v4339, 1
  %v4644 = vpop.permute.xlu0 %4643
  %4645 = vrot.lane.b32.xlu0 %v4340, 1
  %v4646 = vpop.permute.xlu0 %4645
  %4647 = vrot.lane.b32.xlu0 %v4341, 1
  %v4648 = vpop.permute.xlu0 %4647
  %4649 = vrot.lane.b32.xlu0 %v4342, 1
  %v4650 = vpop.permute.xlu0 %4649
  %4651 = vrot.lane.b32.xlu0 %v4343, 1
  %v4652 = vpop.permute.xlu0 %4651
  %4653 = vrot.lane.b32.xlu0 %v4344, 1
  %v4654 = vpop.permute.xlu0 %4653
  %4655 = vrot.lane.b32.xlu0 %v4345, 1
  %v4656 = vpop.permute.xlu0 %4655
  %4657 = vrot.lane.b32.xlu0 %v4346, 1
  %v4658 = vpop.permute.xlu0 %4657
  %4659 = vrot.lane.b32.xlu0 %v4347, 1
  %v4660 = vpop.permute.xlu0 %4659
  %4661 = vrot.lane.b32.xlu0 %v4348, 1
  %v4662 = vpop.permute.xlu0 %4661
  %4663 = vrot.lane.b32.xlu0 %v4349, 1
  %v4664 = vpop.permute.xlu0 %4663
  %4665 = vrot.lane.b32.xlu0 %v4350, 1
  %v4666 = vpop.permute.xlu0 %4665
  %4667 = vrot.lane.b32.xlu0 %v4351, 1
  %v4668 = vpop.permute.xlu0 %4667
  %4669 = vrot.lane.b32.xlu0 %v4352, 1
  %v4670 = vpop.permute.xlu0 %4669
  %4671 = vrot.lane.b32.xlu0 %v4353, 1
  %v4672 = vpop.permute.xlu0 %4671
  %4673 = vrot.lane.b32.xlu0 %v4354, 1
  %v4674 = vpop.permute.xlu0 %4673
  %4675 = vrot.lane.b32.xlu0 %v4355, 1
  %v4676 = vpop.permute.xlu0 %4675
  %4677 = vrot.lane.b32.xlu0 %v4356, 1
  %v4678 = vpop.permute.xlu0 %4677
  %4679 = vrot.lane.b32.xlu0 %v4357, 1
  %v4680 = vpop.permute.xlu0 %4679
  %4681 = vrot.lane.b32.xlu0 %v4358, 1
  %v4682 = vpop.permute.xlu0 %4681
  %4683 = vrot.lane.b32.xlu0 %v4359, 1
  %v4684 = vpop.permute.xlu0 %4683
  %4685 = vrot.lane.b32.xlu0 %v4360, 1
  %v4686 = vpop.permute.xlu0 %4685
  %4687 = vrot.lane.b32.xlu0 %v4361, 1
  %v4688 = vpop.permute.xlu0 %4687
  %4689 = vrot.lane.b32.xlu0 %v4362, 1
  %v4690 = vpop.permute.xlu0 %4689
  %4691 = vrot.lane.b32.xlu0 %v4363, 1
  %v4692 = vpop.permute.xlu0 %4691
  %4693 = vrot.lane.b32.xlu0 %v4364, 1
  %v4694 = vpop.permute.xlu0 %4693
  %4695 = vrot.lane.b32.xlu0 %v4365, 1
  %v4696 = vpop.permute.xlu0 %4695
  %4697 = vrot.lane.b32.xlu0 %v4366, 1
  %v4698 = vpop.permute.xlu0 %4697
  %4699 = vrot.lane.b32.xlu0 %v4367, 1
  %v4700 = vpop.permute.xlu0 %4699
  %4701 = vrot.lane.b32.xlu0 %v4368, 1
  %v4702 = vpop.permute.xlu0 %4701
  %4703 = vrot.lane.b32.xlu0 %v4369, 1
  %v4704 = vpop.permute.xlu0 %4703
  %4705 = vrot.lane.b32.xlu0 %v4370, 1
  %v4706 = vpop.permute.xlu0 %4705
  %4707 = vrot.lane.b32.xlu0 %v4371, 1
  %v4708 = vpop.permute.xlu0 %4707
  %4709 = vrot.lane.b32.xlu0 %v4372, 1
  %v4710 = vpop.permute.xlu0 %4709
  %4711 = vrot.lane.b32.xlu0 %v4373, 1
  %v4712 = vpop.permute.xlu0 %4711
  %4713 = vrot.lane.b32.xlu0 %v4374, 1
  %v4714 = vpop.permute.xlu0 %4713
  %4715 = vrot.lane.b32.xlu0 %v4375, 1
  %v4716 = vpop.permute.xlu0 %4715
  %4717 = vrot.lane.b32.xlu0 %v4376, 1
  %v4718 = vpop.permute.xlu0 %4717
  %4719 = vrot.lane.b32.xlu0 %v4377, 1
  %v4720 = vpop.permute.xlu0 %4719
  %4721 = vrot.lane.b32.xlu0 %v4378, 1
  %v4722 = vpop.permute.xlu0 %4721
  %4723 = vrot.lane.b32.xlu0 %v4379, 1
  %v4724 = vpop.permute.xlu0 %4723
  %4725 = vrot.lane.b32.xlu0 %v4380, 1
  %v4726 = vpop.permute.xlu0 %4725
  %4727 = vrot.lane.b32.xlu0 %v4381, 1
  %v4728 = vpop.permute.xlu0 %4727
  %4729 = vrot.lane.b32.xlu0 %v4382, 1
  %v4730 = vpop.permute.xlu0 %4729
  %4731 = vrot.lane.b32.xlu0 %v4383, 1
  %v4732 = vpop.permute.xlu0 %4731
  %4733 = vrot.lane.b32.xlu0 %v4384, 1
  %v4734 = vpop.permute.xlu0 %4733
  %4735 = vrot.lane.b32.xlu0 %v4385, 1
  %v4736 = vpop.permute.xlu0 %4735
  %4737 = vrot.lane.b32.xlu0 %v4386, 1
  %v4738 = vpop.permute.xlu0 %4737
  %4739 = vrot.lane.b32.xlu0 %v4387, 1
  %v4740 = vpop.permute.xlu0 %4739
  %4741 = vrot.lane.b32.xlu0 %v4388, 1
  %v4742 = vpop.permute.xlu0 %4741
  %4743 = vrot.lane.b32.xlu0 %v4389, 1
  %v4744 = vpop.permute.xlu0 %4743
  %4745 = vrot.lane.b32.xlu0 %v4390, 1
  %v4746 = vpop.permute.xlu0 %4745
  %4747 = vrot.lane.b32.xlu0 %v4391, 1
  %v4748 = vpop.permute.xlu0 %4747
  %4749 = vrot.lane.b32.xlu0 %v4392, 1
  %v4750 = vpop.permute.xlu0 %4749
  %4751 = vrot.lane.b32.xlu0 %v4393, 1
  %v4752 = vpop.permute.xlu0 %4751
  %4753 = vrot.lane.b32.xlu0 %v4394, 1
  %v4754 = vpop.permute.xlu0 %4753
  %4755 = vrot.lane.b32.xlu0 %v4395, 1
  %v4756 = vpop.permute.xlu0 %4755
  %4757 = vrot.lane.b32.xlu0 %v4396, 1
  %v4758 = vpop.permute.xlu0 %4757
  %4759 = vrot.lane.b32.xlu0 %v4397, 1
  %v4760 = vpop.permute.xlu0 %4759
  %4761 = vrot.lane.b32.xlu0 %v4398, 1
  %v4762 = vpop.permute.xlu0 %4761
  %4763 = vrot.lane.b32.xlu0 %v4399, 1
  %v4764 = vpop.permute.xlu0 %4763
  %4765 = vrot.lane.b32.xlu0 %v4400, 1
  %v4766 = vpop.permute.xlu0 %4765
  %4767 = vrot.lane.b32.xlu0 %v4401, 1
  %v4768 = vpop.permute.xlu0 %4767
  %4769 = vrot.lane.b32.xlu0 %v4402, 1
  %v4770 = vpop.permute.xlu0 %4769
  %4771 = vrot.lane.b32.xlu0 %v4403, 1
  %v4772 = vpop.permute.xlu0 %4771
  %4773 = vrot.lane.b32.xlu0 %v4404, 1
  %v4774 = vpop.permute.xlu0 %4773
  %4775 = vrot.lane.b32.xlu0 %v4405, 1
  %v4776 = vpop.permute.xlu0 %4775
  %4777 = vrot.lane.b32.xlu0 %v4406, 1
  %v4778 = vpop.permute.xlu0 %4777
  %4779 = vrot.lane.b32.xlu0 %v4407, 1
  %v4780 = vpop.permute.xlu0 %4779
  %4781 = vrot.lane.b32.xlu0 %v4408, 1
  %v4782 = vpop.permute.xlu0 %4781
  %4783 = vrot.lane.b32.xlu0 %v4409, 1
  %v4784 = vpop.permute.xlu0 %4783
  %4785 = vrot.lane.b32.xlu0 %v4410, 1
  %v4786 = vpop.permute.xlu0 %4785
  %4787 = vrot.lane.b32.xlu0 %v4411, 1
  %v4788 = vpop.permute.xlu0 %4787
  %4789 = vrot.lane.b32.xlu0 %v4412, 1
  %v4790 = vpop.permute.xlu0 %4789
  %4791 = vrot.lane.b32.xlu0 %v4413, 1
  %v4792 = vpop.permute.xlu0 %4791
  %4793 = vrot.lane.b32.xlu0 %v4414, 1
  %v4794 = vpop.permute.xlu0 %4793
  %4795 = vrot.lane.b32.xlu0 %v4415, 1
  %v4796 = vpop.permute.xlu0 %4795
  %4797 = vrot.lane.b32.xlu0 %v4416, 1
  %v4798 = vpop.permute.xlu0 %4797
  %4799 = vrot.lane.b32.xlu0 %v4417, 1
  %v4800 = vpop.permute.xlu0 %4799
  %4801 = vrot.lane.b32.xlu0 %v4418, 1
  %v4802 = vpop.permute.xlu0 %4801
  %4803 = vrot.lane.b32.xlu0 %v4419, 1
  %v4804 = vpop.permute.xlu0 %4803
  %4805 = vrot.lane.b32.xlu0 %v4420, 1
  %v4806 = vpop.permute.xlu0 %4805
  %4807 = vrot.lane.b32.xlu0 %v4421, 1
  %v4808 = vpop.permute.xlu0 %4807
  %4809 = vrot.lane.b32.xlu0 %v4422, 1
  %v4810 = vpop.permute.xlu0 %4809
  %4811 = vrot.lane.b32.xlu0 %v4423, 1
  %v4812 = vpop.permute.xlu0 %4811
  %4813 = vrot.lane.b32.xlu0 %v4424, 1
  %v4814 = vpop.permute.xlu0 %4813
  %4815 = vrot.lane.b32.xlu0 %v4425, 1
  %v4816 = vpop.permute.xlu0 %4815
  %4817 = vrot.lane.b32.xlu0 %v4426, 1
  %v4818 = vpop.permute.xlu0 %4817
  %4819 = vrot.lane.b32.xlu0 %v4427, 1
  %v4820 = vpop.permute.xlu0 %4819
  %4821 = vrot.lane.b32.xlu0 %v4428, 1
  %v4822 = vpop.permute.xlu0 %4821
  %4823 = vrot.lane.b32.xlu0 %v4429, 1
  %v4824 = vpop.permute.xlu0 %4823
  %4825 = vrot.lane.b32.xlu0 %v4430, 1
  %v4826 = vpop.permute.xlu0 %4825
  %v4959 = vsub.f32 %v4035, %v4564
  %v4960 = vsub.f32 %v4036, %v4566
  %v4961 = vsub.f32 %v4037, %v4568
  %v4962 = vsub.f32 %v4038, %v4570
  %v4963 = vsub.f32 %v4039, %v4572
  %v4964 = vsub.f32 %v4040, %v4574
  %v4965 = vsub.f32 %v4041, %v4576
  %v4966 = vsub.f32 %v4042, %v4578
  %v4967 = vsub.f32 %v4043, %v4580
  %v4968 = vsub.f32 %v4044, %v4582
  %v4969 = vsub.f32 %v4045, %v4584
  %v4970 = vsub.f32 %v4046, %v4586
  %v4971 = vsub.f32 %v4047, %v4588
  %v4972 = vsub.f32 %v4048, %v4590
  %v4973 = vsub.f32 %v4049, %v4592
  %v4974 = vsub.f32 %v4050, %v4594
  %v4975 = vsub.f32 %v4051, %v4596
  %v4976 = vsub.f32 %v4052, %v4598
  %v4977 = vsub.f32 %v4053, %v4600
  %v4978 = vsub.f32 %v4054, %v4602
  %v4979 = vsub.f32 %v4055, %v4604
  %v4980 = vsub.f32 %v4056, %v4606
  %v4981 = vsub.f32 %v4057, %v4608
  %v4982 = vsub.f32 %v4058, %v4610
  %v4983 = vsub.f32 %v4059, %v4612
  %v4984 = vsub.f32 %v4060, %v4614
  %v4985 = vsub.f32 %v4061, %v4616
  %v4986 = vsub.f32 %v4062, %v4618
  %v4987 = vsub.f32 %v4063, %v4620
  %v4988 = vsub.f32 %v4064, %v4622
  %v4989 = vsub.f32 %v4065, %v4624
  %v4990 = vsub.f32 %v4066, %v4626
  %v4991 = vsub.f32 %v4067, %v4628
  %v4992 = vsub.f32 %v4068, %v4630
  %v4993 = vsub.f32 %v4069, %v4632
  %v4994 = vsub.f32 %v4070, %v4634
  %v4995 = vsub.f32 %v4071, %v4636
  %v4996 = vsub.f32 %v4072, %v4638
  %v4997 = vsub.f32 %v4073, %v4640
  %v4998 = vsub.f32 %v4074, %v4642
  %v4999 = vsub.f32 %v4075, %v4644
  %v5000 = vsub.f32 %v4076, %v4646
  %v5001 = vsub.f32 %v4077, %v4648
  %v5002 = vsub.f32 %v4078, %v4650
  %v5003 = vsub.f32 %v4079, %v4652
  %v5004 = vsub.f32 %v4080, %v4654
  %v5005 = vsub.f32 %v4081, %v4656
  %v5006 = vsub.f32 %v4082, %v4658
  %v5007 = vsub.f32 %v4083, %v4660
  %v5008 = vsub.f32 %v4084, %v4662
  %v5009 = vsub.f32 %v4085, %v4664
  %v5010 = vsub.f32 %v4086, %v4666
  %v5011 = vsub.f32 %v4087, %v4668
  %v5012 = vsub.f32 %v4088, %v4670
  %v5013 = vsub.f32 %v4089, %v4672
  %v5014 = vsub.f32 %v4090, %v4674
  %v5015 = vsub.f32 %v4091, %v4676
  %v5016 = vsub.f32 %v4092, %v4678
  %v5017 = vsub.f32 %v4093, %v4680
  %v5018 = vsub.f32 %v4094, %v4682
  %v5019 = vsub.f32 %v4095, %v4684
  %v5020 = vsub.f32 %v4096, %v4686
  %v5021 = vsub.f32 %v4097, %v4688
  %v5022 = vsub.f32 %v4098, %v4690
  %v5023 = vsub.f32 %v4099, %v4692
  %v5024 = vsub.f32 %v4100, %v4694
  %v5025 = vsub.f32 %v4101, %v4696
  %v5026 = vsub.f32 %v4102, %v4698
  %v5027 = vsub.f32 %v4103, %v4700
  %v5028 = vsub.f32 %v4104, %v4702
  %v5029 = vsub.f32 %v4105, %v4704
  %v5030 = vsub.f32 %v4106, %v4706
  %v5031 = vsub.f32 %v4107, %v4708
  %v5032 = vsub.f32 %v4108, %v4710
  %v5033 = vsub.f32 %v4109, %v4712
  %v5034 = vsub.f32 %v4110, %v4714
  %v5035 = vsub.f32 %v4111, %v4716
  %v5036 = vsub.f32 %v4112, %v4718
  %v5037 = vsub.f32 %v4113, %v4720
  %v5038 = vsub.f32 %v4114, %v4722
  %v5039 = vsub.f32 %v4115, %v4724
  %v5040 = vsub.f32 %v4116, %v4726
  %v5041 = vsub.f32 %v4117, %v4728
  %v5042 = vsub.f32 %v4118, %v4730
  %v5043 = vsub.f32 %v4119, %v4732
  %v5044 = vsub.f32 %v4120, %v4734
  %v5045 = vsub.f32 %v4121, %v4736
  %v5046 = vsub.f32 %v4122, %v4738
  %v5047 = vsub.f32 %v4123, %v4740
  %v5048 = vsub.f32 %v4124, %v4742
  %v5049 = vsub.f32 %v4125, %v4744
  %v5050 = vsub.f32 %v4126, %v4746
  %v5051 = vsub.f32 %v4127, %v4748
  %v5052 = vsub.f32 %v4128, %v4750
  %v5053 = vsub.f32 %v4129, %v4752
  %v5054 = vsub.f32 %v4130, %v4754
  %v5055 = vsub.f32 %v4131, %v4756
  %v5056 = vsub.f32 %v4132, %v4758
  %v5057 = vsub.f32 %v4133, %v4760
  %v5058 = vsub.f32 %v4134, %v4762
  %v5059 = vsub.f32 %v4135, %v4764
  %v5060 = vsub.f32 %v4136, %v4766
  %v5061 = vsub.f32 %v4137, %v4768
  %v5062 = vsub.f32 %v4138, %v4770
  %v5063 = vsub.f32 %v4139, %v4772
  %v5064 = vsub.f32 %v4140, %v4774
  %v5065 = vsub.f32 %v4141, %v4776
  %v5066 = vsub.f32 %v4142, %v4778
  %v5067 = vsub.f32 %v4143, %v4780
  %v5068 = vsub.f32 %v4144, %v4782
  %v5069 = vsub.f32 %v4145, %v4784
  %v5070 = vsub.f32 %v4146, %v4786
  %v5071 = vsub.f32 %v4147, %v4788
  %v5072 = vsub.f32 %v4148, %v4790
  %v5073 = vsub.f32 %v4149, %v4792
  %v5074 = vsub.f32 %v4150, %v4794
  %v5075 = vsub.f32 %v4151, %v4796
  %v5076 = vsub.f32 %v4152, %v4798
  %v5077 = vsub.f32 %v4153, %v4800
  %v5078 = vsub.f32 %v4154, %v4802
  %v5079 = vsub.f32 %v4155, %v4804
  %v5080 = vsub.f32 %v4156, %v4806
  %v5081 = vsub.f32 %v4157, %v4808
  %v5082 = vsub.f32 %v4158, %v4810
  %v5083 = vsub.f32 %v4159, %v4812
  %v5084 = vsub.f32 %v4160, %v4814
  %v5085 = vsub.f32 %v4161, %v4816
  %v5086 = vsub.f32 %v4162, %v4818
  %v5087 = vsub.f32 %v4163, %v4820
  %v5088 = vsub.f32 %v4164, %v4822
  %v5089 = vsub.f32 %v4165, %v4824
  %v5090 = vsub.f32 %v4166, %v4826
  %5092 = vset.pattern.permute.xlu0 0
  %5093 = vperm.xlu0 %5092, %v4167
  %v5094 = vpop.permute.xlu0 %5093
  %5097 = vset.pattern.permute.xlu0 0
  %5098 = vperm.xlu0 %5097, %v4168
  %v5099 = vpop.permute.xlu0 %5098
  %5102 = vset.pattern.permute.xlu0 0
  %5103 = vperm.xlu0 %5102, %v4169
  %v5104 = vpop.permute.xlu0 %5103
  %5107 = vset.pattern.permute.xlu0 0
  %5108 = vperm.xlu0 %5107, %v4170
  %v5109 = vpop.permute.xlu0 %5108
  %5112 = vset.pattern.permute.xlu0 0
  %5113 = vperm.xlu0 %5112, %v4171
  %v5114 = vpop.permute.xlu0 %5113
  %5117 = vset.pattern.permute.xlu0 0
  %5118 = vperm.xlu0 %5117, %v4172
  %v5119 = vpop.permute.xlu0 %5118
  %5122 = vset.pattern.permute.xlu0 0
  %5123 = vperm.xlu0 %5122, %v4173
  %v5124 = vpop.permute.xlu0 %5123
  %5127 = vset.pattern.permute.xlu0 0
  %5128 = vperm.xlu0 %5127, %v4174
  %v5129 = vpop.permute.xlu0 %5128
  %5132 = vset.pattern.permute.xlu0 0
  %5133 = vperm.xlu0 %5132, %v4175
  %v5134 = vpop.permute.xlu0 %5133
  %5137 = vset.pattern.permute.xlu0 0
  %5138 = vperm.xlu0 %5137, %v4176
  %v5139 = vpop.permute.xlu0 %5138
  %5142 = vset.pattern.permute.xlu0 0
  %5143 = vperm.xlu0 %5142, %v4177
  %v5144 = vpop.permute.xlu0 %5143
  %5147 = vset.pattern.permute.xlu0 0
  %5148 = vperm.xlu0 %5147, %v4178
  %v5149 = vpop.permute.xlu0 %5148
  %5152 = vset.pattern.permute.xlu0 0
  %5153 = vperm.xlu0 %5152, %v4179
  %v5154 = vpop.permute.xlu0 %5153
  %5157 = vset.pattern.permute.xlu0 0
  %5158 = vperm.xlu0 %5157, %v4180
  %v5159 = vpop.permute.xlu0 %5158
  %5162 = vset.pattern.permute.xlu0 0
  %5163 = vperm.xlu0 %5162, %v4181
  %v5164 = vpop.permute.xlu0 %5163
  %5167 = vset.pattern.permute.xlu0 0
  %5168 = vperm.xlu0 %5167, %v4182
  %v5169 = vpop.permute.xlu0 %5168
  %5172 = vset.pattern.permute.xlu0 0
  %5173 = vperm.xlu0 %5172, %v4183
  %v5174 = vpop.permute.xlu0 %5173
  %5177 = vset.pattern.permute.xlu0 0
  %5178 = vperm.xlu0 %5177, %v4184
  %v5179 = vpop.permute.xlu0 %5178
  %5182 = vset.pattern.permute.xlu0 0
  %5183 = vperm.xlu0 %5182, %v4185
  %v5184 = vpop.permute.xlu0 %5183
  %5187 = vset.pattern.permute.xlu0 0
  %5188 = vperm.xlu0 %5187, %v4186
  %v5189 = vpop.permute.xlu0 %5188
  %5192 = vset.pattern.permute.xlu0 0
  %5193 = vperm.xlu0 %5192, %v4187
  %v5194 = vpop.permute.xlu0 %5193
  %5197 = vset.pattern.permute.xlu0 0
  %5198 = vperm.xlu0 %5197, %v4188
  %v5199 = vpop.permute.xlu0 %5198
  %5202 = vset.pattern.permute.xlu0 0
  %5203 = vperm.xlu0 %5202, %v4189
  %v5204 = vpop.permute.xlu0 %5203
  %5207 = vset.pattern.permute.xlu0 0
  %5208 = vperm.xlu0 %5207, %v4190
  %v5209 = vpop.permute.xlu0 %5208
  %5212 = vset.pattern.permute.xlu0 0
  %5213 = vperm.xlu0 %5212, %v4191
  %v5214 = vpop.permute.xlu0 %5213
  %5217 = vset.pattern.permute.xlu0 0
  %5218 = vperm.xlu0 %5217, %v4192
  %v5219 = vpop.permute.xlu0 %5218
  %5222 = vset.pattern.permute.xlu0 0
  %5223 = vperm.xlu0 %5222, %v4193
  %v5224 = vpop.permute.xlu0 %5223
  %5227 = vset.pattern.permute.xlu0 0
  %5228 = vperm.xlu0 %5227, %v4194
  %v5229 = vpop.permute.xlu0 %5228
  %5232 = vset.pattern.permute.xlu0 0
  %5233 = vperm.xlu0 %5232, %v4195
  %v5234 = vpop.permute.xlu0 %5233
  %5237 = vset.pattern.permute.xlu0 0
  %5238 = vperm.xlu0 %5237, %v4196
  %v5239 = vpop.permute.xlu0 %5238
  %5242 = vset.pattern.permute.xlu0 0
  %5243 = vperm.xlu0 %5242, %v4197
  %v5244 = vpop.permute.xlu0 %5243
  %5247 = vset.pattern.permute.xlu0 0
  %5248 = vperm.xlu0 %5247, %v4198
  %v5249 = vpop.permute.xlu0 %5248
  %5252 = vset.pattern.permute.xlu0 0
  %5253 = vperm.xlu0 %5252, %v4199
  %v5254 = vpop.permute.xlu0 %5253
  %5257 = vset.pattern.permute.xlu0 0
  %5258 = vperm.xlu0 %5257, %v4200
  %v5259 = vpop.permute.xlu0 %5258
  %5262 = vset.pattern.permute.xlu0 0
  %5263 = vperm.xlu0 %5262, %v4201
  %v5264 = vpop.permute.xlu0 %5263
  %5267 = vset.pattern.permute.xlu0 0
  %5268 = vperm.xlu0 %5267, %v4202
  %v5269 = vpop.permute.xlu0 %5268
  %5272 = vset.pattern.permute.xlu0 0
  %5273 = vperm.xlu0 %5272, %v4203
  %v5274 = vpop.permute.xlu0 %5273
  %5277 = vset.pattern.permute.xlu0 0
  %5278 = vperm.xlu0 %5277, %v4204
  %v5279 = vpop.permute.xlu0 %5278
  %5282 = vset.pattern.permute.xlu0 0
  %5283 = vperm.xlu0 %5282, %v4205
  %v5284 = vpop.permute.xlu0 %5283
  %5287 = vset.pattern.permute.xlu0 0
  %5288 = vperm.xlu0 %5287, %v4206
  %v5289 = vpop.permute.xlu0 %5288
  %5292 = vset.pattern.permute.xlu0 0
  %5293 = vperm.xlu0 %5292, %v4207
  %v5294 = vpop.permute.xlu0 %5293
  %5297 = vset.pattern.permute.xlu0 0
  %5298 = vperm.xlu0 %5297, %v4208
  %v5299 = vpop.permute.xlu0 %5298
  %5302 = vset.pattern.permute.xlu0 0
  %5303 = vperm.xlu0 %5302, %v4209
  %v5304 = vpop.permute.xlu0 %5303
  %5307 = vset.pattern.permute.xlu0 0
  %5308 = vperm.xlu0 %5307, %v4210
  %v5309 = vpop.permute.xlu0 %5308
  %5312 = vset.pattern.permute.xlu0 0
  %5313 = vperm.xlu0 %5312, %v4211
  %v5314 = vpop.permute.xlu0 %5313
  %5317 = vset.pattern.permute.xlu0 0
  %5318 = vperm.xlu0 %5317, %v4212
  %v5319 = vpop.permute.xlu0 %5318
  %5322 = vset.pattern.permute.xlu0 0
  %5323 = vperm.xlu0 %5322, %v4213
  %v5324 = vpop.permute.xlu0 %5323
  %5327 = vset.pattern.permute.xlu0 0
  %5328 = vperm.xlu0 %5327, %v4214
  %v5329 = vpop.permute.xlu0 %5328
  %5332 = vset.pattern.permute.xlu0 0
  %5333 = vperm.xlu0 %5332, %v4215
  %v5334 = vpop.permute.xlu0 %5333
  %5337 = vset.pattern.permute.xlu0 0
  %5338 = vperm.xlu0 %5337, %v4216
  %v5339 = vpop.permute.xlu0 %5338
  %5342 = vset.pattern.permute.xlu0 0
  %5343 = vperm.xlu0 %5342, %v4217
  %v5344 = vpop.permute.xlu0 %5343
  %5347 = vset.pattern.permute.xlu0 0
  %5348 = vperm.xlu0 %5347, %v4218
  %v5349 = vpop.permute.xlu0 %5348
  %5352 = vset.pattern.permute.xlu0 0
  %5353 = vperm.xlu0 %5352, %v4219
  %v5354 = vpop.permute.xlu0 %5353
  %5357 = vset.pattern.permute.xlu0 0
  %5358 = vperm.xlu0 %5357, %v4220
  %v5359 = vpop.permute.xlu0 %5358
  %5362 = vset.pattern.permute.xlu0 0
  %5363 = vperm.xlu0 %5362, %v4221
  %v5364 = vpop.permute.xlu0 %5363
  %5367 = vset.pattern.permute.xlu0 0
  %5368 = vperm.xlu0 %5367, %v4222
  %v5369 = vpop.permute.xlu0 %5368
  %5372 = vset.pattern.permute.xlu0 0
  %5373 = vperm.xlu0 %5372, %v4223
  %v5374 = vpop.permute.xlu0 %5373
  %5377 = vset.pattern.permute.xlu0 0
  %5378 = vperm.xlu0 %5377, %v4224
  %v5379 = vpop.permute.xlu0 %5378
  %5382 = vset.pattern.permute.xlu0 0
  %5383 = vperm.xlu0 %5382, %v4225
  %v5384 = vpop.permute.xlu0 %5383
  %5387 = vset.pattern.permute.xlu0 0
  %5388 = vperm.xlu0 %5387, %v4226
  %v5389 = vpop.permute.xlu0 %5388
  %5392 = vset.pattern.permute.xlu0 0
  %5393 = vperm.xlu0 %5392, %v4227
  %v5394 = vpop.permute.xlu0 %5393
  %5397 = vset.pattern.permute.xlu0 0
  %5398 = vperm.xlu0 %5397, %v4228
  %v5399 = vpop.permute.xlu0 %5398
  %5402 = vset.pattern.permute.xlu0 0
  %5403 = vperm.xlu0 %5402, %v4229
  %v5404 = vpop.permute.xlu0 %5403
  %5407 = vset.pattern.permute.xlu0 0
  %5408 = vperm.xlu0 %5407, %v4230
  %v5409 = vpop.permute.xlu0 %5408
  %5412 = vset.pattern.permute.xlu0 0
  %5413 = vperm.xlu0 %5412, %v4231
  %v5414 = vpop.permute.xlu0 %5413
  %5417 = vset.pattern.permute.xlu0 0
  %5418 = vperm.xlu0 %5417, %v4232
  %v5419 = vpop.permute.xlu0 %5418
  %5422 = vset.pattern.permute.xlu0 0
  %5423 = vperm.xlu0 %5422, %v4233
  %v5424 = vpop.permute.xlu0 %5423
  %5427 = vset.pattern.permute.xlu0 0
  %5428 = vperm.xlu0 %5427, %v4234
  %v5429 = vpop.permute.xlu0 %5428
  %5432 = vset.pattern.permute.xlu0 0
  %5433 = vperm.xlu0 %5432, %v4235
  %v5434 = vpop.permute.xlu0 %5433
  %5437 = vset.pattern.permute.xlu0 0
  %5438 = vperm.xlu0 %5437, %v4236
  %v5439 = vpop.permute.xlu0 %5438
  %5442 = vset.pattern.permute.xlu0 0
  %5443 = vperm.xlu0 %5442, %v4237
  %v5444 = vpop.permute.xlu0 %5443
  %5447 = vset.pattern.permute.xlu0 0
  %5448 = vperm.xlu0 %5447, %v4238
  %v5449 = vpop.permute.xlu0 %5448
  %5452 = vset.pattern.permute.xlu0 0
  %5453 = vperm.xlu0 %5452, %v4239
  %v5454 = vpop.permute.xlu0 %5453
  %5457 = vset.pattern.permute.xlu0 0
  %5458 = vperm.xlu0 %5457, %v4240
  %v5459 = vpop.permute.xlu0 %5458
  %5462 = vset.pattern.permute.xlu0 0
  %5463 = vperm.xlu0 %5462, %v4241
  %v5464 = vpop.permute.xlu0 %5463
  %5467 = vset.pattern.permute.xlu0 0
  %5468 = vperm.xlu0 %5467, %v4242
  %v5469 = vpop.permute.xlu0 %5468
  %5472 = vset.pattern.permute.xlu0 0
  %5473 = vperm.xlu0 %5472, %v4243
  %v5474 = vpop.permute.xlu0 %5473
  %5477 = vset.pattern.permute.xlu0 0
  %5478 = vperm.xlu0 %5477, %v4244
  %v5479 = vpop.permute.xlu0 %5478
  %5482 = vset.pattern.permute.xlu0 0
  %5483 = vperm.xlu0 %5482, %v4245
  %v5484 = vpop.permute.xlu0 %5483
  %5487 = vset.pattern.permute.xlu0 0
  %5488 = vperm.xlu0 %5487, %v4246
  %v5489 = vpop.permute.xlu0 %5488
  %5492 = vset.pattern.permute.xlu0 0
  %5493 = vperm.xlu0 %5492, %v4247
  %v5494 = vpop.permute.xlu0 %5493
  %5497 = vset.pattern.permute.xlu0 0
  %5498 = vperm.xlu0 %5497, %v4248
  %v5499 = vpop.permute.xlu0 %5498
  %5502 = vset.pattern.permute.xlu0 0
  %5503 = vperm.xlu0 %5502, %v4249
  %v5504 = vpop.permute.xlu0 %5503
  %5507 = vset.pattern.permute.xlu0 0
  %5508 = vperm.xlu0 %5507, %v4250
  %v5509 = vpop.permute.xlu0 %5508
  %5512 = vset.pattern.permute.xlu0 0
  %5513 = vperm.xlu0 %5512, %v4251
  %v5514 = vpop.permute.xlu0 %5513
  %5517 = vset.pattern.permute.xlu0 0
  %5518 = vperm.xlu0 %5517, %v4252
  %v5519 = vpop.permute.xlu0 %5518
  %5522 = vset.pattern.permute.xlu0 0
  %5523 = vperm.xlu0 %5522, %v4253
  %v5524 = vpop.permute.xlu0 %5523
  %5527 = vset.pattern.permute.xlu0 0
  %5528 = vperm.xlu0 %5527, %v4254
  %v5529 = vpop.permute.xlu0 %5528
  %5532 = vset.pattern.permute.xlu0 0
  %5533 = vperm.xlu0 %5532, %v4255
  %v5534 = vpop.permute.xlu0 %5533
  %5537 = vset.pattern.permute.xlu0 0
  %5538 = vperm.xlu0 %5537, %v4256
  %v5539 = vpop.permute.xlu0 %5538
  %5542 = vset.pattern.permute.xlu0 0
  %5543 = vperm.xlu0 %5542, %v4257
  %v5544 = vpop.permute.xlu0 %5543
  %5547 = vset.pattern.permute.xlu0 0
  %5548 = vperm.xlu0 %5547, %v4258
  %v5549 = vpop.permute.xlu0 %5548
  %5552 = vset.pattern.permute.xlu0 0
  %5553 = vperm.xlu0 %5552, %v4259
  %v5554 = vpop.permute.xlu0 %5553
  %5557 = vset.pattern.permute.xlu0 0
  %5558 = vperm.xlu0 %5557, %v4260
  %v5559 = vpop.permute.xlu0 %5558
  %5562 = vset.pattern.permute.xlu0 0
  %5563 = vperm.xlu0 %5562, %v4261
  %v5564 = vpop.permute.xlu0 %5563
  %5567 = vset.pattern.permute.xlu0 0
  %5568 = vperm.xlu0 %5567, %v4262
  %v5569 = vpop.permute.xlu0 %5568
  %5572 = vset.pattern.permute.xlu0 0
  %5573 = vperm.xlu0 %5572, %v4263
  %v5574 = vpop.permute.xlu0 %5573
  %5577 = vset.pattern.permute.xlu0 0
  %5578 = vperm.xlu0 %5577, %v4264
  %v5579 = vpop.permute.xlu0 %5578
  %5582 = vset.pattern.permute.xlu0 0
  %5583 = vperm.xlu0 %5582, %v4265
  %v5584 = vpop.permute.xlu0 %5583
  %5587 = vset.pattern.permute.xlu0 0
  %5588 = vperm.xlu0 %5587, %v4266
  %v5589 = vpop.permute.xlu0 %5588
  %5592 = vset.pattern.permute.xlu0 0
  %5593 = vperm.xlu0 %5592, %v4267
  %v5594 = vpop.permute.xlu0 %5593
  %5597 = vset.pattern.permute.xlu0 0
  %5598 = vperm.xlu0 %5597, %v4268
  %v5599 = vpop.permute.xlu0 %5598
  %5602 = vset.pattern.permute.xlu0 0
  %5603 = vperm.xlu0 %5602, %v4269
  %v5604 = vpop.permute.xlu0 %5603
  %5607 = vset.pattern.permute.xlu0 0
  %5608 = vperm.xlu0 %5607, %v4270
  %v5609 = vpop.permute.xlu0 %5608
  %5612 = vset.pattern.permute.xlu0 0
  %5613 = vperm.xlu0 %5612, %v4271
  %v5614 = vpop.permute.xlu0 %5613
  %5617 = vset.pattern.permute.xlu0 0
  %5618 = vperm.xlu0 %5617, %v4272
  %v5619 = vpop.permute.xlu0 %5618
  %5622 = vset.pattern.permute.xlu0 0
  %5623 = vperm.xlu0 %5622, %v4273
  %v5624 = vpop.permute.xlu0 %5623
  %5627 = vset.pattern.permute.xlu0 0
  %5628 = vperm.xlu0 %5627, %v4274
  %v5629 = vpop.permute.xlu0 %5628
  %5632 = vset.pattern.permute.xlu0 0
  %5633 = vperm.xlu0 %5632, %v4275
  %v5634 = vpop.permute.xlu0 %5633
  %5637 = vset.pattern.permute.xlu0 0
  %5638 = vperm.xlu0 %5637, %v4276
  %v5639 = vpop.permute.xlu0 %5638
  %5642 = vset.pattern.permute.xlu0 0
  %5643 = vperm.xlu0 %5642, %v4277
  %v5644 = vpop.permute.xlu0 %5643
  %5647 = vset.pattern.permute.xlu0 0
  %5648 = vperm.xlu0 %5647, %v4278
  %v5649 = vpop.permute.xlu0 %5648
  %5652 = vset.pattern.permute.xlu0 0
  %5653 = vperm.xlu0 %5652, %v4279
  %v5654 = vpop.permute.xlu0 %5653
  %5657 = vset.pattern.permute.xlu0 0
  %5658 = vperm.xlu0 %5657, %v4280
  %v5659 = vpop.permute.xlu0 %5658
  %5662 = vset.pattern.permute.xlu0 0
  %5663 = vperm.xlu0 %5662, %v4281
  %v5664 = vpop.permute.xlu0 %5663
  %5667 = vset.pattern.permute.xlu0 0
  %5668 = vperm.xlu0 %5667, %v4282
  %v5669 = vpop.permute.xlu0 %5668
  %5672 = vset.pattern.permute.xlu0 0
  %5673 = vperm.xlu0 %5672, %v4283
  %v5674 = vpop.permute.xlu0 %5673
  %5677 = vset.pattern.permute.xlu0 0
  %5678 = vperm.xlu0 %5677, %v4284
  %v5679 = vpop.permute.xlu0 %5678
  %5682 = vset.pattern.permute.xlu0 0
  %5683 = vperm.xlu0 %5682, %v4285
  %v5684 = vpop.permute.xlu0 %5683
  %5687 = vset.pattern.permute.xlu0 0
  %5688 = vperm.xlu0 %5687, %v4286
  %v5689 = vpop.permute.xlu0 %5688
  %5692 = vset.pattern.permute.xlu0 0
  %5693 = vperm.xlu0 %5692, %v4287
  %v5694 = vpop.permute.xlu0 %5693
  %5697 = vset.pattern.permute.xlu0 0
  %5698 = vperm.xlu0 %5697, %v4288
  %v5699 = vpop.permute.xlu0 %5698
  %5702 = vset.pattern.permute.xlu0 0
  %5703 = vperm.xlu0 %5702, %v4289
  %v5704 = vpop.permute.xlu0 %5703
  %5707 = vset.pattern.permute.xlu0 0
  %5708 = vperm.xlu0 %5707, %v4290
  %v5709 = vpop.permute.xlu0 %5708
  %5712 = vset.pattern.permute.xlu0 0
  %5713 = vperm.xlu0 %5712, %v4291
  %v5714 = vpop.permute.xlu0 %5713
  %5717 = vset.pattern.permute.xlu0 0
  %5718 = vperm.xlu0 %5717, %v4292
  %v5719 = vpop.permute.xlu0 %5718
  %5722 = vset.pattern.permute.xlu0 0
  %5723 = vperm.xlu0 %5722, %v4293
  %v5724 = vpop.permute.xlu0 %5723
  %5727 = vset.pattern.permute.xlu0 0
  %5728 = vperm.xlu0 %5727, %v4294
  %v5729 = vpop.permute.xlu0 %5728
  %5732 = vset.pattern.permute.xlu0 0
  %5733 = vperm.xlu0 %5732, %v4295
  %v5734 = vpop.permute.xlu0 %5733
  %5737 = vset.pattern.permute.xlu0 0
  %5738 = vperm.xlu0 %5737, %v4296
  %v5739 = vpop.permute.xlu0 %5738
  %5742 = vset.pattern.permute.xlu0 0
  %5743 = vperm.xlu0 %5742, %v4297
  %v5744 = vpop.permute.xlu0 %5743
  %5747 = vset.pattern.permute.xlu0 0
  %5748 = vperm.xlu0 %5747, %v4298
  %v5749 = vpop.permute.xlu0 %5748
  %v5751 = vmul.f32 %v1132, %v5094
  %v5752 = vmul.f32 %v1134, %v5094
  %v5753 = vmul.f32 %v1136, %v5099
  %v5754 = vmul.f32 %v1138, %v5099
  %v5755 = vmul.f32 %v1142, %v5104
  %v5756 = vmul.f32 %v1144, %v5104
  %v5757 = vmul.f32 %v1146, %v5109
  %v5758 = vmul.f32 %v1148, %v5109
  %v5759 = vmul.f32 %v1152, %v5114
  %v5760 = vmul.f32 %v1154, %v5114
  %v5761 = vmul.f32 %v1156, %v5119
  %v5762 = vmul.f32 %v1158, %v5119
  %v5763 = vmul.f32 %v1162, %v5124
  %v5764 = vmul.f32 %v1164, %v5124
  %v5765 = vmul.f32 %v1166, %v5129
  %v5766 = vmul.f32 %v1168, %v5129
  %v5767 = vmul.f32 %v1172, %v5134
  %v5768 = vmul.f32 %v1174, %v5134
  %v5769 = vmul.f32 %v1176, %v5139
  %v5770 = vmul.f32 %v1178, %v5139
  %v5771 = vmul.f32 %v1182, %v5144
  %v5772 = vmul.f32 %v1184, %v5144
  %v5773 = vmul.f32 %v1186, %v5149
  %v5774 = vmul.f32 %v1188, %v5149
  %v5775 = vmul.f32 %v1192, %v5154
  %v5776 = vmul.f32 %v1194, %v5154
  %v5777 = vmul.f32 %v1196, %v5159
  %v5778 = vmul.f32 %v1198, %v5159
  %v5779 = vmul.f32 %v1202, %v5164
  %v5780 = vmul.f32 %v1204, %v5164
  %v5781 = vmul.f32 %v1206, %v5169
  %v5782 = vmul.f32 %v1208, %v5169
  %v5783 = vmul.f32 %v1212, %v5174
  %v5784 = vmul.f32 %v1214, %v5174
  %v5785 = vmul.f32 %v1216, %v5179
  %v5786 = vmul.f32 %v1218, %v5179
  %v5787 = vmul.f32 %v1222, %v5184
  %v5788 = vmul.f32 %v1224, %v5184
  %v5789 = vmul.f32 %v1226, %v5189
  %v5790 = vmul.f32 %v1228, %v5189
  %v5791 = vmul.f32 %v1232, %v5194
  %v5792 = vmul.f32 %v1234, %v5194
  %v5793 = vmul.f32 %v1236, %v5199
  %v5794 = vmul.f32 %v1238, %v5199
  %v5795 = vmul.f32 %v1242, %v5204
  %v5796 = vmul.f32 %v1244, %v5204
  %v5797 = vmul.f32 %v1246, %v5209
  %v5798 = vmul.f32 %v1248, %v5209
  %v5799 = vmul.f32 %v1252, %v5214
  %v5800 = vmul.f32 %v1254, %v5214
  %v5801 = vmul.f32 %v1256, %v5219
  %v5802 = vmul.f32 %v1258, %v5219
  %v5803 = vmul.f32 %v1262, %v5224
  %v5804 = vmul.f32 %v1264, %v5224
  %v5805 = vmul.f32 %v1266, %v5229
  %v5806 = vmul.f32 %v1268, %v5229
  %v5807 = vmul.f32 %v1272, %v5234
  %v5808 = vmul.f32 %v1274, %v5234
  %v5809 = vmul.f32 %v1276, %v5239
  %v5810 = vmul.f32 %v1278, %v5239
  %v5811 = vmul.f32 %v1282, %v5244
  %v5812 = vmul.f32 %v1284, %v5244
  %v5813 = vmul.f32 %v1286, %v5249
  %v5814 = vmul.f32 %v1288, %v5249
  %v5815 = vmul.f32 %v1292, %v5254
  %v5816 = vmul.f32 %v1294, %v5254
  %v5817 = vmul.f32 %v1296, %v5259
  %v5818 = vmul.f32 %v1298, %v5259
  %v5819 = vmul.f32 %v1302, %v5264
  %v5820 = vmul.f32 %v1304, %v5264
  %v5821 = vmul.f32 %v1306, %v5269
  %v5822 = vmul.f32 %v1308, %v5269
  %v5823 = vmul.f32 %v1312, %v5274
  %v5824 = vmul.f32 %v1314, %v5274
  %v5825 = vmul.f32 %v1316, %v5279
  %v5826 = vmul.f32 %v1318, %v5279
  %v5827 = vmul.f32 %v1322, %v5284
  %v5828 = vmul.f32 %v1324, %v5284
  %v5829 = vmul.f32 %v1326, %v5289
  %v5830 = vmul.f32 %v1328, %v5289
  %v5831 = vmul.f32 %v1332, %v5294
  %v5832 = vmul.f32 %v1334, %v5294
  %v5833 = vmul.f32 %v1336, %v5299
  %v5834 = vmul.f32 %v1338, %v5299
  %v5835 = vmul.f32 %v1342, %v5304
  %v5836 = vmul.f32 %v1344, %v5304
  %v5837 = vmul.f32 %v1346, %v5309
  %v5838 = vmul.f32 %v1348, %v5309
  %v5839 = vmul.f32 %v1352, %v5314
  %v5840 = vmul.f32 %v1354, %v5314
  %v5841 = vmul.f32 %v1356, %v5319
  %v5842 = vmul.f32 %v1358, %v5319
  %v5843 = vmul.f32 %v1362, %v5324
  %v5844 = vmul.f32 %v1364, %v5324
  %v5845 = vmul.f32 %v1366, %v5329
  %v5846 = vmul.f32 %v1368, %v5329
  %v5847 = vmul.f32 %v1372, %v5334
  %v5848 = vmul.f32 %v1374, %v5334
  %v5849 = vmul.f32 %v1376, %v5339
  %v5850 = vmul.f32 %v1378, %v5339
  %v5851 = vmul.f32 %v1382, %v5344
  %v5852 = vmul.f32 %v1384, %v5344
  %v5853 = vmul.f32 %v1386, %v5349
  %v5854 = vmul.f32 %v1388, %v5349
  %v5855 = vmul.f32 %v1392, %v5354
  %v5856 = vmul.f32 %v1394, %v5354
  %v5857 = vmul.f32 %v1396, %v5359
  %v5858 = vmul.f32 %v1398, %v5359
  %v5859 = vmul.f32 %v1402, %v5364
  %v5860 = vmul.f32 %v1404, %v5364
  %v5861 = vmul.f32 %v1406, %v5369
  %v5862 = vmul.f32 %v1408, %v5369
  %v5863 = vmul.f32 %v1412, %v5374
  %v5864 = vmul.f32 %v1414, %v5374
  %v5865 = vmul.f32 %v1416, %v5379
  %v5866 = vmul.f32 %v1418, %v5379
  %v5867 = vmul.f32 %v1422, %v5384
  %v5868 = vmul.f32 %v1424, %v5384
  %v5869 = vmul.f32 %v1426, %v5389
  %v5870 = vmul.f32 %v1428, %v5389
  %v5871 = vmul.f32 %v1432, %v5394
  %v5872 = vmul.f32 %v1434, %v5394
  %v5873 = vmul.f32 %v1436, %v5399
  %v5874 = vmul.f32 %v1438, %v5399
  %v5875 = vmul.f32 %v1442, %v5404
  %v5876 = vmul.f32 %v1444, %v5404
  %v5877 = vmul.f32 %v1446, %v5409
  %v5878 = vmul.f32 %v1448, %v5409
  %v5879 = vmul.f32 %v1452, %v5414
  %v5880 = vmul.f32 %v1454, %v5414
  %v5881 = vmul.f32 %v1456, %v5419
  %v5882 = vmul.f32 %v1458, %v5419
  %v5883 = vmul.f32 %v1462, %v5424
  %v5884 = vmul.f32 %v1464, %v5424
  %v5885 = vmul.f32 %v1466, %v5429
  %v5886 = vmul.f32 %v1468, %v5429
  %v5887 = vmul.f32 %v1472, %v5434
  %v5888 = vmul.f32 %v1474, %v5434
  %v5889 = vmul.f32 %v1476, %v5439
  %v5890 = vmul.f32 %v1478, %v5439
  %v5891 = vmul.f32 %v1482, %v5444
  %v5892 = vmul.f32 %v1484, %v5444
  %v5893 = vmul.f32 %v1486, %v5449
  %v5894 = vmul.f32 %v1488, %v5449
  %v5895 = vmul.f32 %v1492, %v5454
  %v5896 = vmul.f32 %v1494, %v5454
  %v5897 = vmul.f32 %v1496, %v5459
  %v5898 = vmul.f32 %v1498, %v5459
  %v5899 = vmul.f32 %v1502, %v5464
  %v5900 = vmul.f32 %v1504, %v5464
  %v5901 = vmul.f32 %v1506, %v5469
  %v5902 = vmul.f32 %v1508, %v5469
  %v5903 = vmul.f32 %v1512, %v5474
  %v5904 = vmul.f32 %v1514, %v5474
  %v5905 = vmul.f32 %v1516, %v5479
  %v5906 = vmul.f32 %v1518, %v5479
  %v5907 = vmul.f32 %v1522, %v5484
  %v5908 = vmul.f32 %v1524, %v5484
  %v5909 = vmul.f32 %v1526, %v5489
  %v5910 = vmul.f32 %v1528, %v5489
  %v5911 = vmul.f32 %v1532, %v5494
  %v5912 = vmul.f32 %v1534, %v5494
  %v5913 = vmul.f32 %v1536, %v5499
  %v5914 = vmul.f32 %v1538, %v5499
  %v5915 = vmul.f32 %v1542, %v5504
  %v5916 = vmul.f32 %v1544, %v5504
  %v5917 = vmul.f32 %v1546, %v5509
  %v5918 = vmul.f32 %v1548, %v5509
  %v5919 = vmul.f32 %v1552, %v5514
  %v5920 = vmul.f32 %v1554, %v5514
  %v5921 = vmul.f32 %v1556, %v5519
  %v5922 = vmul.f32 %v1558, %v5519
  %v5923 = vmul.f32 %v1562, %v5524
  %v5924 = vmul.f32 %v1564, %v5524
  %v5925 = vmul.f32 %v1566, %v5529
  %v5926 = vmul.f32 %v1568, %v5529
  %v5927 = vmul.f32 %v1572, %v5534
  %v5928 = vmul.f32 %v1574, %v5534
  %v5929 = vmul.f32 %v1576, %v5539
  %v5930 = vmul.f32 %v1578, %v5539
  %v5931 = vmul.f32 %v1582, %v5544
  %v5932 = vmul.f32 %v1584, %v5544
  %v5933 = vmul.f32 %v1586, %v5549
  %v5934 = vmul.f32 %v1588, %v5549
  %v5935 = vmul.f32 %v1592, %v5554
  %v5936 = vmul.f32 %v1594, %v5554
  %v5937 = vmul.f32 %v1596, %v5559
  %v5938 = vmul.f32 %v1598, %v5559
  %v5939 = vmul.f32 %v1602, %v5564
  %v5940 = vmul.f32 %v1604, %v5564
  %v5941 = vmul.f32 %v1606, %v5569
  %v5942 = vmul.f32 %v1608, %v5569
  %v5943 = vmul.f32 %v1612, %v5574
  %v5944 = vmul.f32 %v1614, %v5574
  %v5945 = vmul.f32 %v1616, %v5579
  %v5946 = vmul.f32 %v1618, %v5579
  %v5947 = vmul.f32 %v1622, %v5584
  %v5948 = vmul.f32 %v1624, %v5584
  %v5949 = vmul.f32 %v1626, %v5589
  %v5950 = vmul.f32 %v1628, %v5589
  %v5951 = vmul.f32 %v1632, %v5594
  %v5952 = vmul.f32 %v1634, %v5594
  %v5953 = vmul.f32 %v1636, %v5599
  %v5954 = vmul.f32 %v1638, %v5599
  %v5955 = vmul.f32 %v1642, %v5604
  %v5956 = vmul.f32 %v1644, %v5604
  %v5957 = vmul.f32 %v1646, %v5609
  %v5958 = vmul.f32 %v1648, %v5609
  %v5959 = vmul.f32 %v1652, %v5614
  %v5960 = vmul.f32 %v1654, %v5614
  %v5961 = vmul.f32 %v1656, %v5619
  %v5962 = vmul.f32 %v1658, %v5619
  %v5963 = vmul.f32 %v1662, %v5624
  %v5964 = vmul.f32 %v1664, %v5624
  %v5965 = vmul.f32 %v1666, %v5629
  %v5966 = vmul.f32 %v1668, %v5629
  %v5967 = vmul.f32 %v1672, %v5634
  %v5968 = vmul.f32 %v1674, %v5634
  %v5969 = vmul.f32 %v1676, %v5639
  %v5970 = vmul.f32 %v1678, %v5639
  %v5971 = vmul.f32 %v1682, %v5644
  %v5972 = vmul.f32 %v1684, %v5644
  %v5973 = vmul.f32 %v1686, %v5649
  %v5974 = vmul.f32 %v1688, %v5649
  %v5975 = vmul.f32 %v1692, %v5654
  %v5976 = vmul.f32 %v1694, %v5654
  %v5977 = vmul.f32 %v1696, %v5659
  %v5978 = vmul.f32 %v1698, %v5659
  %v5979 = vmul.f32 %v1702, %v5664
  %v5980 = vmul.f32 %v1704, %v5664
  %v5981 = vmul.f32 %v1706, %v5669
  %v5982 = vmul.f32 %v1708, %v5669
  %v5983 = vmul.f32 %v1712, %v5674
  %v5984 = vmul.f32 %v1714, %v5674
  %v5985 = vmul.f32 %v1716, %v5679
  %v5986 = vmul.f32 %v1718, %v5679
  %v5987 = vmul.f32 %v1722, %v5684
  %v5988 = vmul.f32 %v1724, %v5684
  %v5989 = vmul.f32 %v1726, %v5689
  %v5990 = vmul.f32 %v1728, %v5689
  %v5991 = vmul.f32 %v1732, %v5694
  %v5992 = vmul.f32 %v1734, %v5694
  %v5993 = vmul.f32 %v1736, %v5699
  %v5994 = vmul.f32 %v1738, %v5699
  %v5995 = vmul.f32 %v1742, %v5704
  %v5996 = vmul.f32 %v1744, %v5704
  %v5997 = vmul.f32 %v1746, %v5709
  %v5998 = vmul.f32 %v1748, %v5709
  %v5999 = vmul.f32 %v1752, %v5714
  %v6000 = vmul.f32 %v1754, %v5714
  %v6001 = vmul.f32 %v1756, %v5719
  %v6002 = vmul.f32 %v1758, %v5719
  %v6003 = vmul.f32 %v1762, %v5724
  %v6004 = vmul.f32 %v1764, %v5724
  %v6005 = vmul.f32 %v1766, %v5729
  %v6006 = vmul.f32 %v1768, %v5729
  %v6007 = vmul.f32 %v1772, %v5734
  %v6008 = vmul.f32 %v1774, %v5734
  %v6009 = vmul.f32 %v1776, %v5739
  %v6010 = vmul.f32 %v1778, %v5739
  %v6011 = vmul.f32 %v1782, %v5744
  %v6012 = vmul.f32 %v1784, %v5744
  %v6013 = vmul.f32 %v1786, %v5749
  %v6014 = vmul.f32 %v1788, %v5749
  %6016 = vset.pattern.permute.xlu0 1
  %6017 = vperm.xlu0 %6016, %v4959
  %v6018 = vpop.permute.xlu0 %6017
  %6021 = vset.pattern.permute.xlu0 1
  %6022 = vperm.xlu0 %6021, %v4960
  %v6023 = vpop.permute.xlu0 %6022
  %6026 = vset.pattern.permute.xlu0 1
  %6027 = vperm.xlu0 %6026, %v4961
  %v6028 = vpop.permute.xlu0 %6027
  %6031 = vset.pattern.permute.xlu0 1
  %6032 = vperm.xlu0 %6031, %v4962
  %v6033 = vpop.permute.xlu0 %6032
  %6036 = vset.pattern.permute.xlu0 1
  %6037 = vperm.xlu0 %6036, %v4963
  %v6038 = vpop.permute.xlu0 %6037
  %6041 = vset.pattern.permute.xlu0 1
  %6042 = vperm.xlu0 %6041, %v4964
  %v6043 = vpop.permute.xlu0 %6042
  %6046 = vset.pattern.permute.xlu0 1
  %6047 = vperm.xlu0 %6046, %v4965
  %v6048 = vpop.permute.xlu0 %6047
  %6051 = vset.pattern.permute.xlu0 1
  %6052 = vperm.xlu0 %6051, %v4966
  %v6053 = vpop.permute.xlu0 %6052
  %6056 = vset.pattern.permute.xlu0 1
  %6057 = vperm.xlu0 %6056, %v4967
  %v6058 = vpop.permute.xlu0 %6057
  %6061 = vset.pattern.permute.xlu0 1
  %6062 = vperm.xlu0 %6061, %v4968
  %v6063 = vpop.permute.xlu0 %6062
  %6066 = vset.pattern.permute.xlu0 1
  %6067 = vperm.xlu0 %6066, %v4969
  %v6068 = vpop.permute.xlu0 %6067
  %6071 = vset.pattern.permute.xlu0 1
  %6072 = vperm.xlu0 %6071, %v4970
  %v6073 = vpop.permute.xlu0 %6072
  %6076 = vset.pattern.permute.xlu0 1
  %6077 = vperm.xlu0 %6076, %v4971
  %v6078 = vpop.permute.xlu0 %6077
  %6081 = vset.pattern.permute.xlu0 1
  %6082 = vperm.xlu0 %6081, %v4972
  %v6083 = vpop.permute.xlu0 %6082
  %6086 = vset.pattern.permute.xlu0 1
  %6087 = vperm.xlu0 %6086, %v4973
  %v6088 = vpop.permute.xlu0 %6087
  %6091 = vset.pattern.permute.xlu0 1
  %6092 = vperm.xlu0 %6091, %v4974
  %v6093 = vpop.permute.xlu0 %6092
  %6096 = vset.pattern.permute.xlu0 1
  %6097 = vperm.xlu0 %6096, %v4975
  %v6098 = vpop.permute.xlu0 %6097
  %6101 = vset.pattern.permute.xlu0 1
  %6102 = vperm.xlu0 %6101, %v4976
  %v6103 = vpop.permute.xlu0 %6102
  %6106 = vset.pattern.permute.xlu0 1
  %6107 = vperm.xlu0 %6106, %v4977
  %v6108 = vpop.permute.xlu0 %6107
  %6111 = vset.pattern.permute.xlu0 1
  %6112 = vperm.xlu0 %6111, %v4978
  %v6113 = vpop.permute.xlu0 %6112
  %6116 = vset.pattern.permute.xlu0 1
  %6117 = vperm.xlu0 %6116, %v4979
  %v6118 = vpop.permute.xlu0 %6117
  %6121 = vset.pattern.permute.xlu0 1
  %6122 = vperm.xlu0 %6121, %v4980
  %v6123 = vpop.permute.xlu0 %6122
  %6126 = vset.pattern.permute.xlu0 1
  %6127 = vperm.xlu0 %6126, %v4981
  %v6128 = vpop.permute.xlu0 %6127
  %6131 = vset.pattern.permute.xlu0 1
  %6132 = vperm.xlu0 %6131, %v4982
  %v6133 = vpop.permute.xlu0 %6132
  %6136 = vset.pattern.permute.xlu0 1
  %6137 = vperm.xlu0 %6136, %v4983
  %v6138 = vpop.permute.xlu0 %6137
  %6141 = vset.pattern.permute.xlu0 1
  %6142 = vperm.xlu0 %6141, %v4984
  %v6143 = vpop.permute.xlu0 %6142
  %6146 = vset.pattern.permute.xlu0 1
  %6147 = vperm.xlu0 %6146, %v4985
  %v6148 = vpop.permute.xlu0 %6147
  %6151 = vset.pattern.permute.xlu0 1
  %6152 = vperm.xlu0 %6151, %v4986
  %v6153 = vpop.permute.xlu0 %6152
  %6156 = vset.pattern.permute.xlu0 1
  %6157 = vperm.xlu0 %6156, %v4987
  %v6158 = vpop.permute.xlu0 %6157
  %6161 = vset.pattern.permute.xlu0 1
  %6162 = vperm.xlu0 %6161, %v4988
  %v6163 = vpop.permute.xlu0 %6162
  %6166 = vset.pattern.permute.xlu0 1
  %6167 = vperm.xlu0 %6166, %v4989
  %v6168 = vpop.permute.xlu0 %6167
  %6171 = vset.pattern.permute.xlu0 1
  %6172 = vperm.xlu0 %6171, %v4990
  %v6173 = vpop.permute.xlu0 %6172
  %6176 = vset.pattern.permute.xlu0 1
  %6177 = vperm.xlu0 %6176, %v4991
  %v6178 = vpop.permute.xlu0 %6177
  %6181 = vset.pattern.permute.xlu0 1
  %6182 = vperm.xlu0 %6181, %v4992
  %v6183 = vpop.permute.xlu0 %6182
  %6186 = vset.pattern.permute.xlu0 1
  %6187 = vperm.xlu0 %6186, %v4993
  %v6188 = vpop.permute.xlu0 %6187
  %6191 = vset.pattern.permute.xlu0 1
  %6192 = vperm.xlu0 %6191, %v4994
  %v6193 = vpop.permute.xlu0 %6192
  %6196 = vset.pattern.permute.xlu0 1
  %6197 = vperm.xlu0 %6196, %v4995
  %v6198 = vpop.permute.xlu0 %6197
  %6201 = vset.pattern.permute.xlu0 1
  %6202 = vperm.xlu0 %6201, %v4996
  %v6203 = vpop.permute.xlu0 %6202
  %6206 = vset.pattern.permute.xlu0 1
  %6207 = vperm.xlu0 %6206, %v4997
  %v6208 = vpop.permute.xlu0 %6207
  %6211 = vset.pattern.permute.xlu0 1
  %6212 = vperm.xlu0 %6211, %v4998
  %v6213 = vpop.permute.xlu0 %6212
  %6216 = vset.pattern.permute.xlu0 1
  %6217 = vperm.xlu0 %6216, %v4999
  %v6218 = vpop.permute.xlu0 %6217
  %6221 = vset.pattern.permute.xlu0 1
  %6222 = vperm.xlu0 %6221, %v5000
  %v6223 = vpop.permute.xlu0 %6222
  %6226 = vset.pattern.permute.xlu0 1
  %6227 = vperm.xlu0 %6226, %v5001
  %v6228 = vpop.permute.xlu0 %6227
  %6231 = vset.pattern.permute.xlu0 1
  %6232 = vperm.xlu0 %6231, %v5002
  %v6233 = vpop.permute.xlu0 %6232
  %6236 = vset.pattern.permute.xlu0 1
  %6237 = vperm.xlu0 %6236, %v5003
  %v6238 = vpop.permute.xlu0 %6237
  %6241 = vset.pattern.permute.xlu0 1
  %6242 = vperm.xlu0 %6241, %v5004
  %v6243 = vpop.permute.xlu0 %6242
  %6246 = vset.pattern.permute.xlu0 1
  %6247 = vperm.xlu0 %6246, %v5005
  %v6248 = vpop.permute.xlu0 %6247
  %6251 = vset.pattern.permute.xlu0 1
  %6252 = vperm.xlu0 %6251, %v5006
  %v6253 = vpop.permute.xlu0 %6252
  %6256 = vset.pattern.permute.xlu0 1
  %6257 = vperm.xlu0 %6256, %v5007
  %v6258 = vpop.permute.xlu0 %6257
  %6261 = vset.pattern.permute.xlu0 1
  %6262 = vperm.xlu0 %6261, %v5008
  %v6263 = vpop.permute.xlu0 %6262
  %6266 = vset.pattern.permute.xlu0 1
  %6267 = vperm.xlu0 %6266, %v5009
  %v6268 = vpop.permute.xlu0 %6267
  %6271 = vset.pattern.permute.xlu0 1
  %6272 = vperm.xlu0 %6271, %v5010
  %v6273 = vpop.permute.xlu0 %6272
  %6276 = vset.pattern.permute.xlu0 1
  %6277 = vperm.xlu0 %6276, %v5011
  %v6278 = vpop.permute.xlu0 %6277
  %6281 = vset.pattern.permute.xlu0 1
  %6282 = vperm.xlu0 %6281, %v5012
  %v6283 = vpop.permute.xlu0 %6282
  %6286 = vset.pattern.permute.xlu0 1
  %6287 = vperm.xlu0 %6286, %v5013
  %v6288 = vpop.permute.xlu0 %6287
  %6291 = vset.pattern.permute.xlu0 1
  %6292 = vperm.xlu0 %6291, %v5014
  %v6293 = vpop.permute.xlu0 %6292
  %6296 = vset.pattern.permute.xlu0 1
  %6297 = vperm.xlu0 %6296, %v5015
  %v6298 = vpop.permute.xlu0 %6297
  %6301 = vset.pattern.permute.xlu0 1
  %6302 = vperm.xlu0 %6301, %v5016
  %v6303 = vpop.permute.xlu0 %6302
  %6306 = vset.pattern.permute.xlu0 1
  %6307 = vperm.xlu0 %6306, %v5017
  %v6308 = vpop.permute.xlu0 %6307
  %6311 = vset.pattern.permute.xlu0 1
  %6312 = vperm.xlu0 %6311, %v5018
  %v6313 = vpop.permute.xlu0 %6312
  %6316 = vset.pattern.permute.xlu0 1
  %6317 = vperm.xlu0 %6316, %v5019
  %v6318 = vpop.permute.xlu0 %6317
  %6321 = vset.pattern.permute.xlu0 1
  %6322 = vperm.xlu0 %6321, %v5020
  %v6323 = vpop.permute.xlu0 %6322
  %6326 = vset.pattern.permute.xlu0 1
  %6327 = vperm.xlu0 %6326, %v5021
  %v6328 = vpop.permute.xlu0 %6327
  %6331 = vset.pattern.permute.xlu0 1
  %6332 = vperm.xlu0 %6331, %v5022
  %v6333 = vpop.permute.xlu0 %6332
  %6336 = vset.pattern.permute.xlu0 1
  %6337 = vperm.xlu0 %6336, %v5023
  %v6338 = vpop.permute.xlu0 %6337
  %6341 = vset.pattern.permute.xlu0 1
  %6342 = vperm.xlu0 %6341, %v5024
  %v6343 = vpop.permute.xlu0 %6342
  %6346 = vset.pattern.permute.xlu0 1
  %6347 = vperm.xlu0 %6346, %v5025
  %v6348 = vpop.permute.xlu0 %6347
  %6351 = vset.pattern.permute.xlu0 1
  %6352 = vperm.xlu0 %6351, %v5026
  %v6353 = vpop.permute.xlu0 %6352
  %6356 = vset.pattern.permute.xlu0 1
  %6357 = vperm.xlu0 %6356, %v5027
  %v6358 = vpop.permute.xlu0 %6357
  %6361 = vset.pattern.permute.xlu0 1
  %6362 = vperm.xlu0 %6361, %v5028
  %v6363 = vpop.permute.xlu0 %6362
  %6366 = vset.pattern.permute.xlu0 1
  %6367 = vperm.xlu0 %6366, %v5029
  %v6368 = vpop.permute.xlu0 %6367
  %6371 = vset.pattern.permute.xlu0 1
  %6372 = vperm.xlu0 %6371, %v5030
  %v6373 = vpop.permute.xlu0 %6372
  %6376 = vset.pattern.permute.xlu0 1
  %6377 = vperm.xlu0 %6376, %v5031
  %v6378 = vpop.permute.xlu0 %6377
  %6381 = vset.pattern.permute.xlu0 1
  %6382 = vperm.xlu0 %6381, %v5032
  %v6383 = vpop.permute.xlu0 %6382
  %6386 = vset.pattern.permute.xlu0 1
  %6387 = vperm.xlu0 %6386, %v5033
  %v6388 = vpop.permute.xlu0 %6387
  %6391 = vset.pattern.permute.xlu0 1
  %6392 = vperm.xlu0 %6391, %v5034
  %v6393 = vpop.permute.xlu0 %6392
  %6396 = vset.pattern.permute.xlu0 1
  %6397 = vperm.xlu0 %6396, %v5035
  %v6398 = vpop.permute.xlu0 %6397
  %6401 = vset.pattern.permute.xlu0 1
  %6402 = vperm.xlu0 %6401, %v5036
  %v6403 = vpop.permute.xlu0 %6402
  %6406 = vset.pattern.permute.xlu0 1
  %6407 = vperm.xlu0 %6406, %v5037
  %v6408 = vpop.permute.xlu0 %6407
  %6411 = vset.pattern.permute.xlu0 1
  %6412 = vperm.xlu0 %6411, %v5038
  %v6413 = vpop.permute.xlu0 %6412
  %6416 = vset.pattern.permute.xlu0 1
  %6417 = vperm.xlu0 %6416, %v5039
  %v6418 = vpop.permute.xlu0 %6417
  %6421 = vset.pattern.permute.xlu0 1
  %6422 = vperm.xlu0 %6421, %v5040
  %v6423 = vpop.permute.xlu0 %6422
  %6426 = vset.pattern.permute.xlu0 1
  %6427 = vperm.xlu0 %6426, %v5041
  %v6428 = vpop.permute.xlu0 %6427
  %6431 = vset.pattern.permute.xlu0 1
  %6432 = vperm.xlu0 %6431, %v5042
  %v6433 = vpop.permute.xlu0 %6432
  %6436 = vset.pattern.permute.xlu0 1
  %6437 = vperm.xlu0 %6436, %v5043
  %v6438 = vpop.permute.xlu0 %6437
  %6441 = vset.pattern.permute.xlu0 1
  %6442 = vperm.xlu0 %6441, %v5044
  %v6443 = vpop.permute.xlu0 %6442
  %6446 = vset.pattern.permute.xlu0 1
  %6447 = vperm.xlu0 %6446, %v5045
  %v6448 = vpop.permute.xlu0 %6447
  %6451 = vset.pattern.permute.xlu0 1
  %6452 = vperm.xlu0 %6451, %v5046
  %v6453 = vpop.permute.xlu0 %6452
  %6456 = vset.pattern.permute.xlu0 1
  %6457 = vperm.xlu0 %6456, %v5047
  %v6458 = vpop.permute.xlu0 %6457
  %6461 = vset.pattern.permute.xlu0 1
  %6462 = vperm.xlu0 %6461, %v5048
  %v6463 = vpop.permute.xlu0 %6462
  %6466 = vset.pattern.permute.xlu0 1
  %6467 = vperm.xlu0 %6466, %v5049
  %v6468 = vpop.permute.xlu0 %6467
  %6471 = vset.pattern.permute.xlu0 1
  %6472 = vperm.xlu0 %6471, %v5050
  %v6473 = vpop.permute.xlu0 %6472
  %6476 = vset.pattern.permute.xlu0 1
  %6477 = vperm.xlu0 %6476, %v5051
  %v6478 = vpop.permute.xlu0 %6477
  %6481 = vset.pattern.permute.xlu0 1
  %6482 = vperm.xlu0 %6481, %v5052
  %v6483 = vpop.permute.xlu0 %6482
  %6486 = vset.pattern.permute.xlu0 1
  %6487 = vperm.xlu0 %6486, %v5053
  %v6488 = vpop.permute.xlu0 %6487
  %6491 = vset.pattern.permute.xlu0 1
  %6492 = vperm.xlu0 %6491, %v5054
  %v6493 = vpop.permute.xlu0 %6492
  %6496 = vset.pattern.permute.xlu0 1
  %6497 = vperm.xlu0 %6496, %v5055
  %v6498 = vpop.permute.xlu0 %6497
  %6501 = vset.pattern.permute.xlu0 1
  %6502 = vperm.xlu0 %6501, %v5056
  %v6503 = vpop.permute.xlu0 %6502
  %6506 = vset.pattern.permute.xlu0 1
  %6507 = vperm.xlu0 %6506, %v5057
  %v6508 = vpop.permute.xlu0 %6507
  %6511 = vset.pattern.permute.xlu0 1
  %6512 = vperm.xlu0 %6511, %v5058
  %v6513 = vpop.permute.xlu0 %6512
  %6516 = vset.pattern.permute.xlu0 1
  %6517 = vperm.xlu0 %6516, %v5059
  %v6518 = vpop.permute.xlu0 %6517
  %6521 = vset.pattern.permute.xlu0 1
  %6522 = vperm.xlu0 %6521, %v5060
  %v6523 = vpop.permute.xlu0 %6522
  %6526 = vset.pattern.permute.xlu0 1
  %6527 = vperm.xlu0 %6526, %v5061
  %v6528 = vpop.permute.xlu0 %6527
  %6531 = vset.pattern.permute.xlu0 1
  %6532 = vperm.xlu0 %6531, %v5062
  %v6533 = vpop.permute.xlu0 %6532
  %6536 = vset.pattern.permute.xlu0 1
  %6537 = vperm.xlu0 %6536, %v5063
  %v6538 = vpop.permute.xlu0 %6537
  %6541 = vset.pattern.permute.xlu0 1
  %6542 = vperm.xlu0 %6541, %v5064
  %v6543 = vpop.permute.xlu0 %6542
  %6546 = vset.pattern.permute.xlu0 1
  %6547 = vperm.xlu0 %6546, %v5065
  %v6548 = vpop.permute.xlu0 %6547
  %6551 = vset.pattern.permute.xlu0 1
  %6552 = vperm.xlu0 %6551, %v5066
  %v6553 = vpop.permute.xlu0 %6552
  %6556 = vset.pattern.permute.xlu0 1
  %6557 = vperm.xlu0 %6556, %v5067
  %v6558 = vpop.permute.xlu0 %6557
  %6561 = vset.pattern.permute.xlu0 1
  %6562 = vperm.xlu0 %6561, %v5068
  %v6563 = vpop.permute.xlu0 %6562
  %6566 = vset.pattern.permute.xlu0 1
  %6567 = vperm.xlu0 %6566, %v5069
  %v6568 = vpop.permute.xlu0 %6567
  %6571 = vset.pattern.permute.xlu0 1
  %6572 = vperm.xlu0 %6571, %v5070
  %v6573 = vpop.permute.xlu0 %6572
  %6576 = vset.pattern.permute.xlu0 1
  %6577 = vperm.xlu0 %6576, %v5071
  %v6578 = vpop.permute.xlu0 %6577
  %6581 = vset.pattern.permute.xlu0 1
  %6582 = vperm.xlu0 %6581, %v5072
  %v6583 = vpop.permute.xlu0 %6582
  %6586 = vset.pattern.permute.xlu0 1
  %6587 = vperm.xlu0 %6586, %v5073
  %v6588 = vpop.permute.xlu0 %6587
  %6591 = vset.pattern.permute.xlu0 1
  %6592 = vperm.xlu0 %6591, %v5074
  %v6593 = vpop.permute.xlu0 %6592
  %6596 = vset.pattern.permute.xlu0 1
  %6597 = vperm.xlu0 %6596, %v5075
  %v6598 = vpop.permute.xlu0 %6597
  %6601 = vset.pattern.permute.xlu0 1
  %6602 = vperm.xlu0 %6601, %v5076
  %v6603 = vpop.permute.xlu0 %6602
  %6606 = vset.pattern.permute.xlu0 1
  %6607 = vperm.xlu0 %6606, %v5077
  %v6608 = vpop.permute.xlu0 %6607
  %6611 = vset.pattern.permute.xlu0 1
  %6612 = vperm.xlu0 %6611, %v5078
  %v6613 = vpop.permute.xlu0 %6612
  %6616 = vset.pattern.permute.xlu0 1
  %6617 = vperm.xlu0 %6616, %v5079
  %v6618 = vpop.permute.xlu0 %6617
  %6621 = vset.pattern.permute.xlu0 1
  %6622 = vperm.xlu0 %6621, %v5080
  %v6623 = vpop.permute.xlu0 %6622
  %6626 = vset.pattern.permute.xlu0 1
  %6627 = vperm.xlu0 %6626, %v5081
  %v6628 = vpop.permute.xlu0 %6627
  %6631 = vset.pattern.permute.xlu0 1
  %6632 = vperm.xlu0 %6631, %v5082
  %v6633 = vpop.permute.xlu0 %6632
  %6636 = vset.pattern.permute.xlu0 1
  %6637 = vperm.xlu0 %6636, %v5083
  %v6638 = vpop.permute.xlu0 %6637
  %6641 = vset.pattern.permute.xlu0 1
  %6642 = vperm.xlu0 %6641, %v5084
  %v6643 = vpop.permute.xlu0 %6642
  %6646 = vset.pattern.permute.xlu0 1
  %6647 = vperm.xlu0 %6646, %v5085
  %v6648 = vpop.permute.xlu0 %6647
  %6651 = vset.pattern.permute.xlu0 1
  %6652 = vperm.xlu0 %6651, %v5086
  %v6653 = vpop.permute.xlu0 %6652
  %6656 = vset.pattern.permute.xlu0 1
  %6657 = vperm.xlu0 %6656, %v5087
  %v6658 = vpop.permute.xlu0 %6657
  %6661 = vset.pattern.permute.xlu0 1
  %6662 = vperm.xlu0 %6661, %v5088
  %v6663 = vpop.permute.xlu0 %6662
  %6666 = vset.pattern.permute.xlu0 1
  %6667 = vperm.xlu0 %6666, %v5089
  %v6668 = vpop.permute.xlu0 %6667
  %6671 = vset.pattern.permute.xlu0 1
  %6672 = vperm.xlu0 %6671, %v5090
  %v6673 = vpop.permute.xlu0 %6672
  %v6675 = vadd.f32 %v5751, %v6018
  %v6676 = vadd.f32 %v5752, %v6018
  %v6677 = vadd.f32 %v5753, %v6023
  %v6678 = vadd.f32 %v5754, %v6023
  %v6679 = vadd.f32 %v5755, %v6028
  %v6680 = vadd.f32 %v5756, %v6028
  %v6681 = vadd.f32 %v5757, %v6033
  %v6682 = vadd.f32 %v5758, %v6033
  %v6683 = vadd.f32 %v5759, %v6038
  %v6684 = vadd.f32 %v5760, %v6038
  %v6685 = vadd.f32 %v5761, %v6043
  %v6686 = vadd.f32 %v5762, %v6043
  %v6687 = vadd.f32 %v5763, %v6048
  %v6688 = vadd.f32 %v5764, %v6048
  %v6689 = vadd.f32 %v5765, %v6053
  %v6690 = vadd.f32 %v5766, %v6053
  %v6691 = vadd.f32 %v5767, %v6058
  %v6692 = vadd.f32 %v5768, %v6058
  %v6693 = vadd.f32 %v5769, %v6063
  %v6694 = vadd.f32 %v5770, %v6063
  %v6695 = vadd.f32 %v5771, %v6068
  %v6696 = vadd.f32 %v5772, %v6068
  %v6697 = vadd.f32 %v5773, %v6073
  %v6698 = vadd.f32 %v5774, %v6073
  %v6699 = vadd.f32 %v5775, %v6078
  %v6700 = vadd.f32 %v5776, %v6078
  %v6701 = vadd.f32 %v5777, %v6083
  %v6702 = vadd.f32 %v5778, %v6083
  %v6703 = vadd.f32 %v5779, %v6088
  %v6704 = vadd.f32 %v5780, %v6088
  %v6705 = vadd.f32 %v5781, %v6093
  %v6706 = vadd.f32 %v5782, %v6093
  %v6707 = vadd.f32 %v5783, %v6098
  %v6708 = vadd.f32 %v5784, %v6098
  %v6709 = vadd.f32 %v5785, %v6103
  %v6710 = vadd.f32 %v5786, %v6103
  %v6711 = vadd.f32 %v5787, %v6108
  %v6712 = vadd.f32 %v5788, %v6108
  %v6713 = vadd.f32 %v5789, %v6113
  %v6714 = vadd.f32 %v5790, %v6113
  %v6715 = vadd.f32 %v5791, %v6118
  %v6716 = vadd.f32 %v5792, %v6118
  %v6717 = vadd.f32 %v5793, %v6123
  %v6718 = vadd.f32 %v5794, %v6123
  %v6719 = vadd.f32 %v5795, %v6128
  %v6720 = vadd.f32 %v5796, %v6128
  %v6721 = vadd.f32 %v5797, %v6133
  %v6722 = vadd.f32 %v5798, %v6133
  %v6723 = vadd.f32 %v5799, %v6138
  %v6724 = vadd.f32 %v5800, %v6138
  %v6725 = vadd.f32 %v5801, %v6143
  %v6726 = vadd.f32 %v5802, %v6143
  %v6727 = vadd.f32 %v5803, %v6148
  %v6728 = vadd.f32 %v5804, %v6148
  %v6729 = vadd.f32 %v5805, %v6153
  %v6730 = vadd.f32 %v5806, %v6153
  %v6731 = vadd.f32 %v5807, %v6158
  %v6732 = vadd.f32 %v5808, %v6158
  %v6733 = vadd.f32 %v5809, %v6163
  %v6734 = vadd.f32 %v5810, %v6163
  %v6735 = vadd.f32 %v5811, %v6168
  %v6736 = vadd.f32 %v5812, %v6168
  %v6737 = vadd.f32 %v5813, %v6173
  %v6738 = vadd.f32 %v5814, %v6173
  %v6739 = vadd.f32 %v5815, %v6178
  %v6740 = vadd.f32 %v5816, %v6178
  %v6741 = vadd.f32 %v5817, %v6183
  %v6742 = vadd.f32 %v5818, %v6183
  %v6743 = vadd.f32 %v5819, %v6188
  %v6744 = vadd.f32 %v5820, %v6188
  %v6745 = vadd.f32 %v5821, %v6193
  %v6746 = vadd.f32 %v5822, %v6193
  %v6747 = vadd.f32 %v5823, %v6198
  %v6748 = vadd.f32 %v5824, %v6198
  %v6749 = vadd.f32 %v5825, %v6203
  %v6750 = vadd.f32 %v5826, %v6203
  %v6751 = vadd.f32 %v5827, %v6208
  %v6752 = vadd.f32 %v5828, %v6208
  %v6753 = vadd.f32 %v5829, %v6213
  %v6754 = vadd.f32 %v5830, %v6213
  %v6755 = vadd.f32 %v5831, %v6218
  %v6756 = vadd.f32 %v5832, %v6218
  %v6757 = vadd.f32 %v5833, %v6223
  %v6758 = vadd.f32 %v5834, %v6223
  %v6759 = vadd.f32 %v5835, %v6228
  %v6760 = vadd.f32 %v5836, %v6228
  %v6761 = vadd.f32 %v5837, %v6233
  %v6762 = vadd.f32 %v5838, %v6233
  %v6763 = vadd.f32 %v5839, %v6238
  %v6764 = vadd.f32 %v5840, %v6238
  %v6765 = vadd.f32 %v5841, %v6243
  %v6766 = vadd.f32 %v5842, %v6243
  %v6767 = vadd.f32 %v5843, %v6248
  %v6768 = vadd.f32 %v5844, %v6248
  %v6769 = vadd.f32 %v5845, %v6253
  %v6770 = vadd.f32 %v5846, %v6253
  %v6771 = vadd.f32 %v5847, %v6258
  %v6772 = vadd.f32 %v5848, %v6258
  %v6773 = vadd.f32 %v5849, %v6263
  %v6774 = vadd.f32 %v5850, %v6263
  %v6775 = vadd.f32 %v5851, %v6268
  %v6776 = vadd.f32 %v5852, %v6268
  %v6777 = vadd.f32 %v5853, %v6273
  %v6778 = vadd.f32 %v5854, %v6273
  %v6779 = vadd.f32 %v5855, %v6278
  %v6780 = vadd.f32 %v5856, %v6278
  %v6781 = vadd.f32 %v5857, %v6283
  %v6782 = vadd.f32 %v5858, %v6283
  %v6783 = vadd.f32 %v5859, %v6288
  %v6784 = vadd.f32 %v5860, %v6288
  %v6785 = vadd.f32 %v5861, %v6293
  %v6786 = vadd.f32 %v5862, %v6293
  %v6787 = vadd.f32 %v5863, %v6298
  %v6788 = vadd.f32 %v5864, %v6298
  %v6789 = vadd.f32 %v5865, %v6303
  %v6790 = vadd.f32 %v5866, %v6303
  %v6791 = vadd.f32 %v5867, %v6308
  %v6792 = vadd.f32 %v5868, %v6308
  %v6793 = vadd.f32 %v5869, %v6313
  %v6794 = vadd.f32 %v5870, %v6313
  %v6795 = vadd.f32 %v5871, %v6318
  %v6796 = vadd.f32 %v5872, %v6318
  %v6797 = vadd.f32 %v5873, %v6323
  %v6798 = vadd.f32 %v5874, %v6323
  %v6799 = vadd.f32 %v5875, %v6328
  %v6800 = vadd.f32 %v5876, %v6328
  %v6801 = vadd.f32 %v5877, %v6333
  %v6802 = vadd.f32 %v5878, %v6333
  %v6803 = vadd.f32 %v5879, %v6338
  %v6804 = vadd.f32 %v5880, %v6338
  %v6805 = vadd.f32 %v5881, %v6343
  %v6806 = vadd.f32 %v5882, %v6343
  %v6807 = vadd.f32 %v5883, %v6348
  %v6808 = vadd.f32 %v5884, %v6348
  %v6809 = vadd.f32 %v5885, %v6353
  %v6810 = vadd.f32 %v5886, %v6353
  %v6811 = vadd.f32 %v5887, %v6358
  %v6812 = vadd.f32 %v5888, %v6358
  %v6813 = vadd.f32 %v5889, %v6363
  %v6814 = vadd.f32 %v5890, %v6363
  %v6815 = vadd.f32 %v5891, %v6368
  %v6816 = vadd.f32 %v5892, %v6368
  %v6817 = vadd.f32 %v5893, %v6373
  %v6818 = vadd.f32 %v5894, %v6373
  %v6819 = vadd.f32 %v5895, %v6378
  %v6820 = vadd.f32 %v5896, %v6378
  %v6821 = vadd.f32 %v5897, %v6383
  %v6822 = vadd.f32 %v5898, %v6383
  %v6823 = vadd.f32 %v5899, %v6388
  %v6824 = vadd.f32 %v5900, %v6388
  %v6825 = vadd.f32 %v5901, %v6393
  %v6826 = vadd.f32 %v5902, %v6393
  %v6827 = vadd.f32 %v5903, %v6398
  %v6828 = vadd.f32 %v5904, %v6398
  %v6829 = vadd.f32 %v5905, %v6403
  %v6830 = vadd.f32 %v5906, %v6403
  %v6831 = vadd.f32 %v5907, %v6408
  %v6832 = vadd.f32 %v5908, %v6408
  %v6833 = vadd.f32 %v5909, %v6413
  %v6834 = vadd.f32 %v5910, %v6413
  %v6835 = vadd.f32 %v5911, %v6418
  %v6836 = vadd.f32 %v5912, %v6418
  %v6837 = vadd.f32 %v5913, %v6423
  %v6838 = vadd.f32 %v5914, %v6423
  %v6839 = vadd.f32 %v5915, %v6428
  %v6840 = vadd.f32 %v5916, %v6428
  %v6841 = vadd.f32 %v5917, %v6433
  %v6842 = vadd.f32 %v5918, %v6433
  %v6843 = vadd.f32 %v5919, %v6438
  %v6844 = vadd.f32 %v5920, %v6438
  %v6845 = vadd.f32 %v5921, %v6443
  %v6846 = vadd.f32 %v5922, %v6443
  %v6847 = vadd.f32 %v5923, %v6448
  %v6848 = vadd.f32 %v5924, %v6448
  %v6849 = vadd.f32 %v5925, %v6453
  %v6850 = vadd.f32 %v5926, %v6453
  %v6851 = vadd.f32 %v5927, %v6458
  %v6852 = vadd.f32 %v5928, %v6458
  %v6853 = vadd.f32 %v5929, %v6463
  %v6854 = vadd.f32 %v5930, %v6463
  %v6855 = vadd.f32 %v5931, %v6468
  %v6856 = vadd.f32 %v5932, %v6468
  %v6857 = vadd.f32 %v5933, %v6473
  %v6858 = vadd.f32 %v5934, %v6473
  %v6859 = vadd.f32 %v5935, %v6478
  %v6860 = vadd.f32 %v5936, %v6478
  %v6861 = vadd.f32 %v5937, %v6483
  %v6862 = vadd.f32 %v5938, %v6483
  %v6863 = vadd.f32 %v5939, %v6488
  %v6864 = vadd.f32 %v5940, %v6488
  %v6865 = vadd.f32 %v5941, %v6493
  %v6866 = vadd.f32 %v5942, %v6493
  %v6867 = vadd.f32 %v5943, %v6498
  %v6868 = vadd.f32 %v5944, %v6498
  %v6869 = vadd.f32 %v5945, %v6503
  %v6870 = vadd.f32 %v5946, %v6503
  %v6871 = vadd.f32 %v5947, %v6508
  %v6872 = vadd.f32 %v5948, %v6508
  %v6873 = vadd.f32 %v5949, %v6513
  %v6874 = vadd.f32 %v5950, %v6513
  %v6875 = vadd.f32 %v5951, %v6518
  %v6876 = vadd.f32 %v5952, %v6518
  %v6877 = vadd.f32 %v5953, %v6523
  %v6878 = vadd.f32 %v5954, %v6523
  %v6879 = vadd.f32 %v5955, %v6528
  %v6880 = vadd.f32 %v5956, %v6528
  %v6881 = vadd.f32 %v5957, %v6533
  %v6882 = vadd.f32 %v5958, %v6533
  %v6883 = vadd.f32 %v5959, %v6538
  %v6884 = vadd.f32 %v5960, %v6538
  %v6885 = vadd.f32 %v5961, %v6543
  %v6886 = vadd.f32 %v5962, %v6543
  %v6887 = vadd.f32 %v5963, %v6548
  %v6888 = vadd.f32 %v5964, %v6548
  %v6889 = vadd.f32 %v5965, %v6553
  %v6890 = vadd.f32 %v5966, %v6553
  %v6891 = vadd.f32 %v5967, %v6558
  %v6892 = vadd.f32 %v5968, %v6558
  %v6893 = vadd.f32 %v5969, %v6563
  %v6894 = vadd.f32 %v5970, %v6563
  %v6895 = vadd.f32 %v5971, %v6568
  %v6896 = vadd.f32 %v5972, %v6568
  %v6897 = vadd.f32 %v5973, %v6573
  %v6898 = vadd.f32 %v5974, %v6573
  %v6899 = vadd.f32 %v5975, %v6578
  %v6900 = vadd.f32 %v5976, %v6578
  %v6901 = vadd.f32 %v5977, %v6583
  %v6902 = vadd.f32 %v5978, %v6583
  %v6903 = vadd.f32 %v5979, %v6588
  %v6904 = vadd.f32 %v5980, %v6588
  %v6905 = vadd.f32 %v5981, %v6593
  %v6906 = vadd.f32 %v5982, %v6593
  %v6907 = vadd.f32 %v5983, %v6598
  %v6908 = vadd.f32 %v5984, %v6598
  %v6909 = vadd.f32 %v5985, %v6603
  %v6910 = vadd.f32 %v5986, %v6603
  %v6911 = vadd.f32 %v5987, %v6608
  %v6912 = vadd.f32 %v5988, %v6608
  %v6913 = vadd.f32 %v5989, %v6613
  %v6914 = vadd.f32 %v5990, %v6613
  %v6915 = vadd.f32 %v5991, %v6618
  %v6916 = vadd.f32 %v5992, %v6618
  %v6917 = vadd.f32 %v5993, %v6623
  %v6918 = vadd.f32 %v5994, %v6623
  %v6919 = vadd.f32 %v5995, %v6628
  %v6920 = vadd.f32 %v5996, %v6628
  %v6921 = vadd.f32 %v5997, %v6633
  %v6922 = vadd.f32 %v5998, %v6633
  %v6923 = vadd.f32 %v5999, %v6638
  %v6924 = vadd.f32 %v6000, %v6638
  %v6925 = vadd.f32 %v6001, %v6643
  %v6926 = vadd.f32 %v6002, %v6643
  %v6927 = vadd.f32 %v6003, %v6648
  %v6928 = vadd.f32 %v6004, %v6648
  %v6929 = vadd.f32 %v6005, %v6653
  %v6930 = vadd.f32 %v6006, %v6653
  %v6931 = vadd.f32 %v6007, %v6658
  %v6932 = vadd.f32 %v6008, %v6658
  %v6933 = vadd.f32 %v6009, %v6663
  %v6934 = vadd.f32 %v6010, %v6663
  %v6935 = vadd.f32 %v6011, %v6668
  %v6936 = vadd.f32 %v6012, %v6668
  %v6937 = vadd.f32 %v6013, %v6673
  %v6938 = vadd.f32 %v6014, %v6673
  %6939 = vst [vmem:[%s4] sm:$0xff] %v6675
  %6940 = vst.msk [vmem:[%s4 + $0x8] sm:$0xff] %vm1790, %v6676
  %6941 = vst [vmem:[%s4 + $0x10] sm:$0xff] %v6677
  %6942 = vst.msk [vmem:[%s4 + $0x18] sm:$0xff] %vm1790, %v6678
  %6943 = vst [vmem:[%s4 + $0x20] sm:$0xff] %v6679
  %6944 = vst.msk [vmem:[%s4 + $0x28] sm:$0xff] %vm1790, %v6680
  %6945 = vst [vmem:[%s4 + $0x30] sm:$0xff] %v6681
  %6946 = vst.msk [vmem:[%s4 + $0x38] sm:$0xff] %vm1790, %v6682
  %6947 = vst [vmem:[%s4 + $0x40] sm:$0xff] %v6683
  %6948 = vst.msk [vmem:[%s4 + $0x48] sm:$0xff] %vm1790, %v6684
  %6949 = vst [vmem:[%s4 + $0x50] sm:$0xff] %v6685
  %6950 = vst.msk [vmem:[%s4 + $0x58] sm:$0xff] %vm1790, %v6686
  %6951 = vst [vmem:[%s4 + $0x60] sm:$0xff] %v6687
  %6952 = vst.msk [vmem:[%s4 + $0x68] sm:$0xff] %vm1790, %v6688
  %6953 = vst [vmem:[%s4 + $0x70] sm:$0xff] %v6689
  %6954 = vst.msk [vmem:[%s4 + $0x78] sm:$0xff] %vm1790, %v6690
  %6955 = vst [vmem:[%s4 + $0x80] sm:$0xff] %v6691
  %6956 = vst.msk [vmem:[%s4 + $0x88] sm:$0xff] %vm1790, %v6692
  %6957 = vst [vmem:[%s4 + $0x90] sm:$0xff] %v6693
  %6958 = vst.msk [vmem:[%s4 + $0x98] sm:$0xff] %vm1790, %v6694
  %6959 = vst [vmem:[%s4 + $0xa0] sm:$0xff] %v6695
  %6960 = vst.msk [vmem:[%s4 + $0xa8] sm:$0xff] %vm1790, %v6696
  %6961 = vst [vmem:[%s4 + $0xb0] sm:$0xff] %v6697
  %6962 = vst.msk [vmem:[%s4 + $0xb8] sm:$0xff] %vm1790, %v6698
  %6963 = vst [vmem:[%s4 + $0xc0] sm:$0xff] %v6699
  %6964 = vst.msk [vmem:[%s4 + $0xc8] sm:$0xff] %vm1790, %v6700
  %6965 = vst [vmem:[%s4 + $0xd0] sm:$0xff] %v6701
  %6966 = vst.msk [vmem:[%s4 + $0xd8] sm:$0xff] %vm1790, %v6702
  %6967 = vst [vmem:[%s4 + $0xe0] sm:$0xff] %v6703
  %6968 = vst.msk [vmem:[%s4 + $0xe8] sm:$0xff] %vm1790, %v6704
  %6969 = vst [vmem:[%s4 + $0xf0] sm:$0xff] %v6705
  %6970 = vst.msk [vmem:[%s4 + $0xf8] sm:$0xff] %vm1790, %v6706
  %6971 = vst [vmem:[%s4 + $0x100] sm:$0xff] %v6707
  %6972 = vst.msk [vmem:[%s4 + $0x108] sm:$0xff] %vm1790, %v6708
  %6973 = vst [vmem:[%s4 + $0x110] sm:$0xff] %v6709
  %6974 = vst.msk [vmem:[%s4 + $0x118] sm:$0xff] %vm1790, %v6710
  %6975 = vst [vmem:[%s4 + $0x120] sm:$0xff] %v6711
  %6976 = vst.msk [vmem:[%s4 + $0x128] sm:$0xff] %vm1790, %v6712
  %6977 = vst [vmem:[%s4 + $0x130] sm:$0xff] %v6713
  %6978 = vst.msk [vmem:[%s4 + $0x138] sm:$0xff] %vm1790, %v6714
  %6979 = vst [vmem:[%s4 + $0x140] sm:$0xff] %v6715
  %6980 = vst.msk [vmem:[%s4 + $0x148] sm:$0xff] %vm1790, %v6716
  %6981 = vst [vmem:[%s4 + $0x150] sm:$0xff] %v6717
  %6982 = vst.msk [vmem:[%s4 + $0x158] sm:$0xff] %vm1790, %v6718
  %6983 = vst [vmem:[%s4 + $0x160] sm:$0xff] %v6719
  %6984 = vst.msk [vmem:[%s4 + $0x168] sm:$0xff] %vm1790, %v6720
  %6985 = vst [vmem:[%s4 + $0x170] sm:$0xff] %v6721
  %6986 = vst.msk [vmem:[%s4 + $0x178] sm:$0xff] %vm1790, %v6722
  %6987 = vst [vmem:[%s4 + $0x180] sm:$0xff] %v6723
  %6988 = vst.msk [vmem:[%s4 + $0x188] sm:$0xff] %vm1790, %v6724
  %6989 = vst [vmem:[%s4 + $0x190] sm:$0xff] %v6725
  %6990 = vst.msk [vmem:[%s4 + $0x198] sm:$0xff] %vm1790, %v6726
  %6991 = vst [vmem:[%s4 + $0x1a0] sm:$0xff] %v6727
  %6992 = vst.msk [vmem:[%s4 + $0x1a8] sm:$0xff] %vm1790, %v6728
  %6993 = vst [vmem:[%s4 + $0x1b0] sm:$0xff] %v6729
  %6994 = vst.msk [vmem:[%s4 + $0x1b8] sm:$0xff] %vm1790, %v6730
  %6995 = vst [vmem:[%s4 + $0x1c0] sm:$0xff] %v6731
  %6996 = vst.msk [vmem:[%s4 + $0x1c8] sm:$0xff] %vm1790, %v6732
  %6997 = vst [vmem:[%s4 + $0x1d0] sm:$0xff] %v6733
  %6998 = vst.msk [vmem:[%s4 + $0x1d8] sm:$0xff] %vm1790, %v6734
  %6999 = vst [vmem:[%s4 + $0x1e0] sm:$0xff] %v6735
  %7000 = vst.msk [vmem:[%s4 + $0x1e8] sm:$0xff] %vm1790, %v6736
  %7001 = vst [vmem:[%s4 + $0x1f0] sm:$0xff] %v6737
  %7002 = vst.msk [vmem:[%s4 + $0x1f8] sm:$0xff] %vm1790, %v6738
  %7003 = vst [vmem:[%s4 + $0x200] sm:$0xff] %v6739
  %7004 = vst.msk [vmem:[%s4 + $0x208] sm:$0xff] %vm1790, %v6740
  %7005 = vst [vmem:[%s4 + $0x210] sm:$0xff] %v6741
  %7006 = vst.msk [vmem:[%s4 + $0x218] sm:$0xff] %vm1790, %v6742
  %7007 = vst [vmem:[%s4 + $0x220] sm:$0xff] %v6743
  %7008 = vst.msk [vmem:[%s4 + $0x228] sm:$0xff] %vm1790, %v6744
  %7009 = vst [vmem:[%s4 + $0x230] sm:$0xff] %v6745
  %7010 = vst.msk [vmem:[%s4 + $0x238] sm:$0xff] %vm1790, %v6746
  %7011 = vst [vmem:[%s4 + $0x240] sm:$0xff] %v6747
  %7012 = vst.msk [vmem:[%s4 + $0x248] sm:$0xff] %vm1790, %v6748
  %7013 = vst [vmem:[%s4 + $0x250] sm:$0xff] %v6749
  %7014 = vst.msk [vmem:[%s4 + $0x258] sm:$0xff] %vm1790, %v6750
  %7015 = vst [vmem:[%s4 + $0x260] sm:$0xff] %v6751
  %7016 = vst.msk [vmem:[%s4 + $0x268] sm:$0xff] %vm1790, %v6752
  %7017 = vst [vmem:[%s4 + $0x270] sm:$0xff] %v6753
  %7018 = vst.msk [vmem:[%s4 + $0x278] sm:$0xff] %vm1790, %v6754
  %7019 = vst [vmem:[%s4 + $0x280] sm:$0xff] %v6755
  %7020 = vst.msk [vmem:[%s4 + $0x288] sm:$0xff] %vm1790, %v6756
  %7021 = vst [vmem:[%s4 + $0x290] sm:$0xff] %v6757
  %7022 = vst.msk [vmem:[%s4 + $0x298] sm:$0xff] %vm1790, %v6758
  %7023 = vst [vmem:[%s4 + $0x2a0] sm:$0xff] %v6759
  %7024 = vst.msk [vmem:[%s4 + $0x2a8] sm:$0xff] %vm1790, %v6760
  %7025 = vst [vmem:[%s4 + $0x2b0] sm:$0xff] %v6761
  %7026 = vst.msk [vmem:[%s4 + $0x2b8] sm:$0xff] %vm1790, %v6762
  %7027 = vst [vmem:[%s4 + $0x2c0] sm:$0xff] %v6763
  %7028 = vst.msk [vmem:[%s4 + $0x2c8] sm:$0xff] %vm1790, %v6764
  %7029 = vst [vmem:[%s4 + $0x2d0] sm:$0xff] %v6765
  %7030 = vst.msk [vmem:[%s4 + $0x2d8] sm:$0xff] %vm1790, %v6766
  %7031 = vst [vmem:[%s4 + $0x2e0] sm:$0xff] %v6767
  %7032 = vst.msk [vmem:[%s4 + $0x2e8] sm:$0xff] %vm1790, %v6768
  %7033 = vst [vmem:[%s4 + $0x2f0] sm:$0xff] %v6769
  %7034 = vst.msk [vmem:[%s4 + $0x2f8] sm:$0xff] %vm1790, %v6770
  %7035 = vst [vmem:[%s4 + $0x300] sm:$0xff] %v6771
  %7036 = vst.msk [vmem:[%s4 + $0x308] sm:$0xff] %vm1790, %v6772
  %7037 = vst [vmem:[%s4 + $0x310] sm:$0xff] %v6773
  %7038 = vst.msk [vmem:[%s4 + $0x318] sm:$0xff] %vm1790, %v6774
  %7039 = vst [vmem:[%s4 + $0x320] sm:$0xff] %v6775
  %7040 = vst.msk [vmem:[%s4 + $0x328] sm:$0xff] %vm1790, %v6776
  %7041 = vst [vmem:[%s4 + $0x330] sm:$0xff] %v6777
  %7042 = vst.msk [vmem:[%s4 + $0x338] sm:$0xff] %vm1790, %v6778
  %7043 = vst [vmem:[%s4 + $0x340] sm:$0xff] %v6779
  %7044 = vst.msk [vmem:[%s4 + $0x348] sm:$0xff] %vm1790, %v6780
  %7045 = vst [vmem:[%s4 + $0x350] sm:$0xff] %v6781
  %7046 = vst.msk [vmem:[%s4 + $0x358] sm:$0xff] %vm1790, %v6782
  %7047 = vst [vmem:[%s4 + $0x360] sm:$0xff] %v6783
  %7048 = vst.msk [vmem:[%s4 + $0x368] sm:$0xff] %vm1790, %v6784
  %7049 = vst [vmem:[%s4 + $0x370] sm:$0xff] %v6785
  %7050 = vst.msk [vmem:[%s4 + $0x378] sm:$0xff] %vm1790, %v6786
  %7051 = vst [vmem:[%s4 + $0x380] sm:$0xff] %v6787
  %7052 = vst.msk [vmem:[%s4 + $0x388] sm:$0xff] %vm1790, %v6788
  %7053 = vst [vmem:[%s4 + $0x390] sm:$0xff] %v6789
  %7054 = vst.msk [vmem:[%s4 + $0x398] sm:$0xff] %vm1790, %v6790
  %7055 = vst [vmem:[%s4 + $0x3a0] sm:$0xff] %v6791
  %7056 = vst.msk [vmem:[%s4 + $0x3a8] sm:$0xff] %vm1790, %v6792
  %7057 = vst [vmem:[%s4 + $0x3b0] sm:$0xff] %v6793
  %7058 = vst.msk [vmem:[%s4 + $0x3b8] sm:$0xff] %vm1790, %v6794
  %7059 = vst [vmem:[%s4 + $0x3c0] sm:$0xff] %v6795
  %7060 = vst.msk [vmem:[%s4 + $0x3c8] sm:$0xff] %vm1790, %v6796
  %7061 = vst [vmem:[%s4 + $0x3d0] sm:$0xff] %v6797
  %7062 = vst.msk [vmem:[%s4 + $0x3d8] sm:$0xff] %vm1790, %v6798
  %7063 = vst [vmem:[%s4 + $0x3e0] sm:$0xff] %v6799
  %7064 = vst.msk [vmem:[%s4 + $0x3e8] sm:$0xff] %vm1790, %v6800
  %7065 = vst [vmem:[%s4 + $0x3f0] sm:$0xff] %v6801
  %7066 = vst.msk [vmem:[%s4 + $0x3f8] sm:$0xff] %vm1790, %v6802
  %7067 = vst [vmem:[%s4 + $0x400] sm:$0xff] %v6803
  %7068 = vst.msk [vmem:[%s4 + $0x408] sm:$0xff] %vm1790, %v6804
  %7069 = vst [vmem:[%s4 + $0x410] sm:$0xff] %v6805
  %7070 = vst.msk [vmem:[%s4 + $0x418] sm:$0xff] %vm1790, %v6806
  %7071 = vst [vmem:[%s4 + $0x420] sm:$0xff] %v6807
  %7072 = vst.msk [vmem:[%s4 + $0x428] sm:$0xff] %vm1790, %v6808
  %7073 = vst [vmem:[%s4 + $0x430] sm:$0xff] %v6809
  %7074 = vst.msk [vmem:[%s4 + $0x438] sm:$0xff] %vm1790, %v6810
  %7075 = vst [vmem:[%s4 + $0x440] sm:$0xff] %v6811
  %7076 = vst.msk [vmem:[%s4 + $0x448] sm:$0xff] %vm1790, %v6812
  %7077 = vst [vmem:[%s4 + $0x450] sm:$0xff] %v6813
  %7078 = vst.msk [vmem:[%s4 + $0x458] sm:$0xff] %vm1790, %v6814
  %7079 = vst [vmem:[%s4 + $0x460] sm:$0xff] %v6815
  %7080 = vst.msk [vmem:[%s4 + $0x468] sm:$0xff] %vm1790, %v6816
  %7081 = vst [vmem:[%s4 + $0x470] sm:$0xff] %v6817
  %7082 = vst.msk [vmem:[%s4 + $0x478] sm:$0xff] %vm1790, %v6818
  %7083 = vst [vmem:[%s4 + $0x480] sm:$0xff] %v6819
  %7084 = vst.msk [vmem:[%s4 + $0x488] sm:$0xff] %vm1790, %v6820
  %7085 = vst [vmem:[%s4 + $0x490] sm:$0xff] %v6821
  %7086 = vst.msk [vmem:[%s4 + $0x498] sm:$0xff] %vm1790, %v6822
  %7087 = vst [vmem:[%s4 + $0x4a0] sm:$0xff] %v6823
  %7088 = vst.msk [vmem:[%s4 + $0x4a8] sm:$0xff] %vm1790, %v6824
  %7089 = vst [vmem:[%s4 + $0x4b0] sm:$0xff] %v6825
  %7090 = vst.msk [vmem:[%s4 + $0x4b8] sm:$0xff] %vm1790, %v6826
  %7091 = vst [vmem:[%s4 + $0x4c0] sm:$0xff] %v6827
  %7092 = vst.msk [vmem:[%s4 + $0x4c8] sm:$0xff] %vm1790, %v6828
  %7093 = vst [vmem:[%s4 + $0x4d0] sm:$0xff] %v6829
  %7094 = vst.msk [vmem:[%s4 + $0x4d8] sm:$0xff] %vm1790, %v6830
  %7095 = vst [vmem:[%s4 + $0x4e0] sm:$0xff] %v6831
  %7096 = vst.msk [vmem:[%s4 + $0x4e8] sm:$0xff] %vm1790, %v6832
  %7097 = vst [vmem:[%s4 + $0x4f0] sm:$0xff] %v6833
  %7098 = vst.msk [vmem:[%s4 + $0x4f8] sm:$0xff] %vm1790, %v6834
  %7099 = vst [vmem:[%s4 + $0x500] sm:$0xff] %v6835
  %7100 = vst.msk [vmem:[%s4 + $0x508] sm:$0xff] %vm1790, %v6836
  %7101 = vst [vmem:[%s4 + $0x510] sm:$0xff] %v6837
  %7102 = vst.msk [vmem:[%s4 + $0x518] sm:$0xff] %vm1790, %v6838
  %7103 = vst [vmem:[%s4 + $0x520] sm:$0xff] %v6839
  %7104 = vst.msk [vmem:[%s4 + $0x528] sm:$0xff] %vm1790, %v6840
  %7105 = vst [vmem:[%s4 + $0x530] sm:$0xff] %v6841
  %7106 = vst.msk [vmem:[%s4 + $0x538] sm:$0xff] %vm1790, %v6842
  %7107 = vst [vmem:[%s4 + $0x540] sm:$0xff] %v6843
  %7108 = vst.msk [vmem:[%s4 + $0x548] sm:$0xff] %vm1790, %v6844
  %7109 = vst [vmem:[%s4 + $0x550] sm:$0xff] %v6845
  %7110 = vst.msk [vmem:[%s4 + $0x558] sm:$0xff] %vm1790, %v6846
  %7111 = vst [vmem:[%s4 + $0x560] sm:$0xff] %v6847
  %7112 = vst.msk [vmem:[%s4 + $0x568] sm:$0xff] %vm1790, %v6848
  %7113 = vst [vmem:[%s4 + $0x570] sm:$0xff] %v6849
  %7114 = vst.msk [vmem:[%s4 + $0x578] sm:$0xff] %vm1790, %v6850
  %7115 = vst [vmem:[%s4 + $0x580] sm:$0xff] %v6851
  %7116 = vst.msk [vmem:[%s4 + $0x588] sm:$0xff] %vm1790, %v6852
  %7117 = vst [vmem:[%s4 + $0x590] sm:$0xff] %v6853
  %7118 = vst.msk [vmem:[%s4 + $0x598] sm:$0xff] %vm1790, %v6854
  %7119 = vst [vmem:[%s4 + $0x5a0] sm:$0xff] %v6855
  %7120 = vst.msk [vmem:[%s4 + $0x5a8] sm:$0xff] %vm1790, %v6856
  %7121 = vst [vmem:[%s4 + $0x5b0] sm:$0xff] %v6857
  %7122 = vst.msk [vmem:[%s4 + $0x5b8] sm:$0xff] %vm1790, %v6858
  %7123 = vst [vmem:[%s4 + $0x5c0] sm:$0xff] %v6859
  %7124 = vst.msk [vmem:[%s4 + $0x5c8] sm:$0xff] %vm1790, %v6860
  %7125 = vst [vmem:[%s4 + $0x5d0] sm:$0xff] %v6861
  %7126 = vst.msk [vmem:[%s4 + $0x5d8] sm:$0xff] %vm1790, %v6862
  %7127 = vst [vmem:[%s4 + $0x5e0] sm:$0xff] %v6863
  %7128 = vst.msk [vmem:[%s4 + $0x5e8] sm:$0xff] %vm1790, %v6864
  %7129 = vst [vmem:[%s4 + $0x5f0] sm:$0xff] %v6865
  %7130 = vst.msk [vmem:[%s4 + $0x5f8] sm:$0xff] %vm1790, %v6866
  %7131 = vst [vmem:[%s4 + $0x600] sm:$0xff] %v6867
  %7132 = vst.msk [vmem:[%s4 + $0x608] sm:$0xff] %vm1790, %v6868
  %7133 = vst [vmem:[%s4 + $0x610] sm:$0xff] %v6869
  %7134 = vst.msk [vmem:[%s4 + $0x618] sm:$0xff] %vm1790, %v6870
  %7135 = vst [vmem:[%s4 + $0x620] sm:$0xff] %v6871
  %7136 = vst.msk [vmem:[%s4 + $0x628] sm:$0xff] %vm1790, %v6872
  %7137 = vst [vmem:[%s4 + $0x630] sm:$0xff] %v6873
  %7138 = vst.msk [vmem:[%s4 + $0x638] sm:$0xff] %vm1790, %v6874
  %7139 = vst [vmem:[%s4 + $0x640] sm:$0xff] %v6875
  %7140 = vst.msk [vmem:[%s4 + $0x648] sm:$0xff] %vm1790, %v6876
  %7141 = vst [vmem:[%s4 + $0x650] sm:$0xff] %v6877
  %7142 = vst.msk [vmem:[%s4 + $0x658] sm:$0xff] %vm1790, %v6878
  %7143 = vst [vmem:[%s4 + $0x660] sm:$0xff] %v6879
  %7144 = vst.msk [vmem:[%s4 + $0x668] sm:$0xff] %vm1790, %v6880
  %7145 = vst [vmem:[%s4 + $0x670] sm:$0xff] %v6881
  %7146 = vst.msk [vmem:[%s4 + $0x678] sm:$0xff] %vm1790, %v6882
  %7147 = vst [vmem:[%s4 + $0x680] sm:$0xff] %v6883
  %7148 = vst.msk [vmem:[%s4 + $0x688] sm:$0xff] %vm1790, %v6884
  %7149 = vst [vmem:[%s4 + $0x690] sm:$0xff] %v6885
  %7150 = vst.msk [vmem:[%s4 + $0x698] sm:$0xff] %vm1790, %v6886
  %7151 = vst [vmem:[%s4 + $0x6a0] sm:$0xff] %v6887
  %7152 = vst.msk [vmem:[%s4 + $0x6a8] sm:$0xff] %vm1790, %v6888
  %7153 = vst [vmem:[%s4 + $0x6b0] sm:$0xff] %v6889
  %7154 = vst.msk [vmem:[%s4 + $0x6b8] sm:$0xff] %vm1790, %v6890
  %7155 = vst [vmem:[%s4 + $0x6c0] sm:$0xff] %v6891
  %7156 = vst.msk [vmem:[%s4 + $0x6c8] sm:$0xff] %vm1790, %v6892
  %7157 = vst [vmem:[%s4 + $0x6d0] sm:$0xff] %v6893
  %7158 = vst.msk [vmem:[%s4 + $0x6d8] sm:$0xff] %vm1790, %v6894
  %7159 = vst [vmem:[%s4 + $0x6e0] sm:$0xff] %v6895
  %7160 = vst.msk [vmem:[%s4 + $0x6e8] sm:$0xff] %vm1790, %v6896
  %7161 = vst [vmem:[%s4 + $0x6f0] sm:$0xff] %v6897
  %7162 = vst.msk [vmem:[%s4 + $0x6f8] sm:$0xff] %vm1790, %v6898
  %7163 = vst [vmem:[%s4 + $0x700] sm:$0xff] %v6899
  %7164 = vst.msk [vmem:[%s4 + $0x708] sm:$0xff] %vm1790, %v6900
  %7165 = vst [vmem:[%s4 + $0x710] sm:$0xff] %v6901
  %7166 = vst.msk [vmem:[%s4 + $0x718] sm:$0xff] %vm1790, %v6902
  %7167 = vst [vmem:[%s4 + $0x720] sm:$0xff] %v6903
  %7168 = vst.msk [vmem:[%s4 + $0x728] sm:$0xff] %vm1790, %v6904
  %7169 = vst [vmem:[%s4 + $0x730] sm:$0xff] %v6905
  %7170 = vst.msk [vmem:[%s4 + $0x738] sm:$0xff] %vm1790, %v6906
  %7171 = vst [vmem:[%s4 + $0x740] sm:$0xff] %v6907
  %7172 = vst.msk [vmem:[%s4 + $0x748] sm:$0xff] %vm1790, %v6908
  %7173 = vst [vmem:[%s4 + $0x750] sm:$0xff] %v6909
  %7174 = vst.msk [vmem:[%s4 + $0x758] sm:$0xff] %vm1790, %v6910
  %7175 = vst [vmem:[%s4 + $0x760] sm:$0xff] %v6911
  %7176 = vst.msk [vmem:[%s4 + $0x768] sm:$0xff] %vm1790, %v6912
  %7177 = vst [vmem:[%s4 + $0x770] sm:$0xff] %v6913
  %7178 = vst.msk [vmem:[%s4 + $0x778] sm:$0xff] %vm1790, %v6914
  %7179 = vst [vmem:[%s4 + $0x780] sm:$0xff] %v6915
  %7180 = vst.msk [vmem:[%s4 + $0x788] sm:$0xff] %vm1790, %v6916
  %7181 = vst [vmem:[%s4 + $0x790] sm:$0xff] %v6917
  %7182 = vst.msk [vmem:[%s4 + $0x798] sm:$0xff] %vm1790, %v6918
  %7183 = vst [vmem:[%s4 + $0x7a0] sm:$0xff] %v6919
  %7184 = vst.msk [vmem:[%s4 + $0x7a8] sm:$0xff] %vm1790, %v6920
  %7185 = vst [vmem:[%s4 + $0x7b0] sm:$0xff] %v6921
  %7186 = vst.msk [vmem:[%s4 + $0x7b8] sm:$0xff] %vm1790, %v6922
  %7187 = vst [vmem:[%s4 + $0x7c0] sm:$0xff] %v6923
  %7188 = vst.msk [vmem:[%s4 + $0x7c8] sm:$0xff] %vm1790, %v6924
  %7189 = vst [vmem:[%s4 + $0x7d0] sm:$0xff] %v6925
  %7190 = vst.msk [vmem:[%s4 + $0x7d8] sm:$0xff] %vm1790, %v6926
  %7191 = vst [vmem:[%s4 + $0x7e0] sm:$0xff] %v6927
  %7192 = vst.msk [vmem:[%s4 + $0x7e8] sm:$0xff] %vm1790, %v6928
  %7193 = vst [vmem:[%s4 + $0x7f0] sm:$0xff] %v6929
  %7194 = vst.msk [vmem:[%s4 + $0x7f8] sm:$0xff] %vm1790, %v6930
  %7195 = vst [vmem:[%s4 + $0x800] sm:$0xff] %v6931
  %7196 = vst.msk [vmem:[%s4 + $0x808] sm:$0xff] %vm1790, %v6932
  %7197 = vst [vmem:[%s4 + $0x810] sm:$0xff] %v6933
  %7198 = vst.msk [vmem:[%s4 + $0x818] sm:$0xff] %vm1790, %v6934
  %7199 = vst [vmem:[%s4 + $0x820] sm:$0xff] %v6935
  %7200 = vst.msk [vmem:[%s4 + $0x828] sm:$0xff] %vm1790, %v6936
  %7201 = vst [vmem:[%s4 + $0x830] sm:$0xff] %v6937
  %7202 = vst.msk [vmem:[%s4 + $0x838] sm:$0xff] %vm1790, %v6938
  // Predicated region
  $region18: #{fused_add_conv_bn.1} parent=0 // pred_check
    _
  $region19: #{fused_add_conv_bn.1} parent=0 // pred_check_branch
    %7204 = sbr.rel (0) target = $region21
  $region20: #{fused_add_conv_bn.1} parent=0 // pred_region
    _
  $region21: #{fused_add_conv_bn.1} parent=0 // pred_fallthru
    _
  // Predicated region
  $region22: #{fused_add_conv_bn.1} parent=0 // pred_check
    _
  $region23: #{fused_add_conv_bn.1} parent=0 // pred_check_branch
    %7206 = sbr.rel (0) target = $region25
  $region24: #{fused_add_conv_bn.1} parent=0 // pred_region
    _
  $region25: #{fused_add_conv_bn.1} parent=0 // pred_fallthru
    _

</llo_original>
